<compile_context>
chip_gen: v5e
topology: v5e:2x2
jax: 0.10.0
libtpu: 0.0.40
codegen_flags: <defaults>
</compile_context>

<pallas_src>
import functools
import math

import jax
import jax.numpy as jnp
from jax.experimental import pallas as pl
from jax.experimental.pallas import tpu as pltpu

NEG_INF = -1e30  # large finite negative instead of -inf (avoids exp(-inf - -inf) NaN)


# --------------------------- Linear (N-tiled) kernel ---------------------------

def _linear_kernel(x_ref, w_ref, b_ref, o_ref, *, relu):
    """o = x @ w + b (optional ReLU). x:[bm,K] f32, w:[K,tn] bf16, b:[1,tn] f32."""
    acc = jnp.dot(x_ref[...].astype(jnp.bfloat16), w_ref[...],
                  preferred_element_type=jnp.float32)
    acc = acc + b_ref[...]
    if relu:
        acc = jnp.maximum(acc, 0.0)
    o_ref[...] = acc.astype(o_ref.dtype)


def pallas_linear(x, w, b, relu=False, bm=256, bn=512):
    """x:[M,K] @ w:[K,N] + b:[N], tiled over rows and output columns."""
    M, K = x.shape
    N = w.shape[1]
    bm = min(bm, M)
    bn = N if N <= bn else bn
    grid = (pl.cdiv(M, bm), pl.cdiv(N, bn))
    return pl.pallas_call(
        functools.partial(_linear_kernel, relu=relu),
        out_shape=jax.ShapeDtypeStruct((M, N), jnp.float32),
        grid=grid,
        in_specs=[
            pl.BlockSpec((bm, K), lambda i, j: (i, 0)),
            pl.BlockSpec((K, bn), lambda i, j: (0, j)),
            pl.BlockSpec((1, bn), lambda i, j: (0, j)),
        ],
        out_specs=pl.BlockSpec((bm, bn), lambda i, j: (i, j)),
        compiler_params=pltpu.CompilerParams(
            dimension_semantics=("parallel", "parallel")),
    )(x, w, b.reshape(1, N))


# ----------------- Fused: linear + residual add + LayerNorm --------------------

def _linear_add_ln_kernel(x_ref, w_ref, b_ref, r_ref, g_ref, bb_ref, o_ref, *, eps):
    """o = LayerNorm(x @ w + b + residual) * gamma + beta   (LN over last dim)."""
    acc = jnp.dot(x_ref[...].astype(jnp.bfloat16), w_ref[...],
                  preferred_element_type=jnp.float32)
    z = acc + b_ref[...] + r_ref[...].astype(jnp.float32)
    mu = jnp.mean(z, axis=-1, keepdims=True)
    var = jnp.mean((z - mu) * (z - mu), axis=-1, keepdims=True)
    norm = (z - mu) * jax.lax.rsqrt(var + eps)
    o_ref[...] = (norm * g_ref[...] + bb_ref[...]).astype(o_ref.dtype)


def pallas_linear_add_layernorm(x, w, b, resid, gamma, beta, eps=1e-5, bm=256):
    M, K = x.shape
    N = w.shape[1]
    bm = min(bm, M)
    grid = (pl.cdiv(M, bm),)
    return pl.pallas_call(
        functools.partial(_linear_add_ln_kernel, eps=eps),
        out_shape=jax.ShapeDtypeStruct((M, N), jnp.float32),
        grid=grid,
        in_specs=[
            pl.BlockSpec((bm, K), lambda i: (i, 0)),
            pl.BlockSpec((K, N), lambda i: (0, 0)),
            pl.BlockSpec((1, N), lambda i: (0, 0)),
            pl.BlockSpec((bm, N), lambda i: (i, 0)),
            pl.BlockSpec((1, N), lambda i: (0, 0)),
            pl.BlockSpec((1, N), lambda i: (0, 0)),
        ],
        out_specs=pl.BlockSpec((bm, N), lambda i: (i, 0)),
        compiler_params=pltpu.CompilerParams(dimension_semantics=("parallel",)),
    )(x, w, b.reshape(1, N), resid, gamma.reshape(1, N), beta.reshape(1, N))


# ----------------- Fused: FFN (Lin-ReLU-Lin) + residual + LayerNorm -------------

def _ffn_add_ln_kernel(x_ref, w1_ref, b1_ref, w2_ref, b2_ref, g_ref, bb_ref, o_ref, *, eps):
    """o = LayerNorm(x + relu(x@w1+b1)@w2 + b2); d_ff intermediate stays in VMEM."""
    x = x_ref[...]
    h = jnp.dot(x.astype(jnp.bfloat16), w1_ref[...], preferred_element_type=jnp.float32)
    h = jnp.maximum(h + b1_ref[...], 0.0)
    ff = jnp.dot(h.astype(jnp.bfloat16), w2_ref[...], preferred_element_type=jnp.float32)
    z = ff + b2_ref[...] + x.astype(jnp.float32)
    mu = jnp.mean(z, axis=-1, keepdims=True)
    var = jnp.mean((z - mu) * (z - mu), axis=-1, keepdims=True)
    norm = (z - mu) * jax.lax.rsqrt(var + eps)
    o_ref[...] = (norm * g_ref[...] + bb_ref[...]).astype(o_ref.dtype)


def pallas_ffn_add_layernorm(x, w1, b1, w2, b2, gamma, beta, eps=1e-5, bm=256):
    M, D = x.shape
    dff = w1.shape[1]
    bm = min(bm, M)
    grid = (pl.cdiv(M, bm),)
    return pl.pallas_call(
        functools.partial(_ffn_add_ln_kernel, eps=eps),
        out_shape=jax.ShapeDtypeStruct((M, D), jnp.float32),
        grid=grid,
        in_specs=[
            pl.BlockSpec((bm, D), lambda i: (i, 0)),
            pl.BlockSpec((D, dff), lambda i: (0, 0)),
            pl.BlockSpec((1, dff), lambda i: (0, 0)),
            pl.BlockSpec((dff, D), lambda i: (0, 0)),
            pl.BlockSpec((1, D), lambda i: (0, 0)),
            pl.BlockSpec((1, D), lambda i: (0, 0)),
            pl.BlockSpec((1, D), lambda i: (0, 0)),
        ],
        out_specs=pl.BlockSpec((bm, D), lambda i: (i, 0)),
        compiler_params=pltpu.CompilerParams(dimension_semantics=("parallel",)),
    )(x, w1, b1.reshape(1, dff), w2, b2.reshape(1, D),
      gamma.reshape(1, D), beta.reshape(1, D))


# --------------------------- Flash attention kernel ----------------------------

def _flash_attn_kernel(q_ref, k_ref, v_ref, o_ref, m_sc, l_sc, acc_sc,
                       *, scale, causal, tq, tk, kv_len):
    """Online-softmax attention for one (batch*head, q-tile); kv tiles on grid axis 2."""
    qi = pl.program_id(1)
    ki = pl.program_id(2)

    @pl.when(ki == 0)
    def _init():
        m_sc[...] = jnp.full_like(m_sc, NEG_INF)
        l_sc[...] = jnp.zeros_like(l_sc)
        acc_sc[...] = jnp.zeros_like(acc_sc)

    def compute():
        q = q_ref[0].astype(jnp.bfloat16)          # [tq, dh]
        k = k_ref[0].astype(jnp.bfloat16)          # [tk, dh]
        s = jax.lax.dot_general(q, k, (((1,), (1,)), ((), ())),
                                preferred_element_type=jnp.float32) * scale
        col = ki * tk + jax.lax.broadcasted_iota(jnp.int32, (tq, tk), 1)
        valid = col < kv_len                        # mask kv padding of partial tiles
        if causal:
            row = qi * tq + jax.lax.broadcasted_iota(jnp.int32, (tq, tk), 0)
            valid = jnp.logical_and(valid, col <= row)
        s = jnp.where(valid, s, NEG_INF)

        m_prev = m_sc[...]
        m_new = jnp.maximum(m_prev, jnp.max(s, axis=-1, keepdims=True))
        alpha = jnp.exp(m_prev - m_new)
        p = jnp.exp(s - m_new)
        l_sc[...] = alpha * l_sc[...] + jnp.sum(p, axis=-1, keepdims=True)
        acc_sc[...] = alpha * acc_sc[...] + jnp.dot(
            p.astype(jnp.bfloat16), v_ref[0].astype(jnp.bfloat16),
            preferred_element_type=jnp.float32)
        m_sc[...] = m_new

    if causal:
        # Skip kv blocks that lie entirely above the causal diagonal for this q tile.
        @pl.when(ki * tk <= qi * tq + (tq - 1))
        def _():
            compute()
    else:
        compute()

    @pl.when(ki == pl.num_programs(2) - 1)
    def _finalize():
        o_ref[0] = (acc_sc[...] *
                    pl.reciprocal(l_sc[...], approx=True)).astype(o_ref.dtype)


def pallas_flash_attention(q, k, v, causal, tq=128, tk=128):
    """q:[BH,Sq,dh] k,v:[BH,Sk,dh] -> [BH,Sq,dh] (scaled dot-product attention)."""
    BH, Sq, dh = q.shape
    Sk = k.shape[1]
    tq = min(tq, Sq)
    tk = min(tk, Sk)
    scale = 1.0 / math.sqrt(dh)
    grid = (BH, pl.cdiv(Sq, tq), pl.cdiv(Sk, tk))
    return pl.pallas_call(
        functools.partial(_flash_attn_kernel, scale=scale, causal=causal,
                          tq=tq, tk=tk, kv_len=Sk),
        out_shape=jax.ShapeDtypeStruct((BH, Sq, dh), jnp.float32),
        grid=grid,
        in_specs=[
            pl.BlockSpec((1, tq, dh), lambda b, i, j: (b, i, 0)),
            pl.BlockSpec((1, tk, dh), lambda b, i, j: (b, j, 0)),
            pl.BlockSpec((1, tk, dh), lambda b, i, j: (b, j, 0)),
        ],
        out_specs=pl.BlockSpec((1, tq, dh), lambda b, i, j: (b, i, 0)),
        scratch_shapes=[
            pltpu.VMEM((tq, 1), jnp.float32),    # running max
            pltpu.VMEM((tq, 1), jnp.float32),    # running sum
            pltpu.VMEM((tq, dh), jnp.float32),   # output accumulator
        ],
        compiler_params=pltpu.CompilerParams(
            dimension_semantics=("parallel", "parallel", "arbitrary")),
    )(q, k, v)


# ------------------------------- Model (JAX glue) -------------------------------

def _split_heads(x, B, S, H, dh):
    # [B*S, H*dh] -> [B*H, S, dh]
    return x.reshape(B, S, H, dh).transpose(0, 2, 1, 3).reshape(B * H, S, dh)


def self_attention_ctx(x, p, num_heads):
    """Fused QKV projection + causal flash attention. Returns context [B*S, D]."""
    B, S, D = x.shape
    dh = D // num_heads
    qkv = pallas_linear(x.reshape(B * S, D), p["w_qkv"], p["b_qkv"])   # [B*S, 3D]
    qkv = qkv.reshape(B, S, 3, num_heads, dh)
    q = qkv[:, :, 0].transpose(0, 2, 1, 3).reshape(B * num_heads, S, dh)
    k = qkv[:, :, 1].transpose(0, 2, 1, 3).reshape(B * num_heads, S, dh)
    v = qkv[:, :, 2].transpose(0, 2, 1, 3).reshape(B * num_heads, S, dh)
    ctx = pallas_flash_attention(q, k, v, causal=True)
    return ctx.reshape(B, num_heads, S, dh).transpose(0, 2, 1, 3).reshape(B * S, D)


def cross_attention_ctx(x, enc, p, num_heads):
    """Q from x, fused KV projection from enc; unmasked flash attention."""
    B, Sq, D = x.shape
    Sk = enc.shape[1]
    dh = D // num_heads
    q = pallas_linear(x.reshape(B * Sq, D), p["wq"], p["bq"])
    kv = pallas_linear(enc.reshape(B * Sk, D), p["w_kv"], p["b_kv"])   # [B*Sk, 2D]
    q = _split_heads(q, B, Sq, num_heads, dh)
    kv = kv.reshape(B, Sk, 2, num_heads, dh)
    k = kv[:, :, 0].transpose(0, 2, 1, 3).reshape(B * num_heads, Sk, dh)
    v = kv[:, :, 1].transpose(0, 2, 1, 3).reshape(B * num_heads, Sk, dh)
    ctx = pallas_flash_attention(q, k, v, causal=False)
    return ctx.reshape(B, num_heads, Sq, dh).transpose(0, 2, 1, 3).reshape(B * Sq, D)


def decoder_layer(x, enc, p, num_heads):
    B, S, D = x.shape
    x2d = x.reshape(B * S, D)
    # causal self-attention; output projection fused with residual add + LayerNorm
    ctx = self_attention_ctx(x, p["self_attn"], num_heads)
    x2d = pallas_linear_add_layernorm(ctx, p["self_attn"]["wo"], p["self_attn"]["bo"],
                                      x2d, p["ln1_g"], p["ln1_b"])
    # cross-attention over encoder output; fused out-proj + add + LN
    ctx = cross_attention_ctx(x2d.reshape(B, S, D), enc, p["cross_attn"], num_heads)
    x2d = pallas_linear_add_layernorm(ctx, p["cross_attn"]["wo"], p["cross_attn"]["bo"],
                                      x2d, p["ln2_g"], p["ln2_b"])
    # fused FFN + add + LN (d_ff intermediate never leaves VMEM)
    x2d = pallas_ffn_add_layernorm(x2d, p["ff_w1"], p["ff_b1"], p["ff_w2"], p["ff_b2"],
                                   p["ln3_g"], p["ln3_b"])
    return x2d.reshape(B, S, D)


def autoencoder_decoder_forward(params, latent, cfg):
    B = latent.shape[0]
    S, D, H, V = cfg["output_seq_len"], cfg["d_model"], cfg["num_heads"], cfg["vocab_size"]
    # latent projection: Linear -> ReLU -> (Dropout=id) -> Linear
    h = pallas_linear(latent, params["lp_w1"], params["lp_b1"], relu=True)    # [B, 2D]
    dec = pallas_linear(h, params["lp_w2"], params["lp_b2"])                  # [B, S*D]
    x = dec.reshape(B, S, D) + params["pos_enc"][None, :S, :]
    # TODO(synk): dropout = identity (inference semantics)
    enc_output = x
    for lp in params["layers"]:
        x = decoder_layer(x, enc_output, lp, H)
    # final vocab projection (lane-dense padded to multiple of 128, sliced back)
    logits = pallas_linear(x.reshape(B * S, D), params["out_w"], params["out_b"])
    return logits[:, :V].reshape(B, S, V)


# --------------------------------- Param init -----------------------------------

def xavier_uniform(key, fan_in, fan_out, dtype=jnp.bfloat16):
    limit = math.sqrt(6.0 / (fan_in + fan_out))
    w = jax.random.uniform(key, (fan_in, fan_out), jnp.float32, -limit, limit)
    return w.astype(dtype)


def sinusoidal_pos_encoding(max_len, d_model):
    pos = jnp.arange(max_len, dtype=jnp.float32)[:, None]
    div = jnp.exp(jnp.arange(0, d_model, 2, dtype=jnp.float32) * (-math.log(10000.0) / d_model))
    pe = jnp.zeros((max_len, d_model), jnp.float32)
    pe = pe.at[:, 0::2].set(jnp.sin(pos * div))
    pe = pe.at[:, 1::2].set(jnp.cos(pos * div))
    return pe


def init_self_attn(key, D):
    ks = jax.random.split(key, 4)
    w_qkv = jnp.concatenate(
        [xavier_uniform(ks[i], D, D, jnp.float32) for i in range(3)], axis=1
    ).astype(jnp.bfloat16)
    return {"w_qkv": w_qkv, "b_qkv": jnp.zeros((3 * D,), jnp.float32),
            "wo": xavier_uniform(ks[3], D, D), "bo": jnp.zeros((D,), jnp.float32)}


def init_cross_attn(key, D):
    ks = jax.random.split(key, 4)
    w_kv = jnp.concatenate(
        [xavier_uniform(ks[1], D, D, jnp.float32),
         xavier_uniform(ks[2], D, D, jnp.float32)], axis=1).astype(jnp.bfloat16)
    return {"wq": xavier_uniform(ks[0], D, D), "bq": jnp.zeros((D,), jnp.float32),
            "w_kv": w_kv, "b_kv": jnp.zeros((2 * D,), jnp.float32),
            "wo": xavier_uniform(ks[3], D, D), "bo": jnp.zeros((D,), jnp.float32)}


def init_params(key, cfg):
    D, dff, S = cfg["d_model"], cfg["d_ff"], cfg["output_seq_len"]
    L, V, lat = cfg["num_layers"], cfg["vocab_size"], cfg["latent_dim"]
    Vp = ((V + 127) // 128) * 128
    keys = jax.random.split(key, 3 + L)
    ow = xavier_uniform(keys[2], D, V, jnp.float32)
    out_w = jnp.zeros((D, Vp), jnp.float32).at[:, :V].set(ow).astype(jnp.bfloat16)
    params = {
        "lp_w1": xavier_uniform(keys[0], lat, 2 * D),
        "lp_b1": jnp.zeros((2 * D,), jnp.float32),
        "lp_w2": xavier_uniform(keys[1], 2 * D, D * S),
        "lp_b2": jnp.zeros((D * S,), jnp.float32),
        "out_w": out_w,
        "out_b": jnp.zeros((Vp,), jnp.float32),
        "pos_enc": sinusoidal_pos_encoding(cfg["max_len"], D),
        "layers": [],
    }
    ones = jnp.ones((D,), jnp.float32)
    zeros = jnp.zeros((D,), jnp.float32)
    for li in range(L):
        ks = jax.random.split(keys[3 + li], 4)
        params["layers"].append({
            "self_attn": init_self_attn(ks[0], D),
            "cross_attn": init_cross_attn(ks[1], D),
            "ff_w1": xavier_uniform(ks[2], D, dff), "ff_b1": jnp.zeros((dff,), jnp.float32),
            "ff_w2": xavier_uniform(ks[3], dff, D), "ff_b2": jnp.zeros((D,), jnp.float32),
            "ln1_g": ones, "ln1_b": zeros,
            "ln2_g": ones, "ln2_b": zeros,
            "ln3_g": ones, "ln3_b": zeros,
        })
    return params


# ------------------------------------ main --------------------------------------

if __name__ == "__main__":
    # Small shapes consistent with the module (real defaults: d_model=512, heads=8,
    # d_ff=2048, layers=6, latent=1024, output_seq_len=1800 -- scaled down here).
    cfg = dict(vocab_size=16, d_model=32, num_heads=4, d_ff=64, num_layers=2,
               latent_dim=32, output_seq_len=16, max_len=64)

    key = jax.random.PRNGKey(0)
    k_param, k_latent = jax.random.split(key)
    params = init_params(k_param, cfg)
    latent = jax.random.normal(k_latent, (2, cfg["latent_dim"]), jnp.float32)

    fwd = jax.jit(lambda p, l: autoencoder_decoder_forward(p, l, cfg))
    out = fwd(params, latent)
    out = jax.block_until_ready(out)

    assert out.shape == (2, cfg["output_seq_len"], cfg["vocab_size"]), out.shape
    assert bool(jnp.all(jnp.isfinite(out))), "non-finite output"
    print("KERNEL_OK")
</pallas_src>

<mosaic_0001>
module attributes {stable_mosaic.version = 11 : i64} {
  func.func @_linear_kernel(%arg0: i32, %arg1: i32, %arg2: memref<2x32xf32, #tpu.memory_space<vmem>>, %arg3: memref<32x64xbf16, #tpu.memory_space<vmem>>, %arg4: memref<1x64xf32, #tpu.memory_space<vmem>>, %arg5: memref<2x64xf32, #tpu.memory_space<vmem>>) attributes {dimension_semantics = [#tpu.dimension_semantics<parallel>, #tpu.dimension_semantics<parallel>], iteration_bounds = array<i64: 1, 1>, scalar_prefetch = 0 : i64, scratch_operands = 0 : i64, tpu.core_type = #tpu.core_type<tc>, window_params = [{transform_indices = @transform_0, window_bounds = array<i64: 2, 32>}, {transform_indices = @transform_1, window_bounds = array<i64: 32, 64>}, {transform_indices = @transform_2, window_bounds = array<i64: 1, 64>}, {transform_indices = @transform_3, window_bounds = array<i64: 2, 64>}]} {
    %c0 = arith.constant 0 : index
    %c0_0 = arith.constant 0 : index
    %0 = vector.load %arg2[%c0, %c0_0] : memref<2x32xf32, #tpu.memory_space<vmem>>, vector<2x32xf32>
    %1 = arith.truncf %0 : vector<2x32xf32> to vector<2x32xbf16>
    %c0_1 = arith.constant 0 : index
    %c0_2 = arith.constant 0 : index
    %2 = vector.load %arg3[%c0_1, %c0_2] : memref<32x64xbf16, #tpu.memory_space<vmem>>, vector<32x64xbf16>
    %cst = arith.constant dense<0.000000e+00> : vector<2x64xf32>
    %3 = tpu.matmul %1, %2, %cst {dimension_numbers = #tpu.dot_dimension_numbers<[1], [0], [0], [1], [0, 0, 1, 1], [], []>} : vector<2x32xbf16>, vector<32x64xbf16>, vector<2x64xf32> -> vector<2x64xf32>
    %c0_3 = arith.constant 0 : index
    %c0_4 = arith.constant 0 : index
    %4 = vector.load %arg4[%c0_3, %c0_4] : memref<1x64xf32, #tpu.memory_space<vmem>>, vector<1x64xf32>
    %5 = vector.broadcast %4 : vector<1x64xf32> to vector<2x64xf32>
    %6 = arith.addf %3, %5 : vector<2x64xf32>
    %cst_5 = arith.constant 0.000000e+00 : f32
    %7 = vector.broadcast %cst_5 : f32 to vector<2x64xf32>
    %8 = arith.maximumf %6, %7 : vector<2x64xf32>
    %c0_6 = arith.constant 0 : index
    %c0_7 = arith.constant 0 : index
    %9 = vector.load %arg5[%c0_6, %c0_7] : memref<2x64xf32, #tpu.memory_space<vmem>>, vector<2x64xf32>
    tpu.vector_store %arg5[%c0_6, %c0_7], %8 {strides = array<i32>} : memref<2x64xf32, #tpu.memory_space<vmem>>, vector<2x64xf32>,
    return
  }
  func.func @transform_0(%arg0: i32, %arg1: i32) -> (i32, i32) {
    %c0_i32 = arith.constant 0 : i32
    %c0_i32_0 = arith.constant 0 : i32
    return %arg0, %c0_i32 : i32, i32
  }
  func.func @transform_1(%arg0: i32, %arg1: i32) -> (i32, i32) {
    %c0_i32 = arith.constant 0 : i32
    %c0_i32_0 = arith.constant 0 : i32
    return %c0_i32, %arg1 : i32, i32
  }
  func.func @transform_2(%arg0: i32, %arg1: i32) -> (i32, i32) {
    %c0_i32 = arith.constant 0 : i32
    %c0_i32_0 = arith.constant 0 : i32
    return %c0_i32, %arg1 : i32, i32
  }
  func.func @transform_3(%arg0: i32, %arg1: i32) -> (i32, i32) {
    %c0_i32 = arith.constant 0 : i32
    return %arg0, %arg1 : i32, i32
  }
}

module attributes {stable_mosaic.version = 11 : i64} {
  func.func @_linear_kernel(%arg0: i32, %arg1: i32, %arg2: memref<2x64xf32, #tpu.memory_space<vmem>>, %arg3: memref<64x512xbf16, #tpu.memory_space<vmem>>, %arg4: memref<1x512xf32, #tpu.memory_space<vmem>>, %arg5: memref<2x512xf32, #tpu.memory_space<vmem>>) attributes {dimension_semantics = [#tpu.dimension_semantics<parallel>, #tpu.dimension_semantics<parallel>], iteration_bounds = array<i64: 1, 1>, scalar_prefetch = 0 : i64, scratch_operands = 0 : i64, tpu.core_type = #tpu.core_type<tc>, window_params = [{transform_indices = @transform_0, window_bounds = array<i64: 2, 64>}, {transform_indices = @transform_1, window_bounds = array<i64: 64, 512>}, {transform_indices = @transform_2, window_bounds = array<i64: 1, 512>}, {transform_indices = @transform_3, window_bounds = array<i64: 2, 512>}]} {
    %c0 = arith.constant 0 : index
    %c0_0 = arith.constant 0 : index
    %0 = vector.load %arg2[%c0, %c0_0] : memref<2x64xf32, #tpu.memory_space<vmem>>, vector<2x64xf32>
    %1 = arith.truncf %0 : vector<2x64xf32> to vector<2x64xbf16>
    %c0_1 = arith.constant 0 : index
    %c0_2 = arith.constant 0 : index
    %2 = vector.load %arg3[%c0_1, %c0_2] : memref<64x512xbf16, #tpu.memory_space<vmem>>, vector<64x512xbf16>
    %cst = arith.constant dense<0.000000e+00> : vector<2x512xf32>
    %3 = tpu.matmul %1, %2, %cst {dimension_numbers = #tpu.dot_dimension_numbers<[1], [0], [0], [1], [0, 0, 1, 1], [], []>} : vector<2x64xbf16>, vector<64x512xbf16>, vector<2x512xf32> -> vector<2x512xf32>
    %c0_3 = arith.constant 0 : index
    %c0_4 = arith.constant 0 : index
    %4 = vector.load %arg4[%c0_3, %c0_4] : memref<1x512xf32, #tpu.memory_space<vmem>>, vector<1x512xf32>
    %5 = vector.broadcast %4 : vector<1x512xf32> to vector<2x512xf32>
    %6 = arith.addf %3, %5 : vector<2x512xf32>
    %c0_5 = arith.constant 0 : index
    %c0_6 = arith.constant 0 : index
    %7 = vector.load %arg5[%c0_5, %c0_6] : memref<2x512xf32, #tpu.memory_space<vmem>>, vector<2x512xf32>
    tpu.vector_store %arg5[%c0_5, %c0_6], %6 {strides = array<i32>} : memref<2x512xf32, #tpu.memory_space<vmem>>, vector<2x512xf32>,
    return
  }
  func.func @transform_0(%arg0: i32, %arg1: i32) -> (i32, i32) {
    %c0_i32 = arith.constant 0 : i32
    %c0_i32_0 = arith.constant 0 : i32
    return %arg0, %c0_i32 : i32, i32
  }
  func.func @transform_1(%arg0: i32, %arg1: i32) -> (i32, i32) {
    %c0_i32 = arith.constant 0 : i32
    %c0_i32_0 = arith.constant 0 : i32
    return %c0_i32, %arg1 : i32, i32
  }
  func.func @transform_2(%arg0: i32, %arg1: i32) -> (i32, i32) {
    %c0_i32 = arith.constant 0 : i32
    %c0_i32_0 = arith.constant 0 : i32
    return %c0_i32, %arg1 : i32, i32
  }
  func.func @transform_3(%arg0: i32, %arg1: i32) -> (i32, i32) {
    %c0_i32 = arith.constant 0 : i32
    return %arg0, %arg1 : i32, i32
  }
}

module attributes {stable_mosaic.version = 11 : i64} {
  func.func @_linear_kernel(%arg0: i32, %arg1: i32, %arg2: memref<32x32xf32, #tpu.memory_space<vmem>>, %arg3: memref<32x96xbf16, #tpu.memory_space<vmem>>, %arg4: memref<1x96xf32, #tpu.memory_space<vmem>>, %arg5: memref<32x96xf32, #tpu.memory_space<vmem>>) attributes {dimension_semantics = [#tpu.dimension_semantics<parallel>, #tpu.dimension_semantics<parallel>], iteration_bounds = array<i64: 1, 1>, scalar_prefetch = 0 : i64, scratch_operands = 0 : i64, tpu.core_type = #tpu.core_type<tc>, window_params = [{transform_indices = @transform_0, window_bounds = array<i64: 32, 32>}, {transform_indices = @transform_1, window_bounds = array<i64: 32, 96>}, {transform_indices = @transform_2, window_bounds = array<i64: 1, 96>}, {transform_indices = @transform_3, window_bounds = array<i64: 32, 96>}]} {
    %c0 = arith.constant 0 : index
    %c0_0 = arith.constant 0 : index
    %0 = vector.load %arg2[%c0, %c0_0] : memref<32x32xf32, #tpu.memory_space<vmem>>, vector<32x32xf32>
    %1 = arith.truncf %0 : vector<32x32xf32> to vector<32x32xbf16>
    %c0_1 = arith.constant 0 : index
    %c0_2 = arith.constant 0 : index
    %2 = vector.load %arg3[%c0_1, %c0_2] : memref<32x96xbf16, #tpu.memory_space<vmem>>, vector<32x96xbf16>
    %cst = arith.constant dense<0.000000e+00> : vector<32x96xf32>
    %3 = tpu.matmul %1, %2, %cst {dimension_numbers = #tpu.dot_dimension_numbers<[1], [0], [0], [1], [0, 0, 1, 1], [], []>} : vector<32x32xbf16>, vector<32x96xbf16>, vector<32x96xf32> -> vector<32x96xf32>
    %c0_3 = arith.constant 0 : index
    %c0_4 = arith.constant 0 : index
    %4 = vector.load %arg4[%c0_3, %c0_4] : memref<1x96xf32, #tpu.memory_space<vmem>>, vector<1x96xf32>
    %5 = vector.broadcast %4 : vector<1x96xf32> to vector<32x96xf32>
    %6 = arith.addf %3, %5 : vector<32x96xf32>
    %c0_5 = arith.constant 0 : index
    %c0_6 = arith.constant 0 : index
    %7 = vector.load %arg5[%c0_5, %c0_6] : memref<32x96xf32, #tpu.memory_space<vmem>>, vector<32x96xf32>
    tpu.vector_store %arg5[%c0_5, %c0_6], %6 {strides = array<i32>} : memref<32x96xf32, #tpu.memory_space<vmem>>, vector<32x96xf32>,
    return
  }
  func.func @transform_0(%arg0: i32, %arg1: i32) -> (i32, i32) {
    %c0_i32 = arith.constant 0 : i32
    %c0_i32_0 = arith.constant 0 : i32
    return %arg0, %c0_i32 : i32, i32
  }
  func.func @transform_1(%arg0: i32, %arg1: i32) -> (i32, i32) {
    %c0_i32 = arith.constant 0 : i32
    %c0_i32_0 = arith.constant 0 : i32
    return %c0_i32, %arg1 : i32, i32
  }
  func.func @transform_2(%arg0: i32, %arg1: i32) -> (i32, i32) {
    %c0_i32 = arith.constant 0 : i32
    %c0_i32_0 = arith.constant 0 : i32
    return %c0_i32, %arg1 : i32, i32
  }
  func.func @transform_3(%arg0: i32, %arg1: i32) -> (i32, i32) {
    %c0_i32 = arith.constant 0 : i32
    return %arg0, %arg1 : i32, i32
  }
}

module attributes {stable_mosaic.version = 11 : i64} {
  func.func @_flash_attn_kernel(%arg0: i32, %arg1: i32, %arg2: i32, %arg3: memref<1x16x8xf32, #tpu.memory_space<vmem>>, %arg4: memref<1x16x8xf32, #tpu.memory_space<vmem>>, %arg5: memref<1x16x8xf32, #tpu.memory_space<vmem>>, %arg6: memref<1x16x8xf32, #tpu.memory_space<vmem>>, %arg7: memref<16x1xf32, #tpu.memory_space<vmem>>, %arg8: memref<16x1xf32, #tpu.memory_space<vmem>>, %arg9: memref<16x8xf32, #tpu.memory_space<vmem>>) attributes {dimension_semantics = [#tpu.dimension_semantics<parallel>, #tpu.dimension_semantics<parallel>, #tpu.dimension_semantics<arbitrary>], iteration_bounds = array<i64: 8, 1, 1>, scalar_prefetch = 0 : i64, scratch_operands = 3 : i64, tpu.core_type = #tpu.core_type<tc>, window_params = [{transform_indices = @transform_0, window_bounds = array<i64: 1, 16, 8>}, {transform_indices = @transform_1, window_bounds = array<i64: 1, 16, 8>}, {transform_indices = @transform_2, window_bounds = array<i64: 1, 16, 8>}, {transform_indices = @transform_3, window_bounds = array<i64: 1, 16, 8>}]} {
    %c0_i32 = arith.constant 0 : i32
    %0 = arith.cmpi eq, %arg2, %c0_i32 : i32
    %1 = arith.extui %0 : i1 to i32
    %c0_i32_0 = arith.constant 0 : i32
    %2 = arith.cmpi ne, %1, %c0_i32_0 : i32
    scf.if %2 {
      %cst = arith.constant -1.000000e+30 : f32
      %12 = vector.broadcast %cst : f32 to vector<16x1xf32>
      %c0 = arith.constant 0 : index
      %c0_5 = arith.constant 0 : index
      %13 = vector.load %arg7[%c0, %c0_5] : memref<16x1xf32, #tpu.memory_space<vmem>>, vector<16x1xf32>
      tpu.vector_store %arg7[%c0, %c0_5], %12 {strides = array<i32>} : memref<16x1xf32, #tpu.memory_space<vmem>>, vector<16x1xf32>,
      %cst_6 = arith.constant 0.000000e+00 : f32
      %14 = vector.broadcast %cst_6 : f32 to vector<16x1xf32>
      %c0_7 = arith.constant 0 : index
      %c0_8 = arith.constant 0 : index
      %15 = vector.load %arg8[%c0_7, %c0_8] : memref<16x1xf32, #tpu.memory_space<vmem>>, vector<16x1xf32>
      tpu.vector_store %arg8[%c0_7, %c0_8], %14 {strides = array<i32>} : memref<16x1xf32, #tpu.memory_space<vmem>>, vector<16x1xf32>,
      %cst_9 = arith.constant 0.000000e+00 : f32
      %16 = vector.broadcast %cst_9 : f32 to vector<16x8xf32>
      %c0_10 = arith.constant 0 : index
      %c0_11 = arith.constant 0 : index
      %17 = vector.load %arg9[%c0_10, %c0_11] : memref<16x8xf32, #tpu.memory_space<vmem>>, vector<16x8xf32>
      tpu.vector_store %arg9[%c0_10, %c0_11], %16 {strides = array<i32>} : memref<16x8xf32, #tpu.memory_space<vmem>>, vector<16x8xf32>,
    } else {
    }
    %c16_i32 = arith.constant 16 : i32
    %3 = arith.muli %arg2, %c16_i32 : i32
    %c16_i32_1 = arith.constant 16 : i32
    %4 = arith.muli %arg1, %c16_i32_1 : i32
    %c15_i32 = arith.constant 15 : i32
    %5 = arith.addi %4, %c15_i32 : i32
    %6 = arith.cmpi sle, %3, %5 : i32
    %7 = arith.extui %6 : i1 to i32
    %c0_i32_2 = arith.constant 0 : i32
    %8 = arith.cmpi ne, %7, %c0_i32_2 : i32
    scf.if %8 {
      %c0 = arith.constant 0 : index
      %c0_5 = arith.constant 0 : index
      %c0_6 = arith.constant 0 : index
      %12 = vector.load %arg3[%c0, %c0_5, %c0_6] : memref<1x16x8xf32, #tpu.memory_space<vmem>>, vector<1x16x8xf32>
      %13 = vector.shape_cast %12 : vector<1x16x8xf32> to vector<16x8xf32>
      %14 = arith.truncf %13 : vector<16x8xf32> to vector<16x8xbf16>
      %c0_7 = arith.constant 0 : index
      %c0_8 = arith.constant 0 : index
      %c0_9 = arith.constant 0 : index
      %15 = vector.load %arg4[%c0_7, %c0_8, %c0_9] : memref<1x16x8xf32, #tpu.memory_space<vmem>>, vector<1x16x8xf32>
      %16 = vector.shape_cast %15 : vector<1x16x8xf32> to vector<16x8xf32>
      %17 = arith.truncf %16 : vector<16x8xf32> to vector<16x8xbf16>
      %cst = arith.constant dense<0.000000e+00> : vector<16x16xf32>
      %18 = tpu.matmul %14, %17, %cst {dimension_numbers = #tpu.dot_dimension_numbers<[1], [1], [0], [0], [0, 0, 1, 0], [], []>} : vector<16x8xbf16>, vector<16x8xbf16>, vector<16x16xf32> -> vector<16x16xf32>
      %cst_10 = arith.constant 0.353553385 : f32
      %19 = vector.broadcast %cst_10 : f32 to vector<16x16xf32>
      %20 = arith.mulf %18, %19 : vector<16x16xf32>
      %c16_i32_11 = arith.constant 16 : i32
      %21 = arith.muli %arg2, %c16_i32_11 : i32
      %22 = tpu.iota {dimensions = array<i32: 1>} : vector<16x16xi32>
      %23 = vector.broadcast %21 : i32 to vector<16x16xi32>
      %24 = arith.addi %23, %22 : vector<16x16xi32>
      %c16_i32_12 = arith.constant 16 : i32
      %25 = vector.broadcast %c16_i32_12 : i32 to vector<16x16xi32>
      %26 = arith.cmpi slt, %24, %25 : vector<16x16xi32>
      %c16_i32_13 = arith.constant 16 : i32
      %27 = arith.muli %arg1, %c16_i32_13 : i32
      %28 = tpu.iota {dimensions = array<i32: 0>} : vector<16x16xi32>
      %29 = vector.broadcast %27 : i32 to vector<16x16xi32>
      %30 = arith.addi %29, %28 : vector<16x16xi32>
      %31 = arith.cmpi sle, %24, %30 : vector<16x16xi32>
      %32 = arith.andi %26, %31 : vector<16x16xi1>
      %cst_14 = arith.constant -1.000000e+30 : f32
      %33 = vector.broadcast %cst_14 : f32 to vector<16x16xf32>
      %34 = arith.select %32, %20, %33 : vector<16x16xi1>, vector<16x16xf32>
      %c0_15 = arith.constant 0 : index
      %c0_16 = arith.constant 0 : index
      %35 = vector.load %arg7[%c0_15, %c0_16] : memref<16x1xf32, #tpu.memory_space<vmem>>, vector<16x1xf32>
      %cst_17 = arith.constant dense<0xFF800000> : vector<16xf32>
      %36 = vector.multi_reduction <maximumf>, %34, %cst_17 [1] : vector<16x16xf32> to vector<16xf32>
      %37 = vector.shape_cast %36 : vector<16xf32> to vector<16x1xf32>
      %38 = arith.maximumf %35, %37 : vector<16x1xf32>
      %39 = arith.subf %35, %38 : vector<16x1xf32>
      %40 = math.exp %39 : vector<16x1xf32>
      %41 = vector.broadcast %38 : vector<16x1xf32> to vector<16x16xf32>
      %42 = arith.subf %34, %41 : vector<16x16xf32>
      %43 = math.exp %42 : vector<16x16xf32>
      %c0_18 = arith.constant 0 : index
      %c0_19 = arith.constant 0 : index
      %44 = vector.load %arg8[%c0_18, %c0_19] : memref<16x1xf32, #tpu.memory_space<vmem>>, vector<16x1xf32>
      %45 = arith.mulf %40, %44 : vector<16x1xf32>
      %cst_20 = arith.constant dense<0.000000e+00> : vector<16xf32>
      %46 = vector.multi_reduction <add>, %43, %cst_20 [1] : vector<16x16xf32> to vector<16xf32>
      %47 = vector.shape_cast %46 : vector<16xf32> to vector<16x1xf32>
      %48 = arith.addf %45, %47 : vector<16x1xf32>
      %c0_21 = arith.constant 0 : index
      %c0_22 = arith.constant 0 : index
      %49 = vector.load %arg8[%c0_21, %c0_22] : memref<16x1xf32, #tpu.memory_space<vmem>>, vector<16x1xf32>
      tpu.vector_store %arg8[%c0_21, %c0_22], %48 {strides = array<i32>} : memref<16x1xf32, #tpu.memory_space<vmem>>, vector<16x1xf32>,
      %c0_23 = arith.constant 0 : index
      %c0_24 = arith.constant 0 : index
      %50 = vector.load %arg9[%c0_23, %c0_24] : memref<16x8xf32, #tpu.memory_space<vmem>>, vector<16x8xf32>
      %51 = vector.broadcast %40 : vector<16x1xf32> to vector<16x8xf32>
      %52 = arith.mulf %51, %50 : vector<16x8xf32>
      %53 = arith.truncf %43 : vector<16x16xf32> to vector<16x16xbf16>
      %c0_25 = arith.constant 0 : index
      %c0_26 = arith.constant 0 : index
      %c0_27 = arith.constant 0 : index
      %54 = vector.load %arg5[%c0_25, %c0_26, %c0_27] : memref<1x16x8xf32, #tpu.memory_space<vmem>>, vector<1x16x8xf32>
      %55 = vector.shape_cast %54 : vector<1x16x8xf32> to vector<16x8xf32>
      %56 = arith.truncf %55 : vector<16x8xf32> to vector<16x8xbf16>
      %cst_28 = arith.constant dense<0.000000e+00> : vector<16x8xf32>
      %57 = tpu.matmul %53, %56, %cst_28 {dimension_numbers = #tpu.dot_dimension_numbers<[1], [0], [0], [1], [0, 0, 1, 1], [], []>} : vector<16x16xbf16>, vector<16x8xbf16>, vector<16x8xf32> -> vector<16x8xf32>
      %58 = arith.addf %52, %57 : vector<16x8xf32>
      %c0_29 = arith.constant 0 : index
      %c0_30 = arith.constant 0 : index
      %59 = vector.load %arg9[%c0_29, %c0_30] : memref<16x8xf32, #tpu.memory_space<vmem>>, vector<16x8xf32>
      tpu.vector_store %arg9[%c0_29, %c0_30], %58 {strides = array<i32>} : memref<16x8xf32, #tpu.memory_space<vmem>>, vector<16x8xf32>,
      %c0_31 = arith.constant 0 : index
      %c0_32 = arith.constant 0 : index
      %60 = vector.load %arg7[%c0_31, %c0_32] : memref<16x1xf32, #tpu.memory_space<vmem>>, vector<16x1xf32>
      tpu.vector_store %arg7[%c0_31, %c0_32], %38 {strides = array<i32>} : memref<16x1xf32, #tpu.memory_space<vmem>>, vector<16x1xf32>,
    } else {
    }
    %c0_i32_3 = arith.constant 0 : i32
    %9 = arith.cmpi eq, %arg2, %c0_i32_3 : i32
    %10 = arith.extui %9 : i1 to i32
    %c0_i32_4 = arith.constant 0 : i32
    %11 = arith.cmpi ne, %10, %c0_i32_4 : i32
    scf.if %11 {
      %c0 = arith.constant 0 : index
      %c0_5 = arith.constant 0 : index
      %12 = vector.load %arg9[%c0, %c0_5] : memref<16x8xf32, #tpu.memory_space<vmem>>, vector<16x8xf32>
      %c0_6 = arith.constant 0 : index
      %c0_7 = arith.constant 0 : index
      %13 = vector.load %arg8[%c0_6, %c0_7] : memref<16x1xf32, #tpu.memory_space<vmem>>, vector<16x1xf32>
      %14 = tpu.reciprocal %13 {approx = true} : vector<16x1xf32> -> vector<16x1xf32>
      %15 = vector.broadcast %14 : vector<16x1xf32> to vector<16x8xf32>
      %16 = arith.mulf %12, %15 : vector<16x8xf32>
      %c0_8 = arith.constant 0 : index
      %c0_9 = arith.constant 0 : index
      %c0_10 = arith.constant 0 : index
      %17 = vector.load %arg6[%c0_8, %c0_9, %c0_10] : memref<1x16x8xf32, #tpu.memory_space<vmem>>, vector<1x16x8xf32>
      %18 = vector.shape_cast %17 : vector<1x16x8xf32> to vector<16x8xf32>
      %19 = vector.shape_cast %16 : vector<16x8xf32> to vector<1x16x8xf32>
      tpu.vector_store %arg6[%c0_8, %c0_9, %c0_10], %19 {strides = array<i32>} : memref<1x16x8xf32, #tpu.memory_space<vmem>>, vector<1x16x8xf32>,
    } else {
    }
    return
  }
  func.func @transform_0(%arg0: i32, %arg1: i32, %arg2: i32) -> (i32, i32, i32) {
    %c0_i32 = arith.constant 0 : i32
    %c0_i32_0 = arith.constant 0 : i32
    return %arg0, %arg1, %c0_i32 : i32, i32, i32
  }
  func.func @transform_1(%arg0: i32, %arg1: i32, %arg2: i32) -> (i32, i32, i32) {
    %c0_i32 = arith.constant 0 : i32
    %c0_i32_0 = arith.constant 0 : i32
    return %arg0, %arg2, %c0_i32 : i32, i32, i32
  }
  func.func @transform_2(%arg0: i32, %arg1: i32, %arg2: i32) -> (i32, i32, i32) {
    %c0_i32 = arith.constant 0 : i32
    %c0_i32_0 = arith.constant 0 : i32
    return %arg0, %arg2, %c0_i32 : i32, i32, i32
  }
  func.func @transform_3(%arg0: i32, %arg1: i32, %arg2: i32) -> (i32, i32, i32) {
    %c0_i32 = arith.constant 0 : i32
    %c0_i32_0 = arith.constant 0 : i32
    return %arg0, %arg1, %c0_i32 : i32, i32, i32
  }
}

module attributes {stable_mosaic.version = 11 : i64} {
  func.func @_linear_kernel(%arg0: i32, %arg1: i32, %arg2: memref<32x32xf32, #tpu.memory_space<vmem>>, %arg3: memref<32x32xbf16, #tpu.memory_space<vmem>>, %arg4: memref<1x32xf32, #tpu.memory_space<vmem>>, %arg5: memref<32x32xf32, #tpu.memory_space<vmem>>) attributes {dimension_semantics = [#tpu.dimension_semantics<parallel>, #tpu.dimension_semantics<parallel>], iteration_bounds = array<i64: 1, 1>, scalar_prefetch = 0 : i64, scratch_operands = 0 : i64, tpu.core_type = #tpu.core_type<tc>, window_params = [{transform_indices = @transform_0, window_bounds = array<i64: 32, 32>}, {transform_indices = @transform_1, window_bounds = array<i64: 32, 32>}, {transform_indices = @transform_2, window_bounds = array<i64: 1, 32>}, {transform_indices = @transform_3, window_bounds = array<i64: 32, 32>}]} {
    %c0 = arith.constant 0 : index
    %c0_0 = arith.constant 0 : index
    %0 = vector.load %arg2[%c0, %c0_0] : memref<32x32xf32, #tpu.memory_space<vmem>>, vector<32x32xf32>
    %1 = arith.truncf %0 : vector<32x32xf32> to vector<32x32xbf16>
    %c0_1 = arith.constant 0 : index
    %c0_2 = arith.constant 0 : index
    %2 = vector.load %arg3[%c0_1, %c0_2] : memref<32x32xbf16, #tpu.memory_space<vmem>>, vector<32x32xbf16>
    %cst = arith.constant dense<0.000000e+00> : vector<32x32xf32>
    %3 = tpu.matmul %1, %2, %cst {dimension_numbers = #tpu.dot_dimension_numbers<[1], [0], [0], [1], [0, 0, 1, 1], [], []>} : vector<32x32xbf16>, vector<32x32xbf16>, vector<32x32xf32> -> vector<32x32xf32>
    %c0_3 = arith.constant 0 : index
    %c0_4 = arith.constant 0 : index
    %4 = vector.load %arg4[%c0_3, %c0_4] : memref<1x32xf32, #tpu.memory_space<vmem>>, vector<1x32xf32>
    %5 = vector.broadcast %4 : vector<1x32xf32> to vector<32x32xf32>
    %6 = arith.addf %3, %5 : vector<32x32xf32>
    %c0_5 = arith.constant 0 : index
    %c0_6 = arith.constant 0 : index
    %7 = vector.load %arg5[%c0_5, %c0_6] : memref<32x32xf32, #tpu.memory_space<vmem>>, vector<32x32xf32>
    tpu.vector_store %arg5[%c0_5, %c0_6], %6 {strides = array<i32>} : memref<32x32xf32, #tpu.memory_space<vmem>>, vector<32x32xf32>,
    return
  }
  func.func @transform_0(%arg0: i32, %arg1: i32) -> (i32, i32) {
    %c0_i32 = arith.constant 0 : i32
    %c0_i32_0 = arith.constant 0 : i32
    return %arg0, %c0_i32 : i32, i32
  }
  func.func @transform_1(%arg0: i32, %arg1: i32) -> (i32, i32) {
    %c0_i32 = arith.constant 0 : i32
    %c0_i32_0 = arith.constant 0 : i32
    return %c0_i32, %arg1 : i32, i32
  }
  func.func @transform_2(%arg0: i32, %arg1: i32) -> (i32, i32) {
    %c0_i32 = arith.constant 0 : i32
    %c0_i32_0 = arith.constant 0 : i32
    return %c0_i32, %arg1 : i32, i32
  }
  func.func @transform_3(%arg0: i32, %arg1: i32) -> (i32, i32) {
    %c0_i32 = arith.constant 0 : i32
    return %arg0, %arg1 : i32, i32
  }
}

module attributes {stable_mosaic.version = 11 : i64} {
  func.func @_linear_kernel(%arg0: i32, %arg1: i32, %arg2: memref<32x32xf32, #tpu.memory_space<vmem>>, %arg3: memref<32x64xbf16, #tpu.memory_space<vmem>>, %arg4: memref<1x64xf32, #tpu.memory_space<vmem>>, %arg5: memref<32x64xf32, #tpu.memory_space<vmem>>) attributes {dimension_semantics = [#tpu.dimension_semantics<parallel>, #tpu.dimension_semantics<parallel>], iteration_bounds = array<i64: 1, 1>, scalar_prefetch = 0 : i64, scratch_operands = 0 : i64, tpu.core_type = #tpu.core_type<tc>, window_params = [{transform_indices = @transform_0, window_bounds = array<i64: 32, 32>}, {transform_indices = @transform_1, window_bounds = array<i64: 32, 64>}, {transform_indices = @transform_2, window_bounds = array<i64: 1, 64>}, {transform_indices = @transform_3, window_bounds = array<i64: 32, 64>}]} {
    %c0 = arith.constant 0 : index
    %c0_0 = arith.constant 0 : index
    %0 = vector.load %arg2[%c0, %c0_0] : memref<32x32xf32, #tpu.memory_space<vmem>>, vector<32x32xf32>
    %1 = arith.truncf %0 : vector<32x32xf32> to vector<32x32xbf16>
    %c0_1 = arith.constant 0 : index
    %c0_2 = arith.constant 0 : index
    %2 = vector.load %arg3[%c0_1, %c0_2] : memref<32x64xbf16, #tpu.memory_space<vmem>>, vector<32x64xbf16>
    %cst = arith.constant dense<0.000000e+00> : vector<32x64xf32>
    %3 = tpu.matmul %1, %2, %cst {dimension_numbers = #tpu.dot_dimension_numbers<[1], [0], [0], [1], [0, 0, 1, 1], [], []>} : vector<32x32xbf16>, vector<32x64xbf16>, vector<32x64xf32> -> vector<32x64xf32>
    %c0_3 = arith.constant 0 : index
    %c0_4 = arith.constant 0 : index
    %4 = vector.load %arg4[%c0_3, %c0_4] : memref<1x64xf32, #tpu.memory_space<vmem>>, vector<1x64xf32>
    %5 = vector.broadcast %4 : vector<1x64xf32> to vector<32x64xf32>
    %6 = arith.addf %3, %5 : vector<32x64xf32>
    %c0_5 = arith.constant 0 : index
    %c0_6 = arith.constant 0 : index
    %7 = vector.load %arg5[%c0_5, %c0_6] : memref<32x64xf32, #tpu.memory_space<vmem>>, vector<32x64xf32>
    tpu.vector_store %arg5[%c0_5, %c0_6], %6 {strides = array<i32>} : memref<32x64xf32, #tpu.memory_space<vmem>>, vector<32x64xf32>,
    return
  }
  func.func @transform_0(%arg0: i32, %arg1: i32) -> (i32, i32) {
    %c0_i32 = arith.constant 0 : i32
    %c0_i32_0 = arith.constant 0 : i32
    return %arg0, %c0_i32 : i32, i32
  }
  func.func @transform_1(%arg0: i32, %arg1: i32) -> (i32, i32) {
    %c0_i32 = arith.constant 0 : i32
    %c0_i32_0 = arith.constant 0 : i32
    return %c0_i32, %arg1 : i32, i32
  }
  func.func @transform_2(%arg0: i32, %arg1: i32) -> (i32, i32) {
    %c0_i32 = arith.constant 0 : i32
    %c0_i32_0 = arith.constant 0 : i32
    return %c0_i32, %arg1 : i32, i32
  }
  func.func @transform_3(%arg0: i32, %arg1: i32) -> (i32, i32) {
    %c0_i32 = arith.constant 0 : i32
    return %arg0, %arg1 : i32, i32
  }
}

module attributes {stable_mosaic.version = 11 : i64} {
  func.func @_linear_add_ln_kernel(%arg0: i32, %arg1: memref<32x32xf32, #tpu.memory_space<vmem>>, %arg2: memref<32x32xbf16, #tpu.memory_space<vmem>>, %arg3: memref<1x32xf32, #tpu.memory_space<vmem>>, %arg4: memref<32x32xf32, #tpu.memory_space<vmem>>, %arg5: memref<1x32xf32, #tpu.memory_space<vmem>>, %arg6: memref<1x32xf32, #tpu.memory_space<vmem>>, %arg7: memref<32x32xf32, #tpu.memory_space<vmem>>) attributes {dimension_semantics = [#tpu.dimension_semantics<parallel>], iteration_bounds = array<i64: 1>, scalar_prefetch = 0 : i64, scratch_operands = 0 : i64, tpu.core_type = #tpu.core_type<tc>, window_params = [{transform_indices = @transform_0, window_bounds = array<i64: 32, 32>}, {pipeline_mode = #tpu.pipeline_mode<synchronous>, transform_indices = @transform_1, window_bounds = array<i64: 32, 32>}, {pipeline_mode = #tpu.pipeline_mode<synchronous>, transform_indices = @transform_2, window_bounds = array<i64: 1, 32>}, {transform_indices = @transform_3, window_bounds = array<i64: 32, 32>}, {pipeline_mode = #tpu.pipeline_mode<synchronous>, transform_indices = @transform_4, window_bounds = array<i64: 1, 32>}, {pipeline_mode = #tpu.pipeline_mode<synchronous>, transform_indices = @transform_5, window_bounds = array<i64: 1, 32>}, {transform_indices = @transform_6, window_bounds = array<i64: 32, 32>}]} {
    %c0 = arith.constant 0 : index
    %c0_0 = arith.constant 0 : index
    %0 = vector.load %arg1[%c0, %c0_0] : memref<32x32xf32, #tpu.memory_space<vmem>>, vector<32x32xf32>
    %1 = arith.truncf %0 : vector<32x32xf32> to vector<32x32xbf16>
    %c0_1 = arith.constant 0 : index
    %c0_2 = arith.constant 0 : index
    %2 = vector.load %arg2[%c0_1, %c0_2] : memref<32x32xbf16, #tpu.memory_space<vmem>>, vector<32x32xbf16>
    %cst = arith.constant dense<0.000000e+00> : vector<32x32xf32>
    %3 = tpu.matmul %1, %2, %cst {dimension_numbers = #tpu.dot_dimension_numbers<[1], [0], [0], [1], [0, 0, 1, 1], [], []>} : vector<32x32xbf16>, vector<32x32xbf16>, vector<32x32xf32> -> vector<32x32xf32>
    %c0_3 = arith.constant 0 : index
    %c0_4 = arith.constant 0 : index
    %4 = vector.load %arg3[%c0_3, %c0_4] : memref<1x32xf32, #tpu.memory_space<vmem>>, vector<1x32xf32>
    %5 = vector.broadcast %4 : vector<1x32xf32> to vector<32x32xf32>
    %6 = arith.addf %3, %5 : vector<32x32xf32>
    %c0_5 = arith.constant 0 : index
    %c0_6 = arith.constant 0 : index
    %7 = vector.load %arg4[%c0_5, %c0_6] : memref<32x32xf32, #tpu.memory_space<vmem>>, vector<32x32xf32>
    %8 = arith.addf %6, %7 : vector<32x32xf32>
    %cst_7 = arith.constant dense<0.000000e+00> : vector<32xf32>
    %9 = vector.multi_reduction <add>, %8, %cst_7 [1] : vector<32x32xf32> to vector<32xf32>
    %10 = vector.shape_cast %9 : vector<32xf32> to vector<32x1xf32>
    %cst_8 = arith.constant 3.200000e+01 : f32
    %11 = vector.broadcast %cst_8 : f32 to vector<32x1xf32>
    %12 = arith.divf %10, %11 : vector<32x1xf32>
    %13 = vector.broadcast %12 : vector<32x1xf32> to vector<32x32xf32>
    %14 = arith.subf %8, %13 : vector<32x32xf32>
    %15 = vector.broadcast %12 : vector<32x1xf32> to vector<32x32xf32>
    %16 = arith.subf %8, %15 : vector<32x32xf32>
    %17 = arith.mulf %14, %16 : vector<32x32xf32>
    %cst_9 = arith.constant dense<0.000000e+00> : vector<32xf32>
    %18 = vector.multi_reduction <add>, %17, %cst_9 [1] : vector<32x32xf32> to vector<32xf32>
    %19 = vector.shape_cast %18 : vector<32xf32> to vector<32x1xf32>
    %cst_10 = arith.constant 3.200000e+01 : f32
    %20 = vector.broadcast %cst_10 : f32 to vector<32x1xf32>
    %21 = arith.divf %19, %20 : vector<32x1xf32>
    %22 = vector.broadcast %12 : vector<32x1xf32> to vector<32x32xf32>
    %23 = arith.subf %8, %22 : vector<32x32xf32>
    %cst_11 = arith.constant 9.99999974E-6 : f32
    %24 = vector.broadcast %cst_11 : f32 to vector<32x1xf32>
    %25 = arith.addf %21, %24 : vector<32x1xf32>
    %26 = math.rsqrt %25 : vector<32x1xf32>
    %27 = vector.broadcast %26 : vector<32x1xf32> to vector<32x32xf32>
    %28 = arith.mulf %23, %27 : vector<32x32xf32>
    %c0_12 = arith.constant 0 : index
    %c0_13 = arith.constant 0 : index
    %29 = vector.load %arg5[%c0_12, %c0_13] : memref<1x32xf32, #tpu.memory_space<vmem>>, vector<1x32xf32>
    %30 = vector.broadcast %29 : vector<1x32xf32> to vector<32x32xf32>
    %31 = arith.mulf %28, %30 : vector<32x32xf32>
    %c0_14 = arith.constant 0 : index
    %c0_15 = arith.constant 0 : index
    %32 = vector.load %arg6[%c0_14, %c0_15] : memref<1x32xf32, #tpu.memory_space<vmem>>, vector<1x32xf32>
    %33 = vector.broadcast %32 : vector<1x32xf32> to vector<32x32xf32>
    %34 = arith.addf %31, %33 : vector<32x32xf32>
    %c0_16 = arith.constant 0 : index
    %c0_17 = arith.constant 0 : index
    %35 = vector.load %arg7[%c0_16, %c0_17] : memref<32x32xf32, #tpu.memory_space<vmem>>, vector<32x32xf32>
    tpu.vector_store %arg7[%c0_16, %c0_17], %34 {strides = array<i32>} : memref<32x32xf32, #tpu.memory_space<vmem>>, vector<32x32xf32>,
    return
  }
  func.func @transform_0(%arg0: i32) -> (i32, i32) {
    %c0_i32 = arith.constant 0 : i32
    %c0_i32_0 = arith.constant 0 : i32
    return %arg0, %c0_i32 : i32, i32
  }
  func.func @transform_1(%arg0: i32) -> (i32, i32) {
    %c0_i32 = arith.constant 0 : i32
    %c0_i32_0 = arith.constant 0 : i32
    %c0_i32_1 = arith.constant 0 : i32
    return %c0_i32, %c0_i32_0 : i32, i32
  }
  func.func @transform_2(%arg0: i32) -> (i32, i32) {
    %c0_i32 = arith.constant 0 : i32
    %c0_i32_0 = arith.constant 0 : i32
    %c0_i32_1 = arith.constant 0 : i32
    return %c0_i32, %c0_i32_0 : i32, i32
  }
  func.func @transform_3(%arg0: i32) -> (i32, i32) {
    %c0_i32 = arith.constant 0 : i32
    %c0_i32_0 = arith.constant 0 : i32
    return %arg0, %c0_i32 : i32, i32
  }
  func.func @transform_4(%arg0: i32) -> (i32, i32) {
    %c0_i32 = arith.constant 0 : i32
    %c0_i32_0 = arith.constant 0 : i32
    %c0_i32_1 = arith.constant 0 : i32
    return %c0_i32, %c0_i32_0 : i32, i32
  }
  func.func @transform_5(%arg0: i32) -> (i32, i32) {
    %c0_i32 = arith.constant 0 : i32
    %c0_i32_0 = arith.constant 0 : i32
    %c0_i32_1 = arith.constant 0 : i32
    return %c0_i32, %c0_i32_0 : i32, i32
  }
  func.func @transform_6(%arg0: i32) -> (i32, i32) {
    %c0_i32 = arith.constant 0 : i32
    %c0_i32_0 = arith.constant 0 : i32
    return %arg0, %c0_i32 : i32, i32
  }
}

module attributes {stable_mosaic.version = 11 : i64} {
  func.func @_flash_attn_kernel(%arg0: i32, %arg1: i32, %arg2: i32, %arg3: memref<1x16x8xf32, #tpu.memory_space<vmem>>, %arg4: memref<1x16x8xf32, #tpu.memory_space<vmem>>, %arg5: memref<1x16x8xf32, #tpu.memory_space<vmem>>, %arg6: memref<1x16x8xf32, #tpu.memory_space<vmem>>, %arg7: memref<16x1xf32, #tpu.memory_space<vmem>>, %arg8: memref<16x1xf32, #tpu.memory_space<vmem>>, %arg9: memref<16x8xf32, #tpu.memory_space<vmem>>) attributes {dimension_semantics = [#tpu.dimension_semantics<parallel>, #tpu.dimension_semantics<parallel>, #tpu.dimension_semantics<arbitrary>], iteration_bounds = array<i64: 8, 1, 1>, scalar_prefetch = 0 : i64, scratch_operands = 3 : i64, tpu.core_type = #tpu.core_type<tc>, window_params = [{transform_indices = @transform_0, window_bounds = array<i64: 1, 16, 8>}, {transform_indices = @transform_1, window_bounds = array<i64: 1, 16, 8>}, {transform_indices = @transform_2, window_bounds = array<i64: 1, 16, 8>}, {transform_indices = @transform_3, window_bounds = array<i64: 1, 16, 8>}]} {
    %c0_i32 = arith.constant 0 : i32
    %0 = arith.cmpi eq, %arg2, %c0_i32 : i32
    %1 = arith.extui %0 : i1 to i32
    %c0_i32_0 = arith.constant 0 : i32
    %2 = arith.cmpi ne, %1, %c0_i32_0 : i32
    scf.if %2 {
      %cst_29 = arith.constant -1.000000e+30 : f32
      %49 = vector.broadcast %cst_29 : f32 to vector<16x1xf32>
      %c0_30 = arith.constant 0 : index
      %c0_31 = arith.constant 0 : index
      %50 = vector.load %arg7[%c0_30, %c0_31] : memref<16x1xf32, #tpu.memory_space<vmem>>, vector<16x1xf32>
      tpu.vector_store %arg7[%c0_30, %c0_31], %49 {strides = array<i32>} : memref<16x1xf32, #tpu.memory_space<vmem>>, vector<16x1xf32>,
      %cst_32 = arith.constant 0.000000e+00 : f32
      %51 = vector.broadcast %cst_32 : f32 to vector<16x1xf32>
      %c0_33 = arith.constant 0 : index
      %c0_34 = arith.constant 0 : index
      %52 = vector.load %arg8[%c0_33, %c0_34] : memref<16x1xf32, #tpu.memory_space<vmem>>, vector<16x1xf32>
      tpu.vector_store %arg8[%c0_33, %c0_34], %51 {strides = array<i32>} : memref<16x1xf32, #tpu.memory_space<vmem>>, vector<16x1xf32>,
      %cst_35 = arith.constant 0.000000e+00 : f32
      %53 = vector.broadcast %cst_35 : f32 to vector<16x8xf32>
      %c0_36 = arith.constant 0 : index
      %c0_37 = arith.constant 0 : index
      %54 = vector.load %arg9[%c0_36, %c0_37] : memref<16x8xf32, #tpu.memory_space<vmem>>, vector<16x8xf32>
      tpu.vector_store %arg9[%c0_36, %c0_37], %53 {strides = array<i32>} : memref<16x8xf32, #tpu.memory_space<vmem>>, vector<16x8xf32>,
    } else {
    }
    %c0 = arith.constant 0 : index
    %c0_1 = arith.constant 0 : index
    %c0_2 = arith.constant 0 : index
    %3 = vector.load %arg3[%c0, %c0_1, %c0_2] : memref<1x16x8xf32, #tpu.memory_space<vmem>>, vector<1x16x8xf32>
    %4 = vector.shape_cast %3 : vector<1x16x8xf32> to vector<16x8xf32>
    %5 = arith.truncf %4 : vector<16x8xf32> to vector<16x8xbf16>
    %c0_3 = arith.constant 0 : index
    %c0_4 = arith.constant 0 : index
    %c0_5 = arith.constant 0 : index
    %6 = vector.load %arg4[%c0_3, %c0_4, %c0_5] : memref<1x16x8xf32, #tpu.memory_space<vmem>>, vector<1x16x8xf32>
    %7 = vector.shape_cast %6 : vector<1x16x8xf32> to vector<16x8xf32>
    %8 = arith.truncf %7 : vector<16x8xf32> to vector<16x8xbf16>
    %cst = arith.constant dense<0.000000e+00> : vector<16x16xf32>
    %9 = tpu.matmul %5, %8, %cst {dimension_numbers = #tpu.dot_dimension_numbers<[1], [1], [0], [0], [0, 0, 1, 0], [], []>} : vector<16x8xbf16>, vector<16x8xbf16>, vector<16x16xf32> -> vector<16x16xf32>
    %cst_6 = arith.constant 0.353553385 : f32
    %10 = vector.broadcast %cst_6 : f32 to vector<16x16xf32>
    %11 = arith.mulf %9, %10 : vector<16x16xf32>
    %c16_i32 = arith.constant 16 : i32
    %12 = arith.muli %arg2, %c16_i32 : i32
    %13 = tpu.iota {dimensions = array<i32: 1>} : vector<16x16xi32>
    %14 = vector.broadcast %12 : i32 to vector<16x16xi32>
    %15 = arith.addi %14, %13 : vector<16x16xi32>
    %c16_i32_7 = arith.constant 16 : i32
    %16 = vector.broadcast %c16_i32_7 : i32 to vector<16x16xi32>
    %17 = arith.cmpi slt, %15, %16 : vector<16x16xi32>
    %cst_8 = arith.constant -1.000000e+30 : f32
    %18 = vector.broadcast %cst_8 : f32 to vector<16x16xf32>
    %19 = arith.select %17, %11, %18 : vector<16x16xi1>, vector<16x16xf32>
    %c0_9 = arith.constant 0 : index
    %c0_10 = arith.constant 0 : index
    %20 = vector.load %arg7[%c0_9, %c0_10] : memref<16x1xf32, #tpu.memory_space<vmem>>, vector<16x1xf32>
    %cst_11 = arith.constant dense<0xFF800000> : vector<16xf32>
    %21 = vector.multi_reduction <maximumf>, %19, %cst_11 [1] : vector<16x16xf32> to vector<16xf32>
    %22 = vector.shape_cast %21 : vector<16xf32> to vector<16x1xf32>
    %23 = arith.maximumf %20, %22 : vector<16x1xf32>
    %24 = arith.subf %20, %23 : vector<16x1xf32>
    %25 = math.exp %24 : vector<16x1xf32>
    %26 = vector.broadcast %23 : vector<16x1xf32> to vector<16x16xf32>
    %27 = arith.subf %19, %26 : vector<16x16xf32>
    %28 = math.exp %27 : vector<16x16xf32>
    %c0_12 = arith.constant 0 : index
    %c0_13 = arith.constant 0 : index
    %29 = vector.load %arg8[%c0_12, %c0_13] : memref<16x1xf32, #tpu.memory_space<vmem>>, vector<16x1xf32>
    %30 = arith.mulf %25, %29 : vector<16x1xf32>
    %cst_14 = arith.constant dense<0.000000e+00> : vector<16xf32>
    %31 = vector.multi_reduction <add>, %28, %cst_14 [1] : vector<16x16xf32> to vector<16xf32>
    %32 = vector.shape_cast %31 : vector<16xf32> to vector<16x1xf32>
    %33 = arith.addf %30, %32 : vector<16x1xf32>
    %c0_15 = arith.constant 0 : index
    %c0_16 = arith.constant 0 : index
    %34 = vector.load %arg8[%c0_15, %c0_16] : memref<16x1xf32, #tpu.memory_space<vmem>>, vector<16x1xf32>
    tpu.vector_store %arg8[%c0_15, %c0_16], %33 {strides = array<i32>} : memref<16x1xf32, #tpu.memory_space<vmem>>, vector<16x1xf32>,
    %c0_17 = arith.constant 0 : index
    %c0_18 = arith.constant 0 : index
    %35 = vector.load %arg9[%c0_17, %c0_18] : memref<16x8xf32, #tpu.memory_space<vmem>>, vector<16x8xf32>
    %36 = vector.broadcast %25 : vector<16x1xf32> to vector<16x8xf32>
    %37 = arith.mulf %36, %35 : vector<16x8xf32>
    %38 = arith.truncf %28 : vector<16x16xf32> to vector<16x16xbf16>
    %c0_19 = arith.constant 0 : index
    %c0_20 = arith.constant 0 : index
    %c0_21 = arith.constant 0 : index
    %39 = vector.load %arg5[%c0_19, %c0_20, %c0_21] : memref<1x16x8xf32, #tpu.memory_space<vmem>>, vector<1x16x8xf32>
    %40 = vector.shape_cast %39 : vector<1x16x8xf32> to vector<16x8xf32>
    %41 = arith.truncf %40 : vector<16x8xf32> to vector<16x8xbf16>
    %cst_22 = arith.constant dense<0.000000e+00> : vector<16x8xf32>
    %42 = tpu.matmul %38, %41, %cst_22 {dimension_numbers = #tpu.dot_dimension_numbers<[1], [0], [0], [1], [0, 0, 1, 1], [], []>} : vector<16x16xbf16>, vector<16x8xbf16>, vector<16x8xf32> -> vector<16x8xf32>
    %43 = arith.addf %37, %42 : vector<16x8xf32>
    %c0_23 = arith.constant 0 : index
    %c0_24 = arith.constant 0 : index
    %44 = vector.load %arg9[%c0_23, %c0_24] : memref<16x8xf32, #tpu.memory_space<vmem>>, vector<16x8xf32>
    tpu.vector_store %arg9[%c0_23, %c0_24], %43 {strides = array<i32>} : memref<16x8xf32, #tpu.memory_space<vmem>>, vector<16x8xf32>,
    %c0_25 = arith.constant 0 : index
    %c0_26 = arith.constant 0 : index
    %45 = vector.load %arg7[%c0_25, %c0_26] : memref<16x1xf32, #tpu.memory_space<vmem>>, vector<16x1xf32>
    tpu.vector_store %arg7[%c0_25, %c0_26], %23 {strides = array<i32>} : memref<16x1xf32, #tpu.memory_space<vmem>>, vector<16x1xf32>,
    %c0_i32_27 = arith.constant 0 : i32
    %46 = arith.cmpi eq, %arg2, %c0_i32_27 : i32
    %47 = arith.extui %46 : i1 to i32
    %c0_i32_28 = arith.constant 0 : i32
    %48 = arith.cmpi ne, %47, %c0_i32_28 : i32
    scf.if %48 {
      %c0_29 = arith.constant 0 : index
      %c0_30 = arith.constant 0 : index
      %49 = vector.load %arg9[%c0_29, %c0_30] : memref<16x8xf32, #tpu.memory_space<vmem>>, vector<16x8xf32>
      %c0_31 = arith.constant 0 : index
      %c0_32 = arith.constant 0 : index
      %50 = vector.load %arg8[%c0_31, %c0_32] : memref<16x1xf32, #tpu.memory_space<vmem>>, vector<16x1xf32>
      %51 = tpu.reciprocal %50 {approx = true} : vector<16x1xf32> -> vector<16x1xf32>
      %52 = vector.broadcast %51 : vector<16x1xf32> to vector<16x8xf32>
      %53 = arith.mulf %49, %52 : vector<16x8xf32>
      %c0_33 = arith.constant 0 : index
      %c0_34 = arith.constant 0 : index
      %c0_35 = arith.constant 0 : index
      %54 = vector.load %arg6[%c0_33, %c0_34, %c0_35] : memref<1x16x8xf32, #tpu.memory_space<vmem>>, vector<1x16x8xf32>
      %55 = vector.shape_cast %54 : vector<1x16x8xf32> to vector<16x8xf32>
      %56 = vector.shape_cast %53 : vector<16x8xf32> to vector<1x16x8xf32>
      tpu.vector_store %arg6[%c0_33, %c0_34, %c0_35], %56 {strides = array<i32>} : memref<1x16x8xf32, #tpu.memory_space<vmem>>, vector<1x16x8xf32>,
    } else {
    }
    return
  }
  func.func @transform_0(%arg0: i32, %arg1: i32, %arg2: i32) -> (i32, i32, i32) {
    %c0_i32 = arith.constant 0 : i32
    %c0_i32_0 = arith.constant 0 : i32
    return %arg0, %arg1, %c0_i32 : i32, i32, i32
  }
  func.func @transform_1(%arg0: i32, %arg1: i32, %arg2: i32) -> (i32, i32, i32) {
    %c0_i32 = arith.constant 0 : i32
    %c0_i32_0 = arith.constant 0 : i32
    return %arg0, %arg2, %c0_i32 : i32, i32, i32
  }
  func.func @transform_2(%arg0: i32, %arg1: i32, %arg2: i32) -> (i32, i32, i32) {
    %c0_i32 = arith.constant 0 : i32
    %c0_i32_0 = arith.constant 0 : i32
    return %arg0, %arg2, %c0_i32 : i32, i32, i32
  }
  func.func @transform_3(%arg0: i32, %arg1: i32, %arg2: i32) -> (i32, i32, i32) {
    %c0_i32 = arith.constant 0 : i32
    %c0_i32_0 = arith.constant 0 : i32
    return %arg0, %arg1, %c0_i32 : i32, i32, i32
  }
}

module attributes {stable_mosaic.version = 11 : i64} {
  func.func @_ffn_add_ln_kernel(%arg0: i32, %arg1: memref<32x32xf32, #tpu.memory_space<vmem>>, %arg2: memref<32x64xbf16, #tpu.memory_space<vmem>>, %arg3: memref<1x64xf32, #tpu.memory_space<vmem>>, %arg4: memref<64x32xbf16, #tpu.memory_space<vmem>>, %arg5: memref<1x32xf32, #tpu.memory_space<vmem>>, %arg6: memref<1x32xf32, #tpu.memory_space<vmem>>, %arg7: memref<1x32xf32, #tpu.memory_space<vmem>>, %arg8: memref<32x32xf32, #tpu.memory_space<vmem>>) attributes {dimension_semantics = [#tpu.dimension_semantics<parallel>], iteration_bounds = array<i64: 1>, scalar_prefetch = 0 : i64, scratch_operands = 0 : i64, tpu.core_type = #tpu.core_type<tc>, window_params = [{transform_indices = @transform_0, window_bounds = array<i64: 32, 32>}, {pipeline_mode = #tpu.pipeline_mode<synchronous>, transform_indices = @transform_1, window_bounds = array<i64: 32, 64>}, {pipeline_mode = #tpu.pipeline_mode<synchronous>, transform_indices = @transform_2, window_bounds = array<i64: 1, 64>}, {pipeline_mode = #tpu.pipeline_mode<synchronous>, transform_indices = @transform_3, window_bounds = array<i64: 64, 32>}, {pipeline_mode = #tpu.pipeline_mode<synchronous>, transform_indices = @transform_4, window_bounds = array<i64: 1, 32>}, {pipeline_mode = #tpu.pipeline_mode<synchronous>, transform_indices = @transform_5, window_bounds = array<i64: 1, 32>}, {pipeline_mode = #tpu.pipeline_mode<synchronous>, transform_indices = @transform_6, window_bounds = array<i64: 1, 32>}, {transform_indices = @transform_7, window_bounds = array<i64: 32, 32>}]} {
    %c0 = arith.constant 0 : index
    %c0_0 = arith.constant 0 : index
    %0 = vector.load %arg1[%c0, %c0_0] : memref<32x32xf32, #tpu.memory_space<vmem>>, vector<32x32xf32>
    %1 = arith.truncf %0 : vector<32x32xf32> to vector<32x32xbf16>
    %c0_1 = arith.constant 0 : index
    %c0_2 = arith.constant 0 : index
    %2 = vector.load %arg2[%c0_1, %c0_2] : memref<32x64xbf16, #tpu.memory_space<vmem>>, vector<32x64xbf16>
    %cst = arith.constant dense<0.000000e+00> : vector<32x64xf32>
    %3 = tpu.matmul %1, %2, %cst {dimension_numbers = #tpu.dot_dimension_numbers<[1], [0], [0], [1], [0, 0, 1, 1], [], []>} : vector<32x32xbf16>, vector<32x64xbf16>, vector<32x64xf32> -> vector<32x64xf32>
    %c0_3 = arith.constant 0 : index
    %c0_4 = arith.constant 0 : index
    %4 = vector.load %arg3[%c0_3, %c0_4] : memref<1x64xf32, #tpu.memory_space<vmem>>, vector<1x64xf32>
    %5 = vector.broadcast %4 : vector<1x64xf32> to vector<32x64xf32>
    %6 = arith.addf %3, %5 : vector<32x64xf32>
    %cst_5 = arith.constant 0.000000e+00 : f32
    %7 = vector.broadcast %cst_5 : f32 to vector<32x64xf32>
    %8 = arith.maximumf %6, %7 : vector<32x64xf32>
    %9 = arith.truncf %8 : vector<32x64xf32> to vector<32x64xbf16>
    %c0_6 = arith.constant 0 : index
    %c0_7 = arith.constant 0 : index
    %10 = vector.load %arg4[%c0_6, %c0_7] : memref<64x32xbf16, #tpu.memory_space<vmem>>, vector<64x32xbf16>
    %cst_8 = arith.constant dense<0.000000e+00> : vector<32x32xf32>
    %11 = tpu.matmul %9, %10, %cst_8 {dimension_numbers = #tpu.dot_dimension_numbers<[1], [0], [0], [1], [0, 0, 1, 1], [], []>} : vector<32x64xbf16>, vector<64x32xbf16>, vector<32x32xf32> -> vector<32x32xf32>
    %c0_9 = arith.constant 0 : index
    %c0_10 = arith.constant 0 : index
    %12 = vector.load %arg5[%c0_9, %c0_10] : memref<1x32xf32, #tpu.memory_space<vmem>>, vector<1x32xf32>
    %13 = vector.broadcast %12 : vector<1x32xf32> to vector<32x32xf32>
    %14 = arith.addf %11, %13 : vector<32x32xf32>
    %15 = arith.addf %14, %0 : vector<32x32xf32>
    %cst_11 = arith.constant dense<0.000000e+00> : vector<32xf32>
    %16 = vector.multi_reduction <add>, %15, %cst_11 [1] : vector<32x32xf32> to vector<32xf32>
    %17 = vector.shape_cast %16 : vector<32xf32> to vector<32x1xf32>
    %cst_12 = arith.constant 3.200000e+01 : f32
    %18 = vector.broadcast %cst_12 : f32 to vector<32x1xf32>
    %19 = arith.divf %17, %18 : vector<32x1xf32>
    %20 = vector.broadcast %19 : vector<32x1xf32> to vector<32x32xf32>
    %21 = arith.subf %15, %20 : vector<32x32xf32>
    %22 = vector.broadcast %19 : vector<32x1xf32> to vector<32x32xf32>
    %23 = arith.subf %15, %22 : vector<32x32xf32>
    %24 = arith.mulf %21, %23 : vector<32x32xf32>
    %cst_13 = arith.constant dense<0.000000e+00> : vector<32xf32>
    %25 = vector.multi_reduction <add>, %24, %cst_13 [1] : vector<32x32xf32> to vector<32xf32>
    %26 = vector.shape_cast %25 : vector<32xf32> to vector<32x1xf32>
    %cst_14 = arith.constant 3.200000e+01 : f32
    %27 = vector.broadcast %cst_14 : f32 to vector<32x1xf32>
    %28 = arith.divf %26, %27 : vector<32x1xf32>
    %29 = vector.broadcast %19 : vector<32x1xf32> to vector<32x32xf32>
    %30 = arith.subf %15, %29 : vector<32x32xf32>
    %cst_15 = arith.constant 9.99999974E-6 : f32
    %31 = vector.broadcast %cst_15 : f32 to vector<32x1xf32>
    %32 = arith.addf %28, %31 : vector<32x1xf32>
    %33 = math.rsqrt %32 : vector<32x1xf32>
    %34 = vector.broadcast %33 : vector<32x1xf32> to vector<32x32xf32>
    %35 = arith.mulf %30, %34 : vector<32x32xf32>
    %c0_16 = arith.constant 0 : index
    %c0_17 = arith.constant 0 : index
    %36 = vector.load %arg6[%c0_16, %c0_17] : memref<1x32xf32, #tpu.memory_space<vmem>>, vector<1x32xf32>
    %37 = vector.broadcast %36 : vector<1x32xf32> to vector<32x32xf32>
    %38 = arith.mulf %35, %37 : vector<32x32xf32>
    %c0_18 = arith.constant 0 : index
    %c0_19 = arith.constant 0 : index
    %39 = vector.load %arg7[%c0_18, %c0_19] : memref<1x32xf32, #tpu.memory_space<vmem>>, vector<1x32xf32>
    %40 = vector.broadcast %39 : vector<1x32xf32> to vector<32x32xf32>
    %41 = arith.addf %38, %40 : vector<32x32xf32>
    %c0_20 = arith.constant 0 : index
    %c0_21 = arith.constant 0 : index
    %42 = vector.load %arg8[%c0_20, %c0_21] : memref<32x32xf32, #tpu.memory_space<vmem>>, vector<32x32xf32>
    tpu.vector_store %arg8[%c0_20, %c0_21], %41 {strides = array<i32>} : memref<32x32xf32, #tpu.memory_space<vmem>>, vector<32x32xf32>,
    return
  }
  func.func @transform_0(%arg0: i32) -> (i32, i32) {
    %c0_i32 = arith.constant 0 : i32
    %c0_i32_0 = arith.constant 0 : i32
    return %arg0, %c0_i32 : i32, i32
  }
  func.func @transform_1(%arg0: i32) -> (i32, i32) {
    %c0_i32 = arith.constant 0 : i32
    %c0_i32_0 = arith.constant 0 : i32
    %c0_i32_1 = arith.constant 0 : i32
    return %c0_i32, %c0_i32_0 : i32, i32
  }
  func.func @transform_2(%arg0: i32) -> (i32, i32) {
    %c0_i32 = arith.constant 0 : i32
    %c0_i32_0 = arith.constant 0 : i32
    %c0_i32_1 = arith.constant 0 : i32
    return %c0_i32, %c0_i32_0 : i32, i32
  }
  func.func @transform_3(%arg0: i32) -> (i32, i32) {
    %c0_i32 = arith.constant 0 : i32
    %c0_i32_0 = arith.constant 0 : i32
    %c0_i32_1 = arith.constant 0 : i32
    return %c0_i32, %c0_i32_0 : i32, i32
  }
  func.func @transform_4(%arg0: i32) -> (i32, i32) {
    %c0_i32 = arith.constant 0 : i32
    %c0_i32_0 = arith.constant 0 : i32
    %c0_i32_1 = arith.constant 0 : i32
    return %c0_i32, %c0_i32_0 : i32, i32
  }
  func.func @transform_5(%arg0: i32) -> (i32, i32) {
    %c0_i32 = arith.constant 0 : i32
    %c0_i32_0 = arith.constant 0 : i32
    %c0_i32_1 = arith.constant 0 : i32
    return %c0_i32, %c0_i32_0 : i32, i32
  }
  func.func @transform_6(%arg0: i32) -> (i32, i32) {
    %c0_i32 = arith.constant 0 : i32
    %c0_i32_0 = arith.constant 0 : i32
    %c0_i32_1 = arith.constant 0 : i32
    return %c0_i32, %c0_i32_0 : i32, i32
  }
  func.func @transform_7(%arg0: i32) -> (i32, i32) {
    %c0_i32 = arith.constant 0 : i32
    %c0_i32_0 = arith.constant 0 : i32
    return %arg0, %c0_i32 : i32, i32
  }
}

module attributes {stable_mosaic.version = 11 : i64} {
  func.func @_linear_kernel(%arg0: i32, %arg1: i32, %arg2: memref<32x32xf32, #tpu.memory_space<vmem>>, %arg3: memref<32x128xbf16, #tpu.memory_space<vmem>>, %arg4: memref<1x128xf32, #tpu.memory_space<vmem>>, %arg5: memref<32x128xf32, #tpu.memory_space<vmem>>) attributes {dimension_semantics = [#tpu.dimension_semantics<parallel>, #tpu.dimension_semantics<parallel>], iteration_bounds = array<i64: 1, 1>, scalar_prefetch = 0 : i64, scratch_operands = 0 : i64, tpu.core_type = #tpu.core_type<tc>, window_params = [{transform_indices = @transform_0, window_bounds = array<i64: 32, 32>}, {transform_indices = @transform_1, window_bounds = array<i64: 32, 128>}, {transform_indices = @transform_2, window_bounds = array<i64: 1, 128>}, {transform_indices = @transform_3, window_bounds = array<i64: 32, 128>}]} {
    %c0 = arith.constant 0 : index
    %c0_0 = arith.constant 0 : index
    %0 = vector.load %arg2[%c0, %c0_0] : memref<32x32xf32, #tpu.memory_space<vmem>>, vector<32x32xf32>
    %1 = arith.truncf %0 : vector<32x32xf32> to vector<32x32xbf16>
    %c0_1 = arith.constant 0 : index
    %c0_2 = arith.constant 0 : index
    %2 = vector.load %arg3[%c0_1, %c0_2] : memref<32x128xbf16, #tpu.memory_space<vmem>>, vector<32x128xbf16>
    %cst = arith.constant dense<0.000000e+00> : vector<32x128xf32>
    %3 = tpu.matmul %1, %2, %cst {dimension_numbers = #tpu.dot_dimension_numbers<[1], [0], [0], [1], [0, 0, 1, 1], [], []>} : vector<32x32xbf16>, vector<32x128xbf16>, vector<32x128xf32> -> vector<32x128xf32>
    %c0_3 = arith.constant 0 : index
    %c0_4 = arith.constant 0 : index
    %4 = vector.load %arg4[%c0_3, %c0_4] : memref<1x128xf32, #tpu.memory_space<vmem>>, vector<1x128xf32>
    %5 = vector.broadcast %4 : vector<1x128xf32> to vector<32x128xf32>
    %6 = arith.addf %3, %5 : vector<32x128xf32>
    %c0_5 = arith.constant 0 : index
    %c0_6 = arith.constant 0 : index
    %7 = vector.load %arg5[%c0_5, %c0_6] : memref<32x128xf32, #tpu.memory_space<vmem>>, vector<32x128xf32>
    tpu.vector_store %arg5[%c0_5, %c0_6], %6 {strides = array<i32>} : memref<32x128xf32, #tpu.memory_space<vmem>>, vector<32x128xf32>,
    return
  }
  func.func @transform_0(%arg0: i32, %arg1: i32) -> (i32, i32) {
    %c0_i32 = arith.constant 0 : i32
    %c0_i32_0 = arith.constant 0 : i32
    return %arg0, %c0_i32 : i32, i32
  }
  func.func @transform_1(%arg0: i32, %arg1: i32) -> (i32, i32) {
    %c0_i32 = arith.constant 0 : i32
    %c0_i32_0 = arith.constant 0 : i32
    return %c0_i32, %arg1 : i32, i32
  }
  func.func @transform_2(%arg0: i32, %arg1: i32) -> (i32, i32) {
    %c0_i32 = arith.constant 0 : i32
    %c0_i32_0 = arith.constant 0 : i32
    return %c0_i32, %arg1 : i32, i32
  }
  func.func @transform_3(%arg0: i32, %arg1: i32) -> (i32, i32) {
    %c0_i32 = arith.constant 0 : i32
    return %arg0, %arg1 : i32, i32
  }
}

</mosaic_0001>

<llo_original>
// kernel: _lambda_.20
$region0: #{_lambda_.20}
  #allocation0 [shape = 'u32[]', space=smem, size = 0x4, offset = 0x4, fixed_abs, tag = 'smem constant byte address 0x4 - core index']
  #allocation1 [shape = 'u32[72,128]{1,0:T(1,128)}', space=vmem, size = 0x9000, scoped, tag = 'internal scratch']
  %s0 = inlined_call_operand.vmem [shape: f32[2,64], index: 0, kind: input, shape index: {}]
  %s1 = inlined_call_operand.hbm [shape: bf16[64,512], index: 1, kind: input, shape index: {}]
  %s2 = inlined_call_operand.vmem [shape: f32[1,512], index: 2, kind: input, shape index: {}]
  %s3 = inlined_call_operand.vmem [shape: f32[2,512], index: 3, kind: output, shape index: {}]
  %s4 = sld [smem:[#allocation0]]
  $region26: #{_lambda_.20} parent=0
    _
  %s6 = ssub.s32 1, %s4
  %s7 = scalar_select 0, %s6, %s4
  $region1: #{_lambda_.20} parent=0
    #allocation2 [shape = 'u8[65536]{0}', space=vmem, size = 0x10000, scoped, tag = 'input window, operand 1, single buffered']
    #allocation3 [shape = 's32[1]{0}', space=sflag, size = 0x4, scoped, tag = 'scoped memory for _lambda_.20']
    %8 = vsyncpa [#allocation3], 0
    // Predicated region
    $region2: #{_lambda_.20} parent=1 // pred_check
      _
    $region3: #{_lambda_.20} parent=1 // pred_check_branch
      %10 = sbr.rel (0) target = $region5
    $region4: #{_lambda_.20} parent=1 // pred_region
      _
    $region5: #{_lambda_.20} parent=1 // pred_fallthru
      _
    // Predicated region
    $region6: #{_lambda_.20} parent=1 // pred_check
      _
    $region7: #{_lambda_.20} parent=1 // pred_check_branch
      %12 = sbr.rel (0) target = $region9
    $region8: #{_lambda_.20} parent=1 // pred_region
      %14 = vsyncadd [#allocation3], 0
      %s15 = sshll.u32 %s1, 4
      %s16 = int_to_ptr.hbm [resolvable:$true] %s15
      %s17 = sshll.u32 [#allocation2], 4
      %s18 = int_to_ptr.vmem [resolvable:$true] %s17
      %23 = dma.hbm_to_vmem [thread:$0]  %s16, 2048, %s18, [#allocation3], 256, 256, 16
    $region9: #{_lambda_.20} parent=1 // pred_fallthru
      _
    // Predicated region
    $region10: #{_lambda_.20} parent=1 // pred_check
      _
    $region11: #{_lambda_.20} parent=1 // pred_check_branch
      %25 = sbr.rel (0) target = $region13
    $region12: #{_lambda_.20} parent=1 // pred_region
      _
    $region13: #{_lambda_.20} parent=1 // pred_fallthru
      _
    // Predicated region
    $region14: #{_lambda_.20} parent=1 // pred_check
      _
    $region15: #{_lambda_.20} parent=1 // pred_check_branch
      %27 = sbr.rel (0) target = $region17
    $region16: #{_lambda_.20} parent=1 // pred_region
      %29 = dma.done [#allocation3], 2048
    $region17: #{_lambda_.20} parent=1 // pred_fallthru
      _
    %v31 = vld [vmem:[%s0] sm:$0x3]
    %v32 = vpack.c.bf16 %v31, %v31
    %v33 = vld [vmem:[#allocation2] sm:$0xff]
    %v34 = vld [vmem:[#allocation2 + $0x8] sm:$0xff]
    %v35 = vld [vmem:[#allocation2 + $0x10] sm:$0xff]
    %v36 = vld [vmem:[#allocation2 + $0x18] sm:$0xff]
    %v37 = vld [vmem:[#allocation2 + $0x20] sm:$0xff]
    %v38 = vld [vmem:[#allocation2 + $0x28] sm:$0xff]
    %v39 = vld [vmem:[#allocation2 + $0x30] sm:$0xff]
    %v40 = vld [vmem:[#allocation2 + $0x38] sm:$0xff]
    %v41 = vld [vmem:[#allocation2 + $0x40] sm:$0xff]
    %v42 = vld [vmem:[#allocation2 + $0x48] sm:$0xff]
    %v43 = vld [vmem:[#allocation2 + $0x50] sm:$0xff]
    %v44 = vld [vmem:[#allocation2 + $0x58] sm:$0xff]
    %v45 = vld [vmem:[#allocation2 + $0x60] sm:$0xff]
    %v46 = vld [vmem:[#allocation2 + $0x68] sm:$0xff]
    %v47 = vld [vmem:[#allocation2 + $0x70] sm:$0xff]
    %v48 = vld [vmem:[#allocation2 + $0x78] sm:$0xff]
    %v49 = vld [vmem:[%s2] sm:$0xf]
    %v51 = vperm.slane %v49, 0
    %v52 = vperm.slane %v49, 1
    %v53 = vperm.slane %v49, 2
    %v54 = vperm.slane %v49, 3
    %v75 = vunpack.c.l.b16 %v33
    %v76 = vunpack.c.h.b16 %v33
    %v77 = vunpack.c.l.b16 %v34
    %v78 = vunpack.c.h.b16 %v34
    %v79 = vunpack.c.l.b16 %v35
    %v80 = vunpack.c.h.b16 %v35
    %v81 = vunpack.c.l.b16 %v36
    %v82 = vunpack.c.h.b16 %v36
    %v83 = vunpack.c.l.b16 %v37
    %v84 = vunpack.c.h.b16 %v37
    %v85 = vunpack.c.l.b16 %v38
    %v86 = vunpack.c.h.b16 %v38
    %v87 = vunpack.c.l.b16 %v39
    %v88 = vunpack.c.h.b16 %v39
    %v89 = vunpack.c.l.b16 %v40
    %v90 = vunpack.c.h.b16 %v40
    %v91 = vunpack.c.l.b16 %v41
    %v92 = vunpack.c.h.b16 %v41
    %v93 = vunpack.c.l.b16 %v42
    %v94 = vunpack.c.h.b16 %v42
    %v95 = vunpack.c.l.b16 %v43
    %v96 = vunpack.c.h.b16 %v43
    %v97 = vunpack.c.l.b16 %v44
    %v98 = vunpack.c.h.b16 %v44
    %v99 = vunpack.c.l.b16 %v45
    %v100 = vunpack.c.h.b16 %v45
    %v101 = vunpack.c.l.b16 %v46
    %v102 = vunpack.c.h.b16 %v46
    %v103 = vunpack.c.l.b16 %v47
    %v104 = vunpack.c.h.b16 %v47
    %v105 = vunpack.c.l.b16 %v48
    %v106 = vunpack.c.h.b16 %v48
    %v107 = vpack.c.b16 %v79, %v75
    %v108 = vpack.c.b16 %v80, %v76
    %v109 = vpack.c.b16 %v81, %v77
    %v110 = vpack.c.b16 %v82, %v78
    %v111 = vpack.c.b16 %v87, %v83
    %v112 = vpack.c.b16 %v88, %v84
    %v113 = vpack.c.b16 %v89, %v85
    %v114 = vpack.c.b16 %v90, %v86
    %v115 = vpack.c.b16 %v95, %v91
    %v116 = vpack.c.b16 %v96, %v92
    %v117 = vpack.c.b16 %v97, %v93
    %v118 = vpack.c.b16 %v98, %v94
    %v119 = vpack.c.b16 %v103, %v99
    %v120 = vpack.c.b16 %v104, %v100
    %v121 = vpack.c.b16 %v105, %v101
    %v122 = vpack.c.b16 %v106, %v102
    %vm139 = vcmask 523264
    %v141 = vsel %vm139, %v32, 0
    %143 = vmatpush.bf16.msra.mxu0 0
    %144 = vmatpush.bf16.msra.mxu0 0
    %145 = vmatpush.bf16.msra.mxu0 0
    %146 = vmatpush.bf16.msra.mxu0 0
    %147 = vmatpush.bf16.msra.mxu0 %v119
    %148 = vmatpush.bf16.msra.mxu0 %v115
    %149 = vmatpush.bf16.msra.mxu0 %v111
    %150 = vmatpush.bf16.msra.mxu0 %v107
    %151 = vmatmul.bf16.gmra.mxu0 %v141
    %v152 = vpop.f32.mrf.mxu0
    %v153 = vadd.f32 %v51, %v152
    %v154 = vpop.f32.mrf.mxu0
    %155 = vdwg.mxu0
    %156 = vmatpush.bf16.msra.mxu0 0
    %157 = vmatpush.bf16.msra.mxu0 0
    %158 = vmatpush.bf16.msra.mxu0 0
    %159 = vmatpush.bf16.msra.mxu0 0
    %160 = vmatpush.bf16.msra.mxu0 %v120
    %161 = vmatpush.bf16.msra.mxu0 %v116
    %162 = vmatpush.bf16.msra.mxu0 %v112
    %163 = vmatpush.bf16.msra.mxu0 %v108
    %164 = vmatmul.bf16.gmra.mxu0 %v141
    %v165 = vpop.f32.mrf.mxu0
    %v166 = vadd.f32 %v52, %v165
    %v167 = vpop.f32.mrf.mxu0
    %168 = vdwg.mxu0
    %169 = vmatpush.bf16.msra.mxu0 0
    %170 = vmatpush.bf16.msra.mxu0 0
    %171 = vmatpush.bf16.msra.mxu0 0
    %172 = vmatpush.bf16.msra.mxu0 0
    %173 = vmatpush.bf16.msra.mxu0 %v121
    %174 = vmatpush.bf16.msra.mxu0 %v117
    %175 = vmatpush.bf16.msra.mxu0 %v113
    %176 = vmatpush.bf16.msra.mxu0 %v109
    %177 = vmatmul.bf16.gmra.mxu0 %v141
    %v178 = vpop.f32.mrf.mxu0
    %v179 = vadd.f32 %v53, %v178
    %v180 = vpop.f32.mrf.mxu0
    %181 = vdwg.mxu0
    %182 = vmatpush.bf16.msra.mxu0 0
    %183 = vmatpush.bf16.msra.mxu0 0
    %184 = vmatpush.bf16.msra.mxu0 0
    %185 = vmatpush.bf16.msra.mxu0 0
    %186 = vmatpush.bf16.msra.mxu0 %v122
    %187 = vmatpush.bf16.msra.mxu0 %v118
    %188 = vmatpush.bf16.msra.mxu0 %v114
    %189 = vmatpush.bf16.msra.mxu0 %v110
    %190 = vmatmul.bf16.gmra.mxu0 %v141
    %v191 = vpop.f32.mrf.mxu0
    %v192 = vadd.f32 %v54, %v191
    %v193 = vpop.f32.mrf.mxu0
    %194 = vdwg.mxu0
    %v199 = vrot.slane %v166, 6
    %v200 = vrot.slane %v179, 4
    %v201 = vrot.slane %v192, 2
    %vm202 = vcmask 1041408
    %v203 = vsel %vm202, %v153, %v199
    %vm204 = vcmask 1045508
    %v205 = vsel %vm204, %v200, %v201
    %vm206 = vcmask 1043456
    %v207 = vsel %vm206, %v203, %v205
    %209 = vst [vmem:[%s3] sm:$0xff] %v207
    // Predicated region
    $region18: #{_lambda_.20} parent=1 // pred_check
      _
    $region19: #{_lambda_.20} parent=1 // pred_check_branch
      %211 = sbr.rel (0) target = $region21
    $region20: #{_lambda_.20} parent=1 // pred_region
      _
    $region21: #{_lambda_.20} parent=1 // pred_fallthru
      _
    // Predicated region
    $region22: #{_lambda_.20} parent=1 // pred_check
      _
    $region23: #{_lambda_.20} parent=1 // pred_check_branch
      %213 = sbr.rel (0) target = $region25
    $region24: #{_lambda_.20} parent=1 // pred_region
      _
    $region25: #{_lambda_.20} parent=1 // pred_fallthru
      _
    %214 = vsyncpa [#allocation3], 1

// kernel: _lambda_.21
$region0: #{_lambda_.21}
  #allocation0 [shape = 'u32[]', space=smem, size = 0x4, offset = 0x4, fixed_abs, tag = 'smem constant byte address 0x4 - core index']
  #allocation1 [shape = 'u32[72,128]{1,0:T(1,128)}', space=vmem, size = 0x9000, scoped, tag = 'internal scratch']
  %s0 = inlined_call_operand.vmem [shape: f32[32,32], index: 0, kind: input, shape index: {}]
  %s1 = inlined_call_operand.vmem [shape: bf16[32,96], index: 1, kind: input, shape index: {}]
  %s2 = inlined_call_operand.vmem [shape: f32[1,96], index: 2, kind: input, shape index: {}]
  %s3 = inlined_call_operand.vmem [shape: f32[32,96], index: 3, kind: output, shape index: {}]
  %s4 = sld [smem:[#allocation0]]
  $region22: #{_lambda_.21} parent=0
    _
  %s6 = ssub.s32 1, %s4
  %s7 = scalar_select 0, %s6, %s4
  // Predicated region
  $region2: #{_lambda_.21} parent=0 // pred_check
    _
  $region3: #{_lambda_.21} parent=0 // pred_check_branch
    %9 = sbr.rel (0) target = $region5
  $region4: #{_lambda_.21} parent=0 // pred_region
    _
  $region5: #{_lambda_.21} parent=0 // pred_fallthru
    _
  // Predicated region
  $region6: #{_lambda_.21} parent=0 // pred_check
    _
  $region7: #{_lambda_.21} parent=0 // pred_check_branch
    %11 = sbr.rel (0) target = $region9
  $region8: #{_lambda_.21} parent=0 // pred_region
    _
  $region9: #{_lambda_.21} parent=0 // pred_fallthru
    _
  // Predicated region
  $region10: #{_lambda_.21} parent=0 // pred_check
    _
  $region11: #{_lambda_.21} parent=0 // pred_check_branch
    %13 = sbr.rel (0) target = $region13
  $region12: #{_lambda_.21} parent=0 // pred_region
    _
  $region13: #{_lambda_.21} parent=0 // pred_fallthru
    _
  %v15 = vld [vmem:[%s0] sm:$0xff]
  %v16 = vld [vmem:[%s0 + $0x8] sm:$0xff]
  %v17 = vld [vmem:[%s0 + $0x10] sm:$0xff]
  %v18 = vld [vmem:[%s0 + $0x18] sm:$0xff]
  %v19 = vpack.c.bf16 %v16, %v15
  %v20 = vpack.c.bf16 %v18, %v17
  %v21 = vld [vmem:[%s1] sm:$0xf]
  %v22 = vld [vmem:[%s1 + $0x4] sm:$0xf]
  %v23 = vld [vmem:[%s1 + $0x8] sm:$0xf]
  %v24 = vld [vmem:[%s1 + $0xc] sm:$0xf]
  %v25 = vld [vmem:[%s2] sm:$0x1]
  %v27 = vperm.slane %v25, 0
  %v33 = vunpack.c.l.b16 %v21
  %v34 = vunpack.c.l.b16 %v22
  %v35 = vunpack.c.l.b16 %v23
  %v36 = vunpack.c.l.b16 %v24
  %v37 = vpack.c.b16 %v34, %v33
  %v38 = vpack.c.b16 %v36, %v35
  %vm41 = vcmask 261120
  %v43 = vsel %vm41, %v19, 0
  %v46 = vsel %vm41, %v20, 0
  %48 = vmatpush.bf16.msra.mxu0 0
  %49 = vmatpush.bf16.msra.mxu0 0
  %50 = vmatpush.bf16.msra.mxu0 0
  %51 = vmatpush.bf16.msra.mxu0 0
  %52 = vmatpush.bf16.msra.mxu0 0
  %53 = vmatpush.bf16.msra.mxu0 0
  %54 = vmatpush.bf16.msra.mxu0 %v38
  %55 = vmatpush.bf16.msra.mxu0 %v37
  %56 = vmatmul.bf16.gmra.mxu0 %v43
  %v57 = vpop.f32.mrf.mxu0
  %v58 = vadd.f32 %v27, %v57
  %v59 = vpop.f32.mrf.mxu0
  %v60 = vadd.f32 %v27, %v59
  %61 = vmatmul.bf16.gmra.mxu0 %v46
  %v62 = vpop.f32.mrf.mxu0
  %v63 = vadd.f32 %v27, %v62
  %v64 = vpop.f32.mrf.mxu0
  %v65 = vadd.f32 %v27, %v64
  %66 = vdwg.mxu0
  %vm67 = vcmask 785408
  %68 = vst.msk [vmem:[%s3] sm:$0xff] %vm67, %v58
  %69 = vst.msk [vmem:[%s3 + $0x8] sm:$0xff] %vm67, %v60
  %70 = vst.msk [vmem:[%s3 + $0x10] sm:$0xff] %vm67, %v63
  %71 = vst.msk [vmem:[%s3 + $0x18] sm:$0xff] %vm67, %v65
  // Predicated region
  $region14: #{_lambda_.21} parent=0 // pred_check
    _
  $region15: #{_lambda_.21} parent=0 // pred_check_branch
    %73 = sbr.rel (0) target = $region17
  $region16: #{_lambda_.21} parent=0 // pred_region
    _
  $region17: #{_lambda_.21} parent=0 // pred_fallthru
    _
  // Predicated region
  $region18: #{_lambda_.21} parent=0 // pred_check
    _
  $region19: #{_lambda_.21} parent=0 // pred_check_branch
    %75 = sbr.rel (0) target = $region21
  $region20: #{_lambda_.21} parent=0 // pred_region
    _
  $region21: #{_lambda_.21} parent=0 // pred_fallthru
    _

// kernel: _lambda_.19
$region0: #{_lambda_.19}
  #allocation0 [shape = 'u32[]', space=smem, size = 0x4, offset = 0x4, fixed_abs, tag = 'smem constant byte address 0x4 - core index']
  #allocation1 [shape = 'u32[72,128]{1,0:T(1,128)}', space=vmem, size = 0x9000, scoped, tag = 'internal scratch']
  %s0 = inlined_call_operand.vmem [shape: f32[2,32], index: 0, kind: input, shape index: {}]
  %s1 = inlined_call_operand.vmem [shape: bf16[32,64], index: 1, kind: input, shape index: {}]
  %s2 = inlined_call_operand.vmem [shape: f32[1,64], index: 2, kind: input, shape index: {}]
  %s3 = inlined_call_operand.vmem [shape: f32[2,64], index: 3, kind: output, shape index: {}]
  %s4 = sld [smem:[#allocation0]]
  $region22: #{_lambda_.19} parent=0
    _
  %s6 = ssub.s32 1, %s4
  %s7 = scalar_select 0, %s6, %s4
  // Predicated region
  $region2: #{_lambda_.19} parent=0 // pred_check
    _
  $region3: #{_lambda_.19} parent=0 // pred_check_branch
    %9 = sbr.rel (0) target = $region5
  $region4: #{_lambda_.19} parent=0 // pred_region
    _
  $region5: #{_lambda_.19} parent=0 // pred_fallthru
    _
  // Predicated region
  $region6: #{_lambda_.19} parent=0 // pred_check
    _
  $region7: #{_lambda_.19} parent=0 // pred_check_branch
    %11 = sbr.rel (0) target = $region9
  $region8: #{_lambda_.19} parent=0 // pred_region
    _
  $region9: #{_lambda_.19} parent=0 // pred_fallthru
    _
  // Predicated region
  $region10: #{_lambda_.19} parent=0 // pred_check
    _
  $region11: #{_lambda_.19} parent=0 // pred_check_branch
    %13 = sbr.rel (0) target = $region13
  $region12: #{_lambda_.19} parent=0 // pred_region
    _
  $region13: #{_lambda_.19} parent=0 // pred_fallthru
    _
  %v15 = vld [vmem:[%s0] sm:$0x3]
  %v16 = vpack.c.bf16 %v15, %v15
  %v17 = vld [vmem:[%s1] sm:$0xf]
  %v18 = vld [vmem:[%s1 + $0x4] sm:$0xf]
  %v19 = vld [vmem:[%s1 + $0x8] sm:$0xf]
  %v20 = vld [vmem:[%s1 + $0xc] sm:$0xf]
  %v21 = vld [vmem:[%s2] sm:$0x1]
  %v23 = vperm.slane %v21, 0
  %v29 = vunpack.c.l.b16 %v17
  %v30 = vunpack.c.l.b16 %v18
  %v31 = vunpack.c.l.b16 %v19
  %v32 = vunpack.c.l.b16 %v20
  %v33 = vpack.c.b16 %v30, %v29
  %v34 = vpack.c.b16 %v32, %v31
  %vm37 = vcmask 261120
  %v39 = vsel %vm37, %v16, 0
  %41 = vmatpush.bf16.msra.mxu0 0
  %42 = vmatpush.bf16.msra.mxu0 0
  %43 = vmatpush.bf16.msra.mxu0 0
  %44 = vmatpush.bf16.msra.mxu0 0
  %45 = vmatpush.bf16.msra.mxu0 0
  %46 = vmatpush.bf16.msra.mxu0 0
  %47 = vmatpush.bf16.msra.mxu0 %v34
  %48 = vmatpush.bf16.msra.mxu0 %v33
  %49 = vmatmul.bf16.gmra.mxu0 %v39
  %v50 = vpop.f32.mrf.mxu0
  %v51 = vadd.f32 %v23, %v50
  %v52 = vpop.f32.mrf.mxu0
  %53 = vdwg.mxu0
  %v54 = vmax.f32 %v51, 0.0
  %vm55 = vcmask 517120
  %56 = vst.msk [vmem:[%s3] sm:$0x3] %vm55, %v54
  // Predicated region
  $region14: #{_lambda_.19} parent=0 // pred_check
    _
  $region15: #{_lambda_.19} parent=0 // pred_check_branch
    %58 = sbr.rel (0) target = $region17
  $region16: #{_lambda_.19} parent=0 // pred_region
    _
  $region17: #{_lambda_.19} parent=0 // pred_fallthru
    _
  // Predicated region
  $region18: #{_lambda_.19} parent=0 // pred_check
    _
  $region19: #{_lambda_.19} parent=0 // pred_check_branch
    %60 = sbr.rel (0) target = $region21
  $region20: #{_lambda_.19} parent=0 // pred_region
    _
  $region21: #{_lambda_.19} parent=0 // pred_fallthru
    _

// kernel: _lambda_.22
$region0: #{_lambda_.22}
  #allocation0 [shape = 'u32[]', space=smem, size = 0x4, offset = 0x4, fixed_abs, tag = 'smem constant byte address 0x4 - core index']
  #allocation1 [shape = 'u32[72,128]{1,0:T(1,128)}', space=vmem, size = 0x9000, scoped, tag = 'internal scratch']
  #allocation2 [shape = 'f32[16,1]{1,0:T(8,128)}', space=vmem, size = 0x2000, scoped, tag = 'scratch operand']
  #allocation3 [shape = 'f32[16,1]{1,0:T(8,128)}', space=vmem, size = 0x2000, scoped, tag = 'scratch operand']
  #allocation4 [shape = 'f32[16,8]{1,0:T(8,128)}', space=vmem, size = 0x2000, scoped, tag = 'scratch operand']
  %s0 = inlined_call_operand.vmem [shape: f32[8,16,8], index: 0, kind: input, shape index: {}]
  %s1 = inlined_call_operand.vmem [shape: f32[8,16,8], index: 1, kind: input, shape index: {}]
  %s2 = inlined_call_operand.vmem [shape: f32[8,16,8], index: 2, kind: input, shape index: {}]
  %s3 = inlined_call_operand.vmem [shape: f32[8,16,8], index: 3, kind: output, shape index: {}]
  %s4 = sld [smem:[#allocation0]]
  $region57: #{_lambda_.22} parent=0
    _
  %s6 = ssub.s32 1, %s4
  %s7 = scalar_select 0, %s6, %s4
  loop: start=0, step=1, limit=10
  $region2: #{_lambda_.22} parent=0 // loop_pre_header
    _
  $region3: #{_lambda_.22} parent=0 // loop_header
    %s9 = sphi 0, %s13
    %p10 = scmp.ge.s32.totalorder %s9, 10
    %s16 = sphi 0, %s35
    %s17 = sphi 0, %s31
    %s18 = sphi 0, %s27
    %s19 = sphi 0, %s16
    %s20 = sphi 0, %s17
    %s21 = sphi 0, %s18
    %s22 = sphi 0, %s19
    %s23 = sphi 0, %s20
    %s24 = sphi 0, %s21
    %s40 = sphi 0, %s42
    %s43 = sphi 0, %s40
    %s44 = sphi 0, %s43
    %s60 = sphi 0, %s44
    %s68 = sphi 0, %s70
    %s71 = sphi 0, %s68
    %s72 = sphi 0, %s71
    %s88 = sphi 0, %s72
    %s96 = sphi 0, %s98
    %s99 = sphi 0, %s96
    %s100 = sphi 0, %s99
    %s116 = sphi 0, %s100
    %s124 = sphi 0, %s126
    %s127 = sphi 0, %s124
    %s128 = sphi 0, %s127
    %s144 = sphi 0, %s128
  $region4: #{_lambda_.22} parent=0 // loop_header_branch
    %12 = sbr.rel (%p10) target = $region8
  $region5: #{_lambda_.22} parent=0 // loop_body
    %s14 = ssub.s32 %s9, 1
    %s15 = ssub.s32 %s9, 2
    %s25 = sadd.s32 1, %s18
    %p26 = scmp.ge.s32.totalorder %s25, 1
    %s27 = scalar_select %p26, 0, %s25
    %s28 = sadd.s32 1, %s17
    %s29 = scalar_select %p26, %s28, %s17
    %p30 = scmp.ge.s32.totalorder %s29, 1
    %s31 = scalar_select %p30, 0, %s29
    %s32 = sadd.s32 1, %s16
    %s33 = scalar_select %p30, %s32, %s16
    %p34 = scmp.ge.s32.totalorder %s33, 8
    %s35 = scalar_select %p34, 0, %s33
    %s36 = ssub.s32 %s16, %s35
    %s37 = ssub.s32 %s17, %s31
    %s38 = sor.u32 %s36, %s37
    %p39 = scmp.eq.s32.totalorder %s38, 0
    %s41 = sadd.s32 %s40, 1
    %s42 = scalar_select %p39, %s40, %s41
    %p45 = pneg %p39
    %p46 = scmp.eq.s32.totalorder %s9, 7
    %p47 = por %p45, %p46
    %p48 = scmp.ne.s32.totalorder %s40, %s43
    %p49 = scmp.eq.s32.totalorder %s9, 0
    %p50 = por %p48, %p49
    %p51 = scmp.ne.s32.totalorder %s40, %s43
    %p52 = scmp.eq.s32.totalorder %s14, 7
    %p53 = por %p51, %p52
    %p54 = scmp.ne.s32.totalorder %s43, %s44
    %p55 = scmp.eq.s32.totalorder %s14, 0
    %p56 = por %p54, %p55
    %p57 = scmp.ne.s32.totalorder %s43, %s44
    %p58 = scmp.eq.s32.totalorder %s15, 7
    %p59 = por %p57, %p58
    %p61 = scmp.ne.s32.totalorder %s44, %s60
    %p62 = scmp.eq.s32.totalorder %s15, 0
    %p63 = por %p61, %p62
    %s64 = ssub.s32 %s16, %s35
    %s65 = ssub.s32 %s18, %s27
    %s66 = sor.u32 %s64, %s65
    %p67 = scmp.eq.s32.totalorder %s66, 0
    %s69 = sadd.s32 %s68, 1
    %s70 = scalar_select %p67, %s68, %s69
    %p73 = pneg %p67
    %p74 = scmp.eq.s32.totalorder %s9, 7
    %p75 = por %p73, %p74
    %p76 = scmp.ne.s32.totalorder %s68, %s71
    %p77 = scmp.eq.s32.totalorder %s9, 0
    %p78 = por %p76, %p77
    %p79 = scmp.ne.s32.totalorder %s68, %s71
    %p80 = scmp.eq.s32.totalorder %s14, 7
    %p81 = por %p79, %p80
    %p82 = scmp.ne.s32.totalorder %s71, %s72
    %p83 = scmp.eq.s32.totalorder %s14, 0
    %p84 = por %p82, %p83
    %p85 = scmp.ne.s32.totalorder %s71, %s72
    %p86 = scmp.eq.s32.totalorder %s15, 7
    %p87 = por %p85, %p86
    %p89 = scmp.ne.s32.totalorder %s72, %s88
    %p90 = scmp.eq.s32.totalorder %s15, 0
    %p91 = por %p89, %p90
    %s92 = ssub.s32 %s16, %s35
    %s93 = ssub.s32 %s18, %s27
    %s94 = sor.u32 %s92, %s93
    %p95 = scmp.eq.s32.totalorder %s94, 0
    %s97 = sadd.s32 %s96, 1
    %s98 = scalar_select %p95, %s96, %s97
    %p101 = pneg %p95
    %p102 = scmp.eq.s32.totalorder %s9, 7
    %p103 = por %p101, %p102
    %p104 = scmp.ne.s32.totalorder %s96, %s99
    %p105 = scmp.eq.s32.totalorder %s9, 0
    %p106 = por %p104, %p105
    %p107 = scmp.ne.s32.totalorder %s96, %s99
    %p108 = scmp.eq.s32.totalorder %s14, 7
    %p109 = por %p107, %p108
    %p110 = scmp.ne.s32.totalorder %s99, %s100
    %p111 = scmp.eq.s32.totalorder %s14, 0
    %p112 = por %p110, %p111
    %p113 = scmp.ne.s32.totalorder %s99, %s100
    %p114 = scmp.eq.s32.totalorder %s15, 7
    %p115 = por %p113, %p114
    %p117 = scmp.ne.s32.totalorder %s100, %s116
    %p118 = scmp.eq.s32.totalorder %s15, 0
    %p119 = por %p117, %p118
    %s120 = ssub.s32 %s16, %s35
    %s121 = ssub.s32 %s17, %s31
    %s122 = sor.u32 %s120, %s121
    %p123 = scmp.eq.s32.totalorder %s122, 0
    %s125 = sadd.s32 %s124, 1
    %s126 = scalar_select %p123, %s124, %s125
    %p129 = pneg %p123
    %p130 = scmp.eq.s32.totalorder %s9, 7
    %p131 = por %p129, %p130
    %p132 = scmp.ne.s32.totalorder %s124, %s127
    %p133 = scmp.eq.s32.totalorder %s9, 0
    %p134 = por %p132, %p133
    %p135 = scmp.ne.s32.totalorder %s124, %s127
    %p136 = scmp.eq.s32.totalorder %s14, 7
    %p137 = por %p135, %p136
    %p138 = scmp.ne.s32.totalorder %s127, %s128
    %p139 = scmp.eq.s32.totalorder %s14, 0
    %p140 = por %p138, %p139
    %p141 = scmp.ne.s32.totalorder %s127, %s128
    %p142 = scmp.eq.s32.totalorder %s15, 7
    %p143 = por %p141, %p142
    %p145 = scmp.ne.s32.totalorder %s128, %s144
    %p146 = scmp.eq.s32.totalorder %s15, 0
    %p147 = por %p145, %p146
    %p148 = scmp.le.s32.totalorder 1, %s9
    %p149 = scmp.lt.s32.totalorder %s9, 9
    %p150 = pnand %p148, %p149
    %p151 = pneg %p150
    // Predicated region
    $region9: #{_lambda_.22} parent=5 // pred_check
      _
    $region10: #{_lambda_.22} parent=5 // pred_check_branch
      %153 = sbr.rel (%p150) target = $region12
    $region11: #{_lambda_.22} parent=5 // pred_region
      %s154 = ssub.s32 %s9, 1
    $region12: #{_lambda_.22} parent=5 // pred_fallthru
      _
    %p155 = scmp.lt.s32.totalorder %s9, 8
    // Predicated region
    $region13: #{_lambda_.22} parent=5 // pred_check
      %p156 = pneg %p155
    $region14: #{_lambda_.22} parent=5 // pred_check_branch
      %158 = sbr.rel (%p156) target = $region16
    $region15: #{_lambda_.22} parent=5 // pred_region
      // Predicated region
      $region17: #{_lambda_.22} parent=15 // pred_check
        %p159 = pneg %p50
      $region18: #{_lambda_.22} parent=15 // pred_check_branch
        %161 = sbr.rel (%p159) target = $region20
      $region19: #{_lambda_.22} parent=15 // pred_region
        %s162 = smul.u32 2, %s17
        %p163 = scmp.lt.s32.totalorder %s16, 7
        %s164 = scalar_select %p163, %s16, 7
        %p165 = scmp.lt.s32.totalorder %s162, 1
        %s166 = scalar_select %p165, %s162, 1
        %s167 = smul.addr %s164, 2
        %s168 = sadd.s32 %s166, %s167
        %s169 = smul.addr %s168, 8
        %s170 = scalar_lea.vmem %s0, %s169
        %s171 = smul.u32 2, %s17
      $region20: #{_lambda_.22} parent=15 // pred_fallthru
        _
      // Predicated region
      $region21: #{_lambda_.22} parent=15 // pred_check
        %p172 = pneg %p78
      $region22: #{_lambda_.22} parent=15 // pred_check_branch
        %174 = sbr.rel (%p172) target = $region24
      $region23: #{_lambda_.22} parent=15 // pred_region
        %s175 = smul.u32 2, %s18
        %p176 = scmp.lt.s32.totalorder %s16, 7
        %s177 = scalar_select %p176, %s16, 7
        %p178 = scmp.lt.s32.totalorder %s175, 1
        %s179 = scalar_select %p178, %s175, 1
        %s180 = smul.addr %s177, 2
        %s181 = sadd.s32 %s179, %s180
        %s182 = smul.addr %s181, 8
        %s183 = scalar_lea.vmem %s1, %s182
        %s184 = smul.u32 2, %s18
      $region24: #{_lambda_.22} parent=15 // pred_fallthru
        _
      // Predicated region
      $region25: #{_lambda_.22} parent=15 // pred_check
        %p185 = pneg %p106
      $region26: #{_lambda_.22} parent=15 // pred_check_branch
        %187 = sbr.rel (%p185) target = $region28
      $region27: #{_lambda_.22} parent=15 // pred_region
        %s188 = smul.u32 2, %s18
        %p189 = scmp.lt.s32.totalorder %s16, 7
        %s190 = scalar_select %p189, %s16, 7
        %p191 = scmp.lt.s32.totalorder %s188, 1
        %s192 = scalar_select %p191, %s188, 1
        %s193 = smul.addr %s190, 2
        %s194 = sadd.s32 %s192, %s193
        %s195 = smul.addr %s194, 8
        %s196 = scalar_lea.vmem %s2, %s195
        %s197 = smul.u32 2, %s18
      $region28: #{_lambda_.22} parent=15 // pred_fallthru
        _
    $region16: #{_lambda_.22} parent=5 // pred_fallthru
      _
    %p198 = scmp.le.s32.totalorder 1, %s9
    %p199 = scmp.lt.s32.totalorder %s9, 9
    %p200 = pnand %p198, %p199
    %p201 = pneg %p200
    // Predicated region
    $region29: #{_lambda_.22} parent=5 // pred_check
      _
    $region30: #{_lambda_.22} parent=5 // pred_check_branch
      %203 = sbr.rel (%p200) target = $region32
    $region31: #{_lambda_.22} parent=5 // pred_region
      %s204 = ssub.s32 %s9, 1
      %s205 = smul.u32 2, %s20
      %p206 = scmp.lt.s32.totalorder %s19, 7
      %s207 = scalar_select %p206, %s19, 7
      %p208 = scmp.lt.s32.totalorder %s205, 1
      %s209 = scalar_select %p208, %s205, 1
      %s210 = smul.addr %s207, 2
      %s211 = sadd.s32 %s209, %s210
      %s212 = smul.addr %s211, 8
      %s213 = scalar_lea.vmem %s0, %s212
      %p214 = pneg %p56
      %p215 = pneg %p53
      %s216 = smul.u32 2, %s21
      %p217 = scmp.lt.s32.totalorder %s19, 7
      %s218 = scalar_select %p217, %s19, 7
      %p219 = scmp.lt.s32.totalorder %s216, 1
      %s220 = scalar_select %p219, %s216, 1
      %s221 = smul.addr %s218, 2
      %s222 = sadd.s32 %s220, %s221
      %s223 = smul.addr %s222, 8
      %s224 = scalar_lea.vmem %s1, %s223
      %p225 = pneg %p84
      %p226 = pneg %p81
      %s227 = smul.u32 2, %s21
      %p228 = scmp.lt.s32.totalorder %s19, 7
      %s229 = scalar_select %p228, %s19, 7
      %p230 = scmp.lt.s32.totalorder %s227, 1
      %s231 = scalar_select %p230, %s227, 1
      %s232 = smul.addr %s229, 2
      %s233 = sadd.s32 %s231, %s232
      %s234 = smul.addr %s233, 8
      %s235 = scalar_lea.vmem %s2, %s234
      %p236 = pneg %p112
      %p237 = pneg %p109
      %p238 = pneg %p140
      %p239 = pneg %p137
      %s240 = smul.u32 2, %s20
      %p241 = scmp.lt.s32.totalorder %s19, 7
      %s242 = scalar_select %p241, %s19, 7
      %p243 = scmp.lt.s32.totalorder %s240, 1
      %s244 = scalar_select %p243, %s240, 1
      %s245 = smul.addr %s242, 2
      %s246 = sadd.s32 %s244, %s245
      %s247 = smul.addr %s246, 8
      %s248 = scalar_lea.vmem %s3, %s247
      %s249 = smul.u32 2, %s20
      %p250 = scmp.lt.s32.totalorder %s19, 7
      %s251 = scalar_select %p250, %s19, 7
      %p252 = scmp.lt.s32.totalorder %s249, 1
      %s253 = scalar_select %p252, %s249, 1
      %s254 = smul.addr %s251, 2
      %s255 = sadd.s32 %s253, %s254
      %s256 = smul.addr %s255, 8
      %s257 = scalar_lea.vmem %s0, %s256
      %s258 = smul.u32 2, %s20
      %s259 = smul.u32 2, %s21
      %p260 = scmp.lt.s32.totalorder %s19, 7
      %s261 = scalar_select %p260, %s19, 7
      %p262 = scmp.lt.s32.totalorder %s259, 1
      %s263 = scalar_select %p262, %s259, 1
      %s264 = smul.addr %s261, 2
      %s265 = sadd.s32 %s263, %s264
      %s266 = smul.addr %s265, 8
      %s267 = scalar_lea.vmem %s1, %s266
      %s268 = smul.u32 2, %s21
      %s269 = smul.u32 2, %s21
      %p270 = scmp.lt.s32.totalorder %s19, 7
      %s271 = scalar_select %p270, %s19, 7
      %p272 = scmp.lt.s32.totalorder %s269, 1
      %s273 = scalar_select %p272, %s269, 1
      %s274 = smul.addr %s271, 2
      %s275 = sadd.s32 %s273, %s274
      %s276 = smul.addr %s275, 8
      %s277 = scalar_lea.vmem %s2, %s276
      %s278 = smul.u32 2, %s21
      %s279 = smul.u32 2, %s20
      %p280 = scmp.lt.s32.totalorder %s19, 7
      %s281 = scalar_select %p280, %s19, 7
      %p282 = scmp.lt.s32.totalorder %s279, 1
      %s283 = scalar_select %p282, %s279, 1
      %s284 = smul.addr %s281, 2
      %s285 = sadd.s32 %s283, %s284
      %s286 = smul.addr %s285, 8
      %s287 = scalar_lea.vmem %s3, %s286
      %s288 = smul.u32 2, %s20
      %p290 = scmp.eq.s32.totalorder %s21, 0
      // Predicated region
      $region33: #{_lambda_.22} parent=31 // pred_check
        %p291 = pneg %p290
      $region34: #{_lambda_.22} parent=31 // pred_check_branch
        %293 = sbr.rel (%p291) target = $region36
      $region35: #{_lambda_.22} parent=31 // pred_region
        %vm294 = vcmask 7168
        %295 = vst.msk [vmem:[#allocation2] sm:$0xff] %vm294, -1e+30
        %296 = vst.msk [vmem:[#allocation2 + $0x8] sm:$0xff] %vm294, -1e+30
        %297 = vst.msk [vmem:[#allocation3] sm:$0xff] %vm294, 0.0
        %298 = vst.msk [vmem:[#allocation3 + $0x8] sm:$0xff] %vm294, 0.0
        %vm299 = vcmask 64512
        %300 = vst.msk [vmem:[#allocation4] sm:$0xff] %vm299, 0.0
        %301 = vst.msk [vmem:[#allocation4 + $0x8] sm:$0xff] %vm299, 0.0
      $region36: #{_lambda_.22} parent=31 // pred_fallthru
        _
      %s302 = smul.u32 %s21, 16
      %s303 = smul.u32 %s20, 16
      %s304 = sadd.s32 %s303, 15
      %p305 = scmp.le.s32.totalorder %s302, %s304
      // Predicated region
      $region37: #{_lambda_.22} parent=31 // pred_check
        %p306 = pneg %p305
      $region38: #{_lambda_.22} parent=31 // pred_check_branch
        %308 = sbr.rel (%p306) target = $region40
      $region39: #{_lambda_.22} parent=31 // pred_region
        %v309 = vld [vmem:[%s257] sm:$0xff]
        %v310 = vld [vmem:[%s257 + $0x8] sm:$0xff]
        %v311 = vpack.c.bf16 %v310, %v309
        %v312 = vld [vmem:[%s267] sm:$0xff]
        %v313 = vld [vmem:[%s267 + $0x8] sm:$0xff]
        %v314 = vpack.c.bf16 %v313, %v312
        %vm315 = vcmask 64512
        %v317 = vsel %vm315, %v311, 0
        %v320 = vsel %vm315, %v314, 0
        %322 = vmatpush.bf16.xpose.msra.mxu0 0
        %323 = vmatpush.bf16.xpose.msra.mxu0 0
        %324 = vmatpush.bf16.xpose.msra.mxu0 0
        %325 = vmatpush.bf16.xpose.msra.mxu0 0
        %326 = vmatpush.bf16.xpose.msra.mxu0 0
        %327 = vmatpush.bf16.xpose.msra.mxu0 0
        %328 = vmatpush.bf16.xpose.msra.mxu0 0
        %329 = vmatpush.bf16.xpose.msra.mxu0 %v320
        %330 = vmatmul.bf16.gmra.mxu0 %v317
        %v331 = vpop.f32.mrf.mxu0
        %v332 = vadd.f32 0.0, %v331
        %v333 = vpop.f32.mrf.mxu0
        %v334 = vadd.f32 0.0, %v333
        %335 = vdwg.mxu0
        %v336 = vmul.f32 %v332, 0.35355338
        %v337 = vmul.f32 %v334, 0.35355338
        %v338 = vlaneseq
        %v339 = vand.u32 %v338, 127
        %v340 = vstv %s302
        %v341 = vadd.s32 %v340, %v339
        %vm342 = vcmp.lt.s32.totalorder %v341, 16
        %v343 = vlaneseq
        %v344 = vshrl.u32 %v343, 7
        %v345 = vadd.s32 %v344, 8
        %v346 = vstv %s303
        %v347 = vadd.s32 %v346, %v344
        %v348 = vadd.s32 %v346, %v345
        %vm349 = vcmp.le.s32.totalorder %v341, %v347
        %vm350 = vcmp.le.s32.totalorder %v341, %v348
        %vm351 = vmand %vm342, %vm349
        %vm352 = vmand %vm342, %vm350
        %v353 = vsel %vm351, %v336, -1e+30
        %v354 = vsel %vm352, %v337, -1e+30
        %v355 = vld [vmem:[#allocation2] sm:$0xff]
        %v356 = vld [vmem:[#allocation2 + $0x8] sm:$0xff]
        %vm357 = vcmask 130048
        %v358 = vsel %vm357, %v353, -inf
        %359 = vmax.xlane.f32.xlu0 %v358
        %v360 = vpop.xlane.xlu0 %359
        %v361 = vsel %vm357, %v354, -inf
        %362 = vmax.xlane.f32.xlu0 %v361
        %v363 = vpop.xlane.xlu0 %362
        %v364 = vmax.f32 %v355, %v360
        %v365 = vmax.f32 %v356, %v363
        %v366 = vsub.f32 %v355, %v364
        %v367 = vsub.f32 %v356, %v365
        %v368 = vmul.f32 %v366, 1.442695
        %v369 = vpow.pop %v368
        %v370 = vmul.f32 %v367, 1.442695
        %v371 = vpow.pop %v370
        %373 = vset.pattern.permute.xlu0 0
        %374 = vperm.xlu0 %373, %v364
        %v375 = vpop.permute.xlu0 %374
        %378 = vset.pattern.permute.xlu0 0
        %379 = vperm.xlu0 %378, %v365
        %v380 = vpop.permute.xlu0 %379
        %v382 = vsub.f32 %v353, %v375
        %v383 = vsub.f32 %v354, %v380
        %v384 = vmul.f32 %v382, 1.442695
        %v385 = vpow.pop %v384
        %v386 = vmul.f32 %v383, 1.442695
        %v387 = vpow.pop %v386
        %v388 = vld [vmem:[#allocation3] sm:$0xff]
        %v389 = vld [vmem:[#allocation3 + $0x8] sm:$0xff]
        %v390 = vmul.f32 %v369, %v388
        %v391 = vmul.f32 %v371, %v389
        %v392 = vsel %vm357, %v385, 0.0
        %393 = vadd.xlane.f32.xlu0 %v392
        %v394 = vpop.xlane.xlu0 %393
        %v395 = vsel %vm357, %v387, 0.0
        %396 = vadd.xlane.f32.xlu0 %v395
        %v397 = vpop.xlane.xlu0 %396
        %v398 = vadd.f32 %v390, %v394
        %v399 = vadd.f32 %v391, %v397
        %vm400 = vcmask 7168
        %401 = vst.msk [vmem:[#allocation3] sm:$0xff] %vm400, %v398
        %402 = vst.msk [vmem:[#allocation3 + $0x8] sm:$0xff] %vm400, %v399
        %v403 = vld [vmem:[#allocation4] sm:$0xff]
        %v404 = vld [vmem:[#allocation4 + $0x8] sm:$0xff]
        %406 = vset.pattern.permute.xlu0 0
        %407 = vperm.xlu0 %406, %v369
        %v408 = vpop.permute.xlu0 %407
        %411 = vset.pattern.permute.xlu0 0
        %412 = vperm.xlu0 %411, %v371
        %v413 = vpop.permute.xlu0 %412
        %v415 = vmul.f32 %v408, %v403
        %v416 = vmul.f32 %v413, %v404
        %v417 = vpack.c.bf16 %v387, %v385
        %v418 = vld [vmem:[%s277] sm:$0xff]
        %v419 = vld [vmem:[%s277 + $0x8] sm:$0xff]
        %v420 = vpack.c.bf16 %v419, %v418
        %v422 = vsel %vm357, %v417, 0
        %424 = vmatpush.bf16.msra.mxu0 0
        %425 = vmatpush.bf16.msra.mxu0 0
        %426 = vmatpush.bf16.msra.mxu0 0
        %427 = vmatpush.bf16.msra.mxu0 0
        %428 = vmatpush.bf16.msra.mxu0 0
        %429 = vmatpush.bf16.msra.mxu0 0
        %430 = vmatpush.bf16.msra.mxu0 0
        %431 = vmatpush.bf16.msra.mxu0 %v420
        %432 = vmatmul.bf16.gmra.mxu0 %v422
        %v433 = vpop.f32.mrf.mxu0
        %v434 = vadd.f32 0.0, %v433
        %v435 = vpop.f32.mrf.mxu0
        %v436 = vadd.f32 0.0, %v435
        %437 = vdwg.mxu0
        %v438 = vadd.f32 %v415, %v434
        %v439 = vadd.f32 %v416, %v436
        %440 = vst.msk [vmem:[#allocation4] sm:$0xff] %vm315, %v438
        %441 = vst.msk [vmem:[#allocation4 + $0x8] sm:$0xff] %vm315, %v439
        %442 = vst.msk [vmem:[#allocation2] sm:$0xff] %vm400, %v364
        %443 = vst.msk [vmem:[#allocation2 + $0x8] sm:$0xff] %vm400, %v365
      $region40: #{_lambda_.22} parent=31 // pred_fallthru
        _
      // Predicated region
      $region41: #{_lambda_.22} parent=31 // pred_check
        %p444 = pneg %p290
      $region42: #{_lambda_.22} parent=31 // pred_check_branch
        %446 = sbr.rel (%p444) target = $region44
      $region43: #{_lambda_.22} parent=31 // pred_region
        %v447 = vld [vmem:[#allocation4] sm:$0xff]
        %v448 = vld [vmem:[#allocation4 + $0x8] sm:$0xff]
        %v449 = vld [vmem:[#allocation3] sm:$0xff]
        %v450 = vld [vmem:[#allocation3 + $0x8] sm:$0xff]
        %v451 = vrcp.pop %v449
        %v452 = vrcp.pop %v450
        %454 = vset.pattern.permute.xlu0 0
        %455 = vperm.xlu0 %454, %v451
        %v456 = vpop.permute.xlu0 %455
        %459 = vset.pattern.permute.xlu0 0
        %460 = vperm.xlu0 %459, %v452
        %v461 = vpop.permute.xlu0 %460
        %v463 = vmul.f32 %v447, %v456
        %v464 = vmul.f32 %v448, %v461
        %vm465 = vcmask 64512
        %466 = vst.msk [vmem:[%s287] sm:$0xff] %vm465, %v463
        %467 = vst.msk [vmem:[%s287 + $0x8] sm:$0xff] %vm465, %v464
      $region44: #{_lambda_.22} parent=31 // pred_fallthru
        _
      %s468 = smul.u32 2, %s20
      %p469 = scmp.lt.s32.totalorder %s19, 7
      %s470 = scalar_select %p469, %s19, 7
      %p471 = scmp.lt.s32.totalorder %s468, 1
      %s472 = scalar_select %p471, %s468, 1
      %s473 = smul.addr %s470, 2
      %s474 = sadd.s32 %s472, %s473
      %s475 = smul.addr %s474, 8
      %s476 = scalar_lea.vmem %s3, %s475
      // Predicated region
      $region45: #{_lambda_.22} parent=31 // pred_check
        %p477 = pneg %p137
      $region46: #{_lambda_.22} parent=31 // pred_check_branch
        %479 = sbr.rel (%p477) target = $region48
      $region47: #{_lambda_.22} parent=31 // pred_region
        %s480 = smul.u32 2, %s20
      $region48: #{_lambda_.22} parent=31 // pred_fallthru
        _
    $region32: #{_lambda_.22} parent=5 // pred_fallthru
      _
    %p481 = scmp.le.s32.totalorder 2, %s9
    // Predicated region
    $region49: #{_lambda_.22} parent=5 // pred_check
      %p482 = pneg %p481
    $region50: #{_lambda_.22} parent=5 // pred_check_branch
      %484 = sbr.rel (%p482) target = $region52
    $region51: #{_lambda_.22} parent=5 // pred_region
      %s485 = ssub.s32 %s9, 2
      // Predicated region
      $region53: #{_lambda_.22} parent=51 // pred_check
        %p486 = pneg %p143
      $region54: #{_lambda_.22} parent=51 // pred_check_branch
        %488 = sbr.rel (%p486) target = $region56
      $region55: #{_lambda_.22} parent=51 // pred_region
        %s489 = smul.u32 2, %s23
        %p490 = scmp.lt.s32.totalorder %s22, 7
        %s491 = scalar_select %p490, %s22, 7
        %p492 = scmp.lt.s32.totalorder %s489, 1
        %s493 = scalar_select %p492, %s489, 1
        %s494 = smul.addr %s491, 2
        %s495 = sadd.s32 %s493, %s494
        %s496 = smul.addr %s495, 8
        %s497 = scalar_lea.vmem %s3, %s496
      $region56: #{_lambda_.22} parent=51 // pred_fallthru
        _
    $region52: #{_lambda_.22} parent=5 // pred_fallthru
      _
  $region6: #{_lambda_.22} parent=0 // loop_footer
    %s13 = sadd.s32 1, %s9
  $region7: #{_lambda_.22} parent=0 // loop_footer_branch
    %8 = sbr.rel target = $region3
  $region8: #{_lambda_.22} parent=0 // loop_exit
    _

// kernel: _lambda_.24
$region0: #{_lambda_.24}
  #allocation0 [shape = 'u32[]', space=smem, size = 0x4, offset = 0x4, fixed_abs, tag = 'smem constant byte address 0x4 - core index']
  #allocation1 [shape = 'u32[72,128]{1,0:T(1,128)}', space=vmem, size = 0x9000, scoped, tag = 'internal scratch']
  %s0 = inlined_call_operand.vmem [shape: f32[32,32], index: 0, kind: input, shape index: {}]
  %s1 = inlined_call_operand.vmem [shape: bf16[32,32], index: 1, kind: input, shape index: {}]
  %s2 = inlined_call_operand.vmem [shape: f32[1,32], index: 2, kind: input, shape index: {}]
  %s3 = inlined_call_operand.vmem [shape: f32[32,32], index: 3, kind: output, shape index: {}]
  %s4 = sld [smem:[#allocation0]]
  $region22: #{_lambda_.24} parent=0
    _
  %s6 = ssub.s32 1, %s4
  %s7 = scalar_select 0, %s6, %s4
  // Predicated region
  $region2: #{_lambda_.24} parent=0 // pred_check
    _
  $region3: #{_lambda_.24} parent=0 // pred_check_branch
    %9 = sbr.rel (0) target = $region5
  $region4: #{_lambda_.24} parent=0 // pred_region
    _
  $region5: #{_lambda_.24} parent=0 // pred_fallthru
    _
  // Predicated region
  $region6: #{_lambda_.24} parent=0 // pred_check
    _
  $region7: #{_lambda_.24} parent=0 // pred_check_branch
    %11 = sbr.rel (0) target = $region9
  $region8: #{_lambda_.24} parent=0 // pred_region
    _
  $region9: #{_lambda_.24} parent=0 // pred_fallthru
    _
  // Predicated region
  $region10: #{_lambda_.24} parent=0 // pred_check
    _
  $region11: #{_lambda_.24} parent=0 // pred_check_branch
    %13 = sbr.rel (0) target = $region13
  $region12: #{_lambda_.24} parent=0 // pred_region
    _
  $region13: #{_lambda_.24} parent=0 // pred_fallthru
    _
  %v15 = vld [vmem:[%s0] sm:$0xff]
  %v16 = vld [vmem:[%s0 + $0x8] sm:$0xff]
  %v17 = vld [vmem:[%s0 + $0x10] sm:$0xff]
  %v18 = vld [vmem:[%s0 + $0x18] sm:$0xff]
  %v19 = vpack.c.bf16 %v16, %v15
  %v20 = vpack.c.bf16 %v18, %v17
  %v21 = vld [vmem:[%s1] sm:$0xf]
  %v22 = vld [vmem:[%s1 + $0x4] sm:$0xf]
  %v23 = vld [vmem:[%s1 + $0x8] sm:$0xf]
  %v24 = vld [vmem:[%s1 + $0xc] sm:$0xf]
  %v25 = vld [vmem:[%s2] sm:$0x1]
  %v27 = vperm.slane %v25, 0
  %v33 = vunpack.c.l.b16 %v21
  %v34 = vunpack.c.l.b16 %v22
  %v35 = vunpack.c.l.b16 %v23
  %v36 = vunpack.c.l.b16 %v24
  %v37 = vpack.c.b16 %v34, %v33
  %v38 = vpack.c.b16 %v36, %v35
  %vm41 = vcmask 261120
  %v43 = vsel %vm41, %v19, 0
  %v46 = vsel %vm41, %v20, 0
  %48 = vmatpush.bf16.msra.mxu0 0
  %49 = vmatpush.bf16.msra.mxu0 0
  %50 = vmatpush.bf16.msra.mxu0 0
  %51 = vmatpush.bf16.msra.mxu0 0
  %52 = vmatpush.bf16.msra.mxu0 0
  %53 = vmatpush.bf16.msra.mxu0 0
  %54 = vmatpush.bf16.msra.mxu0 %v38
  %55 = vmatpush.bf16.msra.mxu0 %v37
  %56 = vmatmul.bf16.gmra.mxu0 %v43
  %v57 = vpop.f32.mrf.mxu0
  %v58 = vadd.f32 %v27, %v57
  %v59 = vpop.f32.mrf.mxu0
  %v60 = vadd.f32 %v27, %v59
  %61 = vmatmul.bf16.gmra.mxu0 %v46
  %v62 = vpop.f32.mrf.mxu0
  %v63 = vadd.f32 %v27, %v62
  %v64 = vpop.f32.mrf.mxu0
  %v65 = vadd.f32 %v27, %v64
  %66 = vdwg.mxu0
  %67 = vst.msk [vmem:[%s3] sm:$0xff] %vm41, %v58
  %68 = vst.msk [vmem:[%s3 + $0x8] sm:$0xff] %vm41, %v60
  %69 = vst.msk [vmem:[%s3 + $0x10] sm:$0xff] %vm41, %v63
  %70 = vst.msk [vmem:[%s3 + $0x18] sm:$0xff] %vm41, %v65
  // Predicated region
  $region14: #{_lambda_.24} parent=0 // pred_check
    _
  $region15: #{_lambda_.24} parent=0 // pred_check_branch
    %72 = sbr.rel (0) target = $region17
  $region16: #{_lambda_.24} parent=0 // pred_region
    _
  $region17: #{_lambda_.24} parent=0 // pred_fallthru
    _
  // Predicated region
  $region18: #{_lambda_.24} parent=0 // pred_check
    _
  $region19: #{_lambda_.24} parent=0 // pred_check_branch
    %74 = sbr.rel (0) target = $region21
  $region20: #{_lambda_.24} parent=0 // pred_region
    _
  $region21: #{_lambda_.24} parent=0 // pred_fallthru
    _

// kernel: _lambda_.25
$region0: #{_lambda_.25}
  #allocation0 [shape = 'u32[]', space=smem, size = 0x4, offset = 0x4, fixed_abs, tag = 'smem constant byte address 0x4 - core index']
  #allocation1 [shape = 'u32[72,128]{1,0:T(1,128)}', space=vmem, size = 0x9000, scoped, tag = 'internal scratch']
  %s0 = inlined_call_operand.vmem [shape: f32[32,32], index: 0, kind: input, shape index: {}]
  %s1 = inlined_call_operand.vmem [shape: bf16[32,64], index: 1, kind: input, shape index: {}]
  %s2 = inlined_call_operand.vmem [shape: f32[1,64], index: 2, kind: input, shape index: {}]
  %s3 = inlined_call_operand.vmem [shape: f32[32,64], index: 3, kind: output, shape index: {}]
  %s4 = sld [smem:[#allocation0]]
  $region22: #{_lambda_.25} parent=0
    _
  %s6 = ssub.s32 1, %s4
  %s7 = scalar_select 0, %s6, %s4
  // Predicated region
  $region2: #{_lambda_.25} parent=0 // pred_check
    _
  $region3: #{_lambda_.25} parent=0 // pred_check_branch
    %9 = sbr.rel (0) target = $region5
  $region4: #{_lambda_.25} parent=0 // pred_region
    _
  $region5: #{_lambda_.25} parent=0 // pred_fallthru
    _
  // Predicated region
  $region6: #{_lambda_.25} parent=0 // pred_check
    _
  $region7: #{_lambda_.25} parent=0 // pred_check_branch
    %11 = sbr.rel (0) target = $region9
  $region8: #{_lambda_.25} parent=0 // pred_region
    _
  $region9: #{_lambda_.25} parent=0 // pred_fallthru
    _
  // Predicated region
  $region10: #{_lambda_.25} parent=0 // pred_check
    _
  $region11: #{_lambda_.25} parent=0 // pred_check_branch
    %13 = sbr.rel (0) target = $region13
  $region12: #{_lambda_.25} parent=0 // pred_region
    _
  $region13: #{_lambda_.25} parent=0 // pred_fallthru
    _
  %v15 = vld [vmem:[%s0] sm:$0xff]
  %v16 = vld [vmem:[%s0 + $0x8] sm:$0xff]
  %v17 = vld [vmem:[%s0 + $0x10] sm:$0xff]
  %v18 = vld [vmem:[%s0 + $0x18] sm:$0xff]
  %v19 = vpack.c.bf16 %v16, %v15
  %v20 = vpack.c.bf16 %v18, %v17
  %v21 = vld [vmem:[%s1] sm:$0xf]
  %v22 = vld [vmem:[%s1 + $0x4] sm:$0xf]
  %v23 = vld [vmem:[%s1 + $0x8] sm:$0xf]
  %v24 = vld [vmem:[%s1 + $0xc] sm:$0xf]
  %v25 = vld [vmem:[%s2] sm:$0x1]
  %v27 = vperm.slane %v25, 0
  %v33 = vunpack.c.l.b16 %v21
  %v34 = vunpack.c.l.b16 %v22
  %v35 = vunpack.c.l.b16 %v23
  %v36 = vunpack.c.l.b16 %v24
  %v37 = vpack.c.b16 %v34, %v33
  %v38 = vpack.c.b16 %v36, %v35
  %vm41 = vcmask 261120
  %v43 = vsel %vm41, %v19, 0
  %v46 = vsel %vm41, %v20, 0
  %48 = vmatpush.bf16.msra.mxu0 0
  %49 = vmatpush.bf16.msra.mxu0 0
  %50 = vmatpush.bf16.msra.mxu0 0
  %51 = vmatpush.bf16.msra.mxu0 0
  %52 = vmatpush.bf16.msra.mxu0 0
  %53 = vmatpush.bf16.msra.mxu0 0
  %54 = vmatpush.bf16.msra.mxu0 %v38
  %55 = vmatpush.bf16.msra.mxu0 %v37
  %56 = vmatmul.bf16.gmra.mxu0 %v43
  %v57 = vpop.f32.mrf.mxu0
  %v58 = vadd.f32 %v27, %v57
  %v59 = vpop.f32.mrf.mxu0
  %v60 = vadd.f32 %v27, %v59
  %61 = vmatmul.bf16.gmra.mxu0 %v46
  %v62 = vpop.f32.mrf.mxu0
  %v63 = vadd.f32 %v27, %v62
  %v64 = vpop.f32.mrf.mxu0
  %v65 = vadd.f32 %v27, %v64
  %66 = vdwg.mxu0
  %vm67 = vcmask 523264
  %68 = vst.msk [vmem:[%s3] sm:$0xff] %vm67, %v58
  %69 = vst.msk [vmem:[%s3 + $0x8] sm:$0xff] %vm67, %v60
  %70 = vst.msk [vmem:[%s3 + $0x10] sm:$0xff] %vm67, %v63
  %71 = vst.msk [vmem:[%s3 + $0x18] sm:$0xff] %vm67, %v65
  // Predicated region
  $region14: #{_lambda_.25} parent=0 // pred_check
    _
  $region15: #{_lambda_.25} parent=0 // pred_check_branch
    %73 = sbr.rel (0) target = $region17
  $region16: #{_lambda_.25} parent=0 // pred_region
    _
  $region17: #{_lambda_.25} parent=0 // pred_fallthru
    _
  // Predicated region
  $region18: #{_lambda_.25} parent=0 // pred_check
    _
  $region19: #{_lambda_.25} parent=0 // pred_check_branch
    %75 = sbr.rel (0) target = $region21
  $region20: #{_lambda_.25} parent=0 // pred_region
    _
  $region21: #{_lambda_.25} parent=0 // pred_fallthru
    _

// kernel: _lambda_.23
$region0: #{_lambda_.23}
  #allocation0 [shape = 'u32[]', space=smem, size = 0x4, offset = 0x4, fixed_abs, tag = 'smem constant byte address 0x4 - core index']
  #allocation1 [shape = 'u32[72,128]{1,0:T(1,128)}', space=vmem, size = 0x9000, scoped, tag = 'internal scratch']
  %s0 = inlined_call_operand.vmem [shape: f32[32,32], index: 0, kind: input, shape index: {}]
  %s1 = inlined_call_operand.vmem [shape: bf16[32,32], index: 1, kind: input, shape index: {}]
  %s2 = inlined_call_operand.vmem [shape: f32[1,32], index: 2, kind: input, shape index: {}]
  %s3 = inlined_call_operand.vmem [shape: f32[32,32], index: 3, kind: input, shape index: {}]
  %s4 = inlined_call_operand.vmem [shape: f32[1,32], index: 4, kind: input, shape index: {}]
  %s5 = inlined_call_operand.vmem [shape: f32[1,32], index: 5, kind: input, shape index: {}]
  %s6 = inlined_call_operand.vmem [shape: f32[32,32], index: 6, kind: output, shape index: {}]
  %s7 = sld [smem:[#allocation0]]
  $region34: #{_lambda_.23} parent=0
    _
  %s9 = ssub.s32 1, %s7
  %s10 = scalar_select 0, %s9, %s7
  // Predicated region
  $region2: #{_lambda_.23} parent=0 // pred_check
    _
  $region3: #{_lambda_.23} parent=0 // pred_check_branch
    %12 = sbr.rel (0) target = $region5
  $region4: #{_lambda_.23} parent=0 // pred_region
    _
  $region5: #{_lambda_.23} parent=0 // pred_fallthru
    _
  // Predicated region
  $region6: #{_lambda_.23} parent=0 // pred_check
    _
  $region7: #{_lambda_.23} parent=0 // pred_check_branch
    %14 = sbr.rel (0) target = $region9
  $region8: #{_lambda_.23} parent=0 // pred_region
    _
  $region9: #{_lambda_.23} parent=0 // pred_fallthru
    _
  // Predicated region
  $region10: #{_lambda_.23} parent=0 // pred_check
    _
  $region11: #{_lambda_.23} parent=0 // pred_check_branch
    %16 = sbr.rel (0) target = $region13
  $region12: #{_lambda_.23} parent=0 // pred_region
    _
  $region13: #{_lambda_.23} parent=0 // pred_fallthru
    _
  // Predicated region
  $region14: #{_lambda_.23} parent=0 // pred_check
    _
  $region15: #{_lambda_.23} parent=0 // pred_check_branch
    %18 = sbr.rel (0) target = $region17
  $region16: #{_lambda_.23} parent=0 // pred_region
    _
  $region17: #{_lambda_.23} parent=0 // pred_fallthru
    _
  // Predicated region
  $region18: #{_lambda_.23} parent=0 // pred_check
    _
  $region19: #{_lambda_.23} parent=0 // pred_check_branch
    %20 = sbr.rel (0) target = $region21
  $region20: #{_lambda_.23} parent=0 // pred_region
    _
  $region21: #{_lambda_.23} parent=0 // pred_fallthru
    _
  // Predicated region
  $region22: #{_lambda_.23} parent=0 // pred_check
    _
  $region23: #{_lambda_.23} parent=0 // pred_check_branch
    %22 = sbr.rel (0) target = $region25
  $region24: #{_lambda_.23} parent=0 // pred_region
    _
  $region25: #{_lambda_.23} parent=0 // pred_fallthru
    _
  %v24 = vld [vmem:[%s0] sm:$0xff]
  %v25 = vld [vmem:[%s0 + $0x8] sm:$0xff]
  %v26 = vld [vmem:[%s0 + $0x10] sm:$0xff]
  %v27 = vld [vmem:[%s0 + $0x18] sm:$0xff]
  %v28 = vpack.c.bf16 %v25, %v24
  %v29 = vpack.c.bf16 %v27, %v26
  %v30 = vld [vmem:[%s1] sm:$0xf]
  %v31 = vld [vmem:[%s1 + $0x4] sm:$0xf]
  %v32 = vld [vmem:[%s1 + $0x8] sm:$0xf]
  %v33 = vld [vmem:[%s1 + $0xc] sm:$0xf]
  %v34 = vld [vmem:[%s2] sm:$0x1]
  %v36 = vperm.slane %v34, 0
  %v42 = vunpack.c.l.b16 %v30
  %v43 = vunpack.c.l.b16 %v31
  %v44 = vunpack.c.l.b16 %v32
  %v45 = vunpack.c.l.b16 %v33
  %v46 = vpack.c.b16 %v43, %v42
  %v47 = vpack.c.b16 %v45, %v44
  %vm50 = vcmask 261120
  %v52 = vsel %vm50, %v28, 0
  %v55 = vsel %vm50, %v29, 0
  %57 = vmatpush.bf16.msra.mxu0 0
  %58 = vmatpush.bf16.msra.mxu0 0
  %59 = vmatpush.bf16.msra.mxu0 0
  %60 = vmatpush.bf16.msra.mxu0 0
  %61 = vmatpush.bf16.msra.mxu0 0
  %62 = vmatpush.bf16.msra.mxu0 0
  %63 = vmatpush.bf16.msra.mxu0 %v47
  %64 = vmatpush.bf16.msra.mxu0 %v46
  %65 = vmatmul.bf16.gmra.mxu0 %v52
  %v66 = vpop.f32.mrf.mxu0
  %v67 = vadd.f32 %v36, %v66
  %v68 = vpop.f32.mrf.mxu0
  %v69 = vadd.f32 %v36, %v68
  %70 = vmatmul.bf16.gmra.mxu0 %v55
  %v71 = vpop.f32.mrf.mxu0
  %v72 = vadd.f32 %v36, %v71
  %v73 = vpop.f32.mrf.mxu0
  %v74 = vadd.f32 %v36, %v73
  %75 = vdwg.mxu0
  %v76 = vld [vmem:[%s3] sm:$0xff]
  %v77 = vld [vmem:[%s3 + $0x8] sm:$0xff]
  %v78 = vld [vmem:[%s3 + $0x10] sm:$0xff]
  %v79 = vld [vmem:[%s3 + $0x18] sm:$0xff]
  %v80 = vadd.f32 %v67, %v76
  %v81 = vadd.f32 %v69, %v77
  %v82 = vadd.f32 %v72, %v78
  %v83 = vadd.f32 %v74, %v79
  %v84 = vsel %vm50, %v80, 0.0
  %85 = vadd.xlane.f32.xlu0 %v84
  %v86 = vpop.xlane.xlu0 %85
  %v87 = vsel %vm50, %v81, 0.0
  %88 = vadd.xlane.f32.xlu0 %v87
  %v89 = vpop.xlane.xlu0 %88
  %v90 = vsel %vm50, %v82, 0.0
  %91 = vadd.xlane.f32.xlu0 %v90
  %v92 = vpop.xlane.xlu0 %91
  %v93 = vsel %vm50, %v83, 0.0
  %94 = vadd.xlane.f32.xlu0 %v93
  %v95 = vpop.xlane.xlu0 %94
  %v96 = vrcp.pop 32.0
  %v97 = vmul.f32 32.0, %v96
  %v98 = vsub.f32 1.0, %v97
  %v99 = vmul.f32 %v96, %v98
  %v100 = vadd.f32 %v96, %v99
  %vm101 = vweird.f32 %v96
  %v102 = vsel %vm101, %v96, %v100
  %v103 = vmul.f32 %v86, %v102
  %v104 = vmul.f32 %v89, %v102
  %v105 = vmul.f32 %v92, %v102
  %v106 = vmul.f32 %v95, %v102
  %v107 = vsub.f32 %v80, %v103
  %v108 = vsub.f32 %v81, %v104
  %v109 = vsub.f32 %v82, %v105
  %v110 = vsub.f32 %v83, %v106
  %v111 = vmul.f32 %v107, %v107
  %v112 = vmul.f32 %v108, %v108
  %v113 = vmul.f32 %v109, %v109
  %v114 = vmul.f32 %v110, %v110
  %v115 = vsel %vm50, %v111, 0.0
  %116 = vadd.xlane.f32.xlu0 %v115
  %v117 = vpop.xlane.xlu0 %116
  %v118 = vsel %vm50, %v112, 0.0
  %119 = vadd.xlane.f32.xlu0 %v118
  %v120 = vpop.xlane.xlu0 %119
  %v121 = vsel %vm50, %v113, 0.0
  %122 = vadd.xlane.f32.xlu0 %v121
  %v123 = vpop.xlane.xlu0 %122
  %v124 = vsel %vm50, %v114, 0.0
  %125 = vadd.xlane.f32.xlu0 %v124
  %v126 = vpop.xlane.xlu0 %125
  %v127 = vmul.f32 %v117, %v102
  %v128 = vmul.f32 %v120, %v102
  %v129 = vmul.f32 %v123, %v102
  %v130 = vmul.f32 %v126, %v102
  %v131 = vadd.f32 %v127, 1e-05
  %v132 = vadd.f32 %v128, 1e-05
  %v133 = vadd.f32 %v129, 1e-05
  %v134 = vadd.f32 %v130, 1e-05
  %v135 = vrsqrt.pop %v131
  %v136 = vmul.f32 %v135, %v131
  %v137 = vmul.f32 %v136, %v135
  %v138 = vmul.f32 0.5, %v137
  %v139 = vsub.f32 1.5, %v138
  %v140 = vmul.f32 %v135, %v139
  %vm141 = vweird.f32 %v131
  %vm142 = vweird.f32 %v135
  %vm143 = vmor %vm141, %vm142
  %v144 = vsel %vm143, %v135, %v140
  %v145 = vrsqrt.pop %v132
  %v146 = vmul.f32 %v145, %v132
  %v147 = vmul.f32 %v146, %v145
  %v148 = vmul.f32 0.5, %v147
  %v149 = vsub.f32 1.5, %v148
  %v150 = vmul.f32 %v145, %v149
  %vm151 = vweird.f32 %v132
  %vm152 = vweird.f32 %v145
  %vm153 = vmor %vm151, %vm152
  %v154 = vsel %vm153, %v145, %v150
  %v155 = vrsqrt.pop %v133
  %v156 = vmul.f32 %v155, %v133
  %v157 = vmul.f32 %v156, %v155
  %v158 = vmul.f32 0.5, %v157
  %v159 = vsub.f32 1.5, %v158
  %v160 = vmul.f32 %v155, %v159
  %vm161 = vweird.f32 %v133
  %vm162 = vweird.f32 %v155
  %vm163 = vmor %vm161, %vm162
  %v164 = vsel %vm163, %v155, %v160
  %v165 = vrsqrt.pop %v134
  %v166 = vmul.f32 %v165, %v134
  %v167 = vmul.f32 %v166, %v165
  %v168 = vmul.f32 0.5, %v167
  %v169 = vsub.f32 1.5, %v168
  %v170 = vmul.f32 %v165, %v169
  %vm171 = vweird.f32 %v134
  %vm172 = vweird.f32 %v165
  %vm173 = vmor %vm171, %vm172
  %v174 = vsel %vm173, %v165, %v170
  %v175 = vmul.f32 %v107, %v144
  %v176 = vmul.f32 %v108, %v154
  %v177 = vmul.f32 %v109, %v164
  %v178 = vmul.f32 %v110, %v174
  %v179 = vld [vmem:[%s4] sm:$0x1]
  %v181 = vperm.slane %v179, 0
  %v183 = vmul.f32 %v175, %v181
  %v184 = vmul.f32 %v176, %v181
  %v185 = vmul.f32 %v177, %v181
  %v186 = vmul.f32 %v178, %v181
  %v187 = vld [vmem:[%s5] sm:$0x1]
  %v189 = vperm.slane %v187, 0
  %v191 = vadd.f32 %v183, %v189
  %v192 = vadd.f32 %v184, %v189
  %v193 = vadd.f32 %v185, %v189
  %v194 = vadd.f32 %v186, %v189
  %195 = vst.msk [vmem:[%s6] sm:$0xff] %vm50, %v191
  %196 = vst.msk [vmem:[%s6 + $0x8] sm:$0xff] %vm50, %v192
  %197 = vst.msk [vmem:[%s6 + $0x10] sm:$0xff] %vm50, %v193
  %198 = vst.msk [vmem:[%s6 + $0x18] sm:$0xff] %vm50, %v194
  // Predicated region
  $region26: #{_lambda_.23} parent=0 // pred_check
    _
  $region27: #{_lambda_.23} parent=0 // pred_check_branch
    %200 = sbr.rel (0) target = $region29
  $region28: #{_lambda_.23} parent=0 // pred_region
    _
  $region29: #{_lambda_.23} parent=0 // pred_fallthru
    _
  // Predicated region
  $region30: #{_lambda_.23} parent=0 // pred_check
    _
  $region31: #{_lambda_.23} parent=0 // pred_check_branch
    %202 = sbr.rel (0) target = $region33
  $region32: #{_lambda_.23} parent=0 // pred_region
    _
  $region33: #{_lambda_.23} parent=0 // pred_fallthru
    _

// kernel: _lambda_.37
$region0: #{_lambda_.37}
  #allocation0 [shape = 'u32[]', space=smem, size = 0x4, offset = 0x4, fixed_abs, tag = 'smem constant byte address 0x4 - core index']
  #allocation1 [shape = 'u32[72,128]{1,0:T(1,128)}', space=vmem, size = 0x9000, scoped, tag = 'internal scratch']
  %s0 = inlined_call_operand.vmem [shape: f32[32,32], index: 0, kind: input, shape index: {}]
  %s1 = inlined_call_operand.vmem [shape: bf16[32,128], index: 1, kind: input, shape index: {}]
  %s2 = inlined_call_operand.vmem [shape: f32[1,128], index: 2, kind: input, shape index: {}]
  %s3 = inlined_call_operand.hbm [shape: f32[32,128], index: 3, kind: output, shape index: {}]
  %s4 = sld [smem:[#allocation0]]
  $region22: #{_lambda_.37} parent=0
    _
  %s6 = ssub.s32 1, %s4
  %s7 = scalar_select 0, %s6, %s4
  $region1: #{_lambda_.37} parent=0
    #allocation2 [shape = 'u8[16384]{0}', space=vmem, size = 0x4000, scoped, tag = 'output window, operand 0, single buffered']
    #allocation3 [shape = 's32[1]{0}', space=sflag, size = 0x4, scoped, tag = 'scoped memory for _lambda_.37']
    %8 = vsyncpa [#allocation3], 0
    // Predicated region
    $region2: #{_lambda_.37} parent=1 // pred_check
      _
    $region3: #{_lambda_.37} parent=1 // pred_check_branch
      %10 = sbr.rel (0) target = $region5
    $region4: #{_lambda_.37} parent=1 // pred_region
      _
    $region5: #{_lambda_.37} parent=1 // pred_fallthru
      _
    // Predicated region
    $region6: #{_lambda_.37} parent=1 // pred_check
      _
    $region7: #{_lambda_.37} parent=1 // pred_check_branch
      %12 = sbr.rel (0) target = $region9
    $region8: #{_lambda_.37} parent=1 // pred_region
      _
    $region9: #{_lambda_.37} parent=1 // pred_fallthru
      _
    // Predicated region
    $region10: #{_lambda_.37} parent=1 // pred_check
      _
    $region11: #{_lambda_.37} parent=1 // pred_check_branch
      %14 = sbr.rel (0) target = $region13
    $region12: #{_lambda_.37} parent=1 // pred_region
      _
    $region13: #{_lambda_.37} parent=1 // pred_fallthru
      _
    %v16 = vld [vmem:[%s0] sm:$0xff]
    %v17 = vld [vmem:[%s0 + $0x8] sm:$0xff]
    %v18 = vld [vmem:[%s0 + $0x10] sm:$0xff]
    %v19 = vld [vmem:[%s0 + $0x18] sm:$0xff]
    %v20 = vpack.c.bf16 %v17, %v16
    %v21 = vpack.c.bf16 %v19, %v18
    %v22 = vld [vmem:[%s1] sm:$0xf]
    %v23 = vld [vmem:[%s1 + $0x4] sm:$0xf]
    %v24 = vld [vmem:[%s1 + $0x8] sm:$0xf]
    %v25 = vld [vmem:[%s1 + $0xc] sm:$0xf]
    %v26 = vld [vmem:[%s2] sm:$0x1]
    %v28 = vperm.slane %v26, 0
    %v34 = vunpack.c.l.b16 %v22
    %v35 = vunpack.c.l.b16 %v23
    %v36 = vunpack.c.l.b16 %v24
    %v37 = vunpack.c.l.b16 %v25
    %v38 = vpack.c.b16 %v35, %v34
    %v39 = vpack.c.b16 %v37, %v36
    %vm42 = vcmask 261120
    %v44 = vsel %vm42, %v20, 0
    %v47 = vsel %vm42, %v21, 0
    %49 = vmatpush.bf16.msra.mxu0 0
    %50 = vmatpush.bf16.msra.mxu0 0
    %51 = vmatpush.bf16.msra.mxu0 0
    %52 = vmatpush.bf16.msra.mxu0 0
    %53 = vmatpush.bf16.msra.mxu0 0
    %54 = vmatpush.bf16.msra.mxu0 0
    %55 = vmatpush.bf16.msra.mxu0 %v39
    %56 = vmatpush.bf16.msra.mxu0 %v38
    %57 = vmatmul.bf16.gmra.mxu0 %v44
    %v58 = vpop.f32.mrf.mxu0
    %v59 = vadd.f32 %v28, %v58
    %v60 = vpop.f32.mrf.mxu0
    %v61 = vadd.f32 %v28, %v60
    %62 = vmatmul.bf16.gmra.mxu0 %v47
    %v63 = vpop.f32.mrf.mxu0
    %v64 = vadd.f32 %v28, %v63
    %v65 = vpop.f32.mrf.mxu0
    %v66 = vadd.f32 %v28, %v65
    %67 = vdwg.mxu0
    %68 = vst [vmem:[#allocation2] sm:$0xff] %v59
    %69 = vst [vmem:[#allocation2 + $0x8] sm:$0xff] %v61
    %70 = vst [vmem:[#allocation2 + $0x10] sm:$0xff] %v64
    %71 = vst [vmem:[#allocation2 + $0x18] sm:$0xff] %v66
    // Predicated region
    $region14: #{_lambda_.37} parent=1 // pred_check
      _
    $region15: #{_lambda_.37} parent=1 // pred_check_branch
      %73 = sbr.rel (0) target = $region17
    $region16: #{_lambda_.37} parent=1 // pred_region
      %75 = vsyncadd [#allocation3], 0
      %s76 = sshll.u32 [#allocation2], 4
      %s77 = int_to_ptr.vmem [resolvable:$true] %s76
      %s78 = sshll.u32 %s3, 4
      %s79 = int_to_ptr.hbm [resolvable:$true] %s78
      %84 = dma.vmem_to_hbm [thread:$0]  %s77, 512, %s79, [#allocation3], 128, 128, 8
    $region17: #{_lambda_.37} parent=1 // pred_fallthru
      _
    // Predicated region
    $region18: #{_lambda_.37} parent=1 // pred_check
      _
    $region19: #{_lambda_.37} parent=1 // pred_check_branch
      %86 = sbr.rel (0) target = $region21
    $region20: #{_lambda_.37} parent=1 // pred_region
      %88 = dma.done [#allocation3], 512
    $region21: #{_lambda_.37} parent=1 // pred_fallthru
      _
    %89 = vsyncpa [#allocation3], 1

// kernel: _lambda_.26
$region0: #{_lambda_.26}
  #allocation0 [shape = 'u32[]', space=smem, size = 0x4, offset = 0x4, fixed_abs, tag = 'smem constant byte address 0x4 - core index']
  #allocation1 [shape = 'u32[72,128]{1,0:T(1,128)}', space=vmem, size = 0x9000, scoped, tag = 'internal scratch']
  #allocation2 [shape = 'f32[16,1]{1,0:T(8,128)}', space=vmem, size = 0x2000, scoped, tag = 'scratch operand']
  #allocation3 [shape = 'f32[16,1]{1,0:T(8,128)}', space=vmem, size = 0x2000, scoped, tag = 'scratch operand']
  #allocation4 [shape = 'f32[16,8]{1,0:T(8,128)}', space=vmem, size = 0x2000, scoped, tag = 'scratch operand']
  %s0 = inlined_call_operand.vmem [shape: f32[8,16,8], index: 0, kind: input, shape index: {}]
  %s1 = inlined_call_operand.vmem [shape: f32[8,16,8], index: 1, kind: input, shape index: {}]
  %s2 = inlined_call_operand.vmem [shape: f32[8,16,8], index: 2, kind: input, shape index: {}]
  %s3 = inlined_call_operand.vmem [shape: f32[8,16,8], index: 3, kind: output, shape index: {}]
  %s4 = sld [smem:[#allocation0]]
  $region53: #{_lambda_.26} parent=0
    _
  %s6 = ssub.s32 1, %s4
  %s7 = scalar_select 0, %s6, %s4
  loop: start=0, step=1, limit=10
  $region2: #{_lambda_.26} parent=0 // loop_pre_header
    _
  $region3: #{_lambda_.26} parent=0 // loop_header
    %s9 = sphi 0, %s13
    %p10 = scmp.ge.s32.totalorder %s9, 10
    %s16 = sphi 0, %s35
    %s17 = sphi 0, %s31
    %s18 = sphi 0, %s27
    %s19 = sphi 0, %s16
    %s20 = sphi 0, %s17
    %s21 = sphi 0, %s18
    %s22 = sphi 0, %s19
    %s23 = sphi 0, %s20
    %s24 = sphi 0, %s21
    %s40 = sphi 0, %s42
    %s43 = sphi 0, %s40
    %s44 = sphi 0, %s43
    %s60 = sphi 0, %s44
    %s68 = sphi 0, %s70
    %s71 = sphi 0, %s68
    %s72 = sphi 0, %s71
    %s88 = sphi 0, %s72
    %s96 = sphi 0, %s98
    %s99 = sphi 0, %s96
    %s100 = sphi 0, %s99
    %s116 = sphi 0, %s100
    %s124 = sphi 0, %s126
    %s127 = sphi 0, %s124
    %s128 = sphi 0, %s127
    %s144 = sphi 0, %s128
  $region4: #{_lambda_.26} parent=0 // loop_header_branch
    %12 = sbr.rel (%p10) target = $region8
  $region5: #{_lambda_.26} parent=0 // loop_body
    %s14 = ssub.s32 %s9, 1
    %s15 = ssub.s32 %s9, 2
    %s25 = sadd.s32 1, %s18
    %p26 = scmp.ge.s32.totalorder %s25, 1
    %s27 = scalar_select %p26, 0, %s25
    %s28 = sadd.s32 1, %s17
    %s29 = scalar_select %p26, %s28, %s17
    %p30 = scmp.ge.s32.totalorder %s29, 1
    %s31 = scalar_select %p30, 0, %s29
    %s32 = sadd.s32 1, %s16
    %s33 = scalar_select %p30, %s32, %s16
    %p34 = scmp.ge.s32.totalorder %s33, 8
    %s35 = scalar_select %p34, 0, %s33
    %s36 = ssub.s32 %s16, %s35
    %s37 = ssub.s32 %s17, %s31
    %s38 = sor.u32 %s36, %s37
    %p39 = scmp.eq.s32.totalorder %s38, 0
    %s41 = sadd.s32 %s40, 1
    %s42 = scalar_select %p39, %s40, %s41
    %p45 = pneg %p39
    %p46 = scmp.eq.s32.totalorder %s9, 7
    %p47 = por %p45, %p46
    %p48 = scmp.ne.s32.totalorder %s40, %s43
    %p49 = scmp.eq.s32.totalorder %s9, 0
    %p50 = por %p48, %p49
    %p51 = scmp.ne.s32.totalorder %s40, %s43
    %p52 = scmp.eq.s32.totalorder %s14, 7
    %p53 = por %p51, %p52
    %p54 = scmp.ne.s32.totalorder %s43, %s44
    %p55 = scmp.eq.s32.totalorder %s14, 0
    %p56 = por %p54, %p55
    %p57 = scmp.ne.s32.totalorder %s43, %s44
    %p58 = scmp.eq.s32.totalorder %s15, 7
    %p59 = por %p57, %p58
    %p61 = scmp.ne.s32.totalorder %s44, %s60
    %p62 = scmp.eq.s32.totalorder %s15, 0
    %p63 = por %p61, %p62
    %s64 = ssub.s32 %s16, %s35
    %s65 = ssub.s32 %s18, %s27
    %s66 = sor.u32 %s64, %s65
    %p67 = scmp.eq.s32.totalorder %s66, 0
    %s69 = sadd.s32 %s68, 1
    %s70 = scalar_select %p67, %s68, %s69
    %p73 = pneg %p67
    %p74 = scmp.eq.s32.totalorder %s9, 7
    %p75 = por %p73, %p74
    %p76 = scmp.ne.s32.totalorder %s68, %s71
    %p77 = scmp.eq.s32.totalorder %s9, 0
    %p78 = por %p76, %p77
    %p79 = scmp.ne.s32.totalorder %s68, %s71
    %p80 = scmp.eq.s32.totalorder %s14, 7
    %p81 = por %p79, %p80
    %p82 = scmp.ne.s32.totalorder %s71, %s72
    %p83 = scmp.eq.s32.totalorder %s14, 0
    %p84 = por %p82, %p83
    %p85 = scmp.ne.s32.totalorder %s71, %s72
    %p86 = scmp.eq.s32.totalorder %s15, 7
    %p87 = por %p85, %p86
    %p89 = scmp.ne.s32.totalorder %s72, %s88
    %p90 = scmp.eq.s32.totalorder %s15, 0
    %p91 = por %p89, %p90
    %s92 = ssub.s32 %s16, %s35
    %s93 = ssub.s32 %s18, %s27
    %s94 = sor.u32 %s92, %s93
    %p95 = scmp.eq.s32.totalorder %s94, 0
    %s97 = sadd.s32 %s96, 1
    %s98 = scalar_select %p95, %s96, %s97
    %p101 = pneg %p95
    %p102 = scmp.eq.s32.totalorder %s9, 7
    %p103 = por %p101, %p102
    %p104 = scmp.ne.s32.totalorder %s96, %s99
    %p105 = scmp.eq.s32.totalorder %s9, 0
    %p106 = por %p104, %p105
    %p107 = scmp.ne.s32.totalorder %s96, %s99
    %p108 = scmp.eq.s32.totalorder %s14, 7
    %p109 = por %p107, %p108
    %p110 = scmp.ne.s32.totalorder %s99, %s100
    %p111 = scmp.eq.s32.totalorder %s14, 0
    %p112 = por %p110, %p111
    %p113 = scmp.ne.s32.totalorder %s99, %s100
    %p114 = scmp.eq.s32.totalorder %s15, 7
    %p115 = por %p113, %p114
    %p117 = scmp.ne.s32.totalorder %s100, %s116
    %p118 = scmp.eq.s32.totalorder %s15, 0
    %p119 = por %p117, %p118
    %s120 = ssub.s32 %s16, %s35
    %s121 = ssub.s32 %s17, %s31
    %s122 = sor.u32 %s120, %s121
    %p123 = scmp.eq.s32.totalorder %s122, 0
    %s125 = sadd.s32 %s124, 1
    %s126 = scalar_select %p123, %s124, %s125
    %p129 = pneg %p123
    %p130 = scmp.eq.s32.totalorder %s9, 7
    %p131 = por %p129, %p130
    %p132 = scmp.ne.s32.totalorder %s124, %s127
    %p133 = scmp.eq.s32.totalorder %s9, 0
    %p134 = por %p132, %p133
    %p135 = scmp.ne.s32.totalorder %s124, %s127
    %p136 = scmp.eq.s32.totalorder %s14, 7
    %p137 = por %p135, %p136
    %p138 = scmp.ne.s32.totalorder %s127, %s128
    %p139 = scmp.eq.s32.totalorder %s14, 0
    %p140 = por %p138, %p139
    %p141 = scmp.ne.s32.totalorder %s127, %s128
    %p142 = scmp.eq.s32.totalorder %s15, 7
    %p143 = por %p141, %p142
    %p145 = scmp.ne.s32.totalorder %s128, %s144
    %p146 = scmp.eq.s32.totalorder %s15, 0
    %p147 = por %p145, %p146
    %p148 = scmp.le.s32.totalorder 1, %s9
    %p149 = scmp.lt.s32.totalorder %s9, 9
    %p150 = pnand %p148, %p149
    %p151 = pneg %p150
    // Predicated region
    $region9: #{_lambda_.26} parent=5 // pred_check
      _
    $region10: #{_lambda_.26} parent=5 // pred_check_branch
      %153 = sbr.rel (%p150) target = $region12
    $region11: #{_lambda_.26} parent=5 // pred_region
      %s154 = ssub.s32 %s9, 1
    $region12: #{_lambda_.26} parent=5 // pred_fallthru
      _
    %p155 = scmp.lt.s32.totalorder %s9, 8
    // Predicated region
    $region13: #{_lambda_.26} parent=5 // pred_check
      %p156 = pneg %p155
    $region14: #{_lambda_.26} parent=5 // pred_check_branch
      %158 = sbr.rel (%p156) target = $region16
    $region15: #{_lambda_.26} parent=5 // pred_region
      // Predicated region
      $region17: #{_lambda_.26} parent=15 // pred_check
        %p159 = pneg %p50
      $region18: #{_lambda_.26} parent=15 // pred_check_branch
        %161 = sbr.rel (%p159) target = $region20
      $region19: #{_lambda_.26} parent=15 // pred_region
        %s162 = smul.u32 2, %s17
        %p163 = scmp.lt.s32.totalorder %s16, 7
        %s164 = scalar_select %p163, %s16, 7
        %p165 = scmp.lt.s32.totalorder %s162, 1
        %s166 = scalar_select %p165, %s162, 1
        %s167 = smul.addr %s164, 2
        %s168 = sadd.s32 %s166, %s167
        %s169 = smul.addr %s168, 8
        %s170 = scalar_lea.vmem %s0, %s169
        %s171 = smul.u32 2, %s17
      $region20: #{_lambda_.26} parent=15 // pred_fallthru
        _
      // Predicated region
      $region21: #{_lambda_.26} parent=15 // pred_check
        %p172 = pneg %p78
      $region22: #{_lambda_.26} parent=15 // pred_check_branch
        %174 = sbr.rel (%p172) target = $region24
      $region23: #{_lambda_.26} parent=15 // pred_region
        %s175 = smul.u32 2, %s18
        %p176 = scmp.lt.s32.totalorder %s16, 7
        %s177 = scalar_select %p176, %s16, 7
        %p178 = scmp.lt.s32.totalorder %s175, 1
        %s179 = scalar_select %p178, %s175, 1
        %s180 = smul.addr %s177, 2
        %s181 = sadd.s32 %s179, %s180
        %s182 = smul.addr %s181, 8
        %s183 = scalar_lea.vmem %s1, %s182
        %s184 = smul.u32 2, %s18
      $region24: #{_lambda_.26} parent=15 // pred_fallthru
        _
      // Predicated region
      $region25: #{_lambda_.26} parent=15 // pred_check
        %p185 = pneg %p106
      $region26: #{_lambda_.26} parent=15 // pred_check_branch
        %187 = sbr.rel (%p185) target = $region28
      $region27: #{_lambda_.26} parent=15 // pred_region
        %s188 = smul.u32 2, %s18
        %p189 = scmp.lt.s32.totalorder %s16, 7
        %s190 = scalar_select %p189, %s16, 7
        %p191 = scmp.lt.s32.totalorder %s188, 1
        %s192 = scalar_select %p191, %s188, 1
        %s193 = smul.addr %s190, 2
        %s194 = sadd.s32 %s192, %s193
        %s195 = smul.addr %s194, 8
        %s196 = scalar_lea.vmem %s2, %s195
        %s197 = smul.u32 2, %s18
      $region28: #{_lambda_.26} parent=15 // pred_fallthru
        _
    $region16: #{_lambda_.26} parent=5 // pred_fallthru
      _
    %p198 = scmp.le.s32.totalorder 1, %s9
    %p199 = scmp.lt.s32.totalorder %s9, 9
    %p200 = pnand %p198, %p199
    %p201 = pneg %p200
    // Predicated region
    $region29: #{_lambda_.26} parent=5 // pred_check
      _
    $region30: #{_lambda_.26} parent=5 // pred_check_branch
      %203 = sbr.rel (%p200) target = $region32
    $region31: #{_lambda_.26} parent=5 // pred_region
      %s204 = ssub.s32 %s9, 1
      %s205 = smul.u32 2, %s20
      %p206 = scmp.lt.s32.totalorder %s19, 7
      %s207 = scalar_select %p206, %s19, 7
      %p208 = scmp.lt.s32.totalorder %s205, 1
      %s209 = scalar_select %p208, %s205, 1
      %s210 = smul.addr %s207, 2
      %s211 = sadd.s32 %s209, %s210
      %s212 = smul.addr %s211, 8
      %s213 = scalar_lea.vmem %s0, %s212
      %p214 = pneg %p56
      %p215 = pneg %p53
      %s216 = smul.u32 2, %s21
      %p217 = scmp.lt.s32.totalorder %s19, 7
      %s218 = scalar_select %p217, %s19, 7
      %p219 = scmp.lt.s32.totalorder %s216, 1
      %s220 = scalar_select %p219, %s216, 1
      %s221 = smul.addr %s218, 2
      %s222 = sadd.s32 %s220, %s221
      %s223 = smul.addr %s222, 8
      %s224 = scalar_lea.vmem %s1, %s223
      %p225 = pneg %p84
      %p226 = pneg %p81
      %s227 = smul.u32 2, %s21
      %p228 = scmp.lt.s32.totalorder %s19, 7
      %s229 = scalar_select %p228, %s19, 7
      %p230 = scmp.lt.s32.totalorder %s227, 1
      %s231 = scalar_select %p230, %s227, 1
      %s232 = smul.addr %s229, 2
      %s233 = sadd.s32 %s231, %s232
      %s234 = smul.addr %s233, 8
      %s235 = scalar_lea.vmem %s2, %s234
      %p236 = pneg %p112
      %p237 = pneg %p109
      %p238 = pneg %p140
      %p239 = pneg %p137
      %s240 = smul.u32 2, %s20
      %p241 = scmp.lt.s32.totalorder %s19, 7
      %s242 = scalar_select %p241, %s19, 7
      %p243 = scmp.lt.s32.totalorder %s240, 1
      %s244 = scalar_select %p243, %s240, 1
      %s245 = smul.addr %s242, 2
      %s246 = sadd.s32 %s244, %s245
      %s247 = smul.addr %s246, 8
      %s248 = scalar_lea.vmem %s3, %s247
      %s249 = smul.u32 2, %s20
      %p250 = scmp.lt.s32.totalorder %s19, 7
      %s251 = scalar_select %p250, %s19, 7
      %p252 = scmp.lt.s32.totalorder %s249, 1
      %s253 = scalar_select %p252, %s249, 1
      %s254 = smul.addr %s251, 2
      %s255 = sadd.s32 %s253, %s254
      %s256 = smul.addr %s255, 8
      %s257 = scalar_lea.vmem %s0, %s256
      %s258 = smul.u32 2, %s20
      %s259 = smul.u32 2, %s21
      %p260 = scmp.lt.s32.totalorder %s19, 7
      %s261 = scalar_select %p260, %s19, 7
      %p262 = scmp.lt.s32.totalorder %s259, 1
      %s263 = scalar_select %p262, %s259, 1
      %s264 = smul.addr %s261, 2
      %s265 = sadd.s32 %s263, %s264
      %s266 = smul.addr %s265, 8
      %s267 = scalar_lea.vmem %s1, %s266
      %s268 = smul.u32 2, %s21
      %s269 = smul.u32 2, %s21
      %p270 = scmp.lt.s32.totalorder %s19, 7
      %s271 = scalar_select %p270, %s19, 7
      %p272 = scmp.lt.s32.totalorder %s269, 1
      %s273 = scalar_select %p272, %s269, 1
      %s274 = smul.addr %s271, 2
      %s275 = sadd.s32 %s273, %s274
      %s276 = smul.addr %s275, 8
      %s277 = scalar_lea.vmem %s2, %s276
      %s278 = smul.u32 2, %s21
      %s279 = smul.u32 2, %s20
      %p280 = scmp.lt.s32.totalorder %s19, 7
      %s281 = scalar_select %p280, %s19, 7
      %p282 = scmp.lt.s32.totalorder %s279, 1
      %s283 = scalar_select %p282, %s279, 1
      %s284 = smul.addr %s281, 2
      %s285 = sadd.s32 %s283, %s284
      %s286 = smul.addr %s285, 8
      %s287 = scalar_lea.vmem %s3, %s286
      %s288 = smul.u32 2, %s20
      %p290 = scmp.eq.s32.totalorder %s21, 0
      // Predicated region
      $region33: #{_lambda_.26} parent=31 // pred_check
        %p291 = pneg %p290
      $region34: #{_lambda_.26} parent=31 // pred_check_branch
        %293 = sbr.rel (%p291) target = $region36
      $region35: #{_lambda_.26} parent=31 // pred_region
        %vm294 = vcmask 7168
        %295 = vst.msk [vmem:[#allocation2] sm:$0xff] %vm294, -1e+30
        %296 = vst.msk [vmem:[#allocation2 + $0x8] sm:$0xff] %vm294, -1e+30
        %297 = vst.msk [vmem:[#allocation3] sm:$0xff] %vm294, 0.0
        %298 = vst.msk [vmem:[#allocation3 + $0x8] sm:$0xff] %vm294, 0.0
        %vm299 = vcmask 64512
        %300 = vst.msk [vmem:[#allocation4] sm:$0xff] %vm299, 0.0
        %301 = vst.msk [vmem:[#allocation4 + $0x8] sm:$0xff] %vm299, 0.0
      $region36: #{_lambda_.26} parent=31 // pred_fallthru
        _
      %v302 = vld [vmem:[%s257] sm:$0xff]
      %v303 = vld [vmem:[%s257 + $0x8] sm:$0xff]
      %v304 = vpack.c.bf16 %v303, %v302
      %v305 = vld [vmem:[%s267] sm:$0xff]
      %v306 = vld [vmem:[%s267 + $0x8] sm:$0xff]
      %v307 = vpack.c.bf16 %v306, %v305
      %vm308 = vcmask 64512
      %v310 = vsel %vm308, %v304, 0
      %v313 = vsel %vm308, %v307, 0
      %315 = vmatpush.bf16.xpose.msra.mxu0 0
      %316 = vmatpush.bf16.xpose.msra.mxu0 0
      %317 = vmatpush.bf16.xpose.msra.mxu0 0
      %318 = vmatpush.bf16.xpose.msra.mxu0 0
      %319 = vmatpush.bf16.xpose.msra.mxu0 0
      %320 = vmatpush.bf16.xpose.msra.mxu0 0
      %321 = vmatpush.bf16.xpose.msra.mxu0 0
      %322 = vmatpush.bf16.xpose.msra.mxu0 %v313
      %323 = vmatmul.bf16.gmra.mxu0 %v310
      %v324 = vpop.f32.mrf.mxu0
      %v325 = vadd.f32 0.0, %v324
      %v326 = vpop.f32.mrf.mxu0
      %v327 = vadd.f32 0.0, %v326
      %328 = vdwg.mxu0
      %v329 = vmul.f32 %v325, 0.35355338
      %v330 = vmul.f32 %v327, 0.35355338
      %s331 = smul.u32 %s21, 16
      %v332 = vlaneseq
      %v333 = vand.u32 %v332, 127
      %v334 = vstv %s331
      %v335 = vadd.s32 %v334, %v333
      %vm336 = vcmp.lt.s32.totalorder %v335, 16
      %v337 = vsel %vm336, %v329, -1e+30
      %v338 = vsel %vm336, %v330, -1e+30
      %v339 = vld [vmem:[#allocation2] sm:$0xff]
      %v340 = vld [vmem:[#allocation2 + $0x8] sm:$0xff]
      %vm341 = vcmask 130048
      %v342 = vsel %vm341, %v337, -inf
      %343 = vmax.xlane.f32.xlu0 %v342
      %v344 = vpop.xlane.xlu0 %343
      %v345 = vsel %vm341, %v338, -inf
      %346 = vmax.xlane.f32.xlu0 %v345
      %v347 = vpop.xlane.xlu0 %346
      %v348 = vmax.f32 %v339, %v344
      %v349 = vmax.f32 %v340, %v347
      %v350 = vsub.f32 %v339, %v348
      %v351 = vsub.f32 %v340, %v349
      %v352 = vmul.f32 %v350, 1.442695
      %v353 = vpow.pop %v352
      %v354 = vmul.f32 %v351, 1.442695
      %v355 = vpow.pop %v354
      %357 = vset.pattern.permute.xlu0 0
      %358 = vperm.xlu0 %357, %v348
      %v359 = vpop.permute.xlu0 %358
      %362 = vset.pattern.permute.xlu0 0
      %363 = vperm.xlu0 %362, %v349
      %v364 = vpop.permute.xlu0 %363
      %v366 = vsub.f32 %v337, %v359
      %v367 = vsub.f32 %v338, %v364
      %v368 = vmul.f32 %v366, 1.442695
      %v369 = vpow.pop %v368
      %v370 = vmul.f32 %v367, 1.442695
      %v371 = vpow.pop %v370
      %v372 = vld [vmem:[#allocation3] sm:$0xff]
      %v373 = vld [vmem:[#allocation3 + $0x8] sm:$0xff]
      %v374 = vmul.f32 %v353, %v372
      %v375 = vmul.f32 %v355, %v373
      %v376 = vsel %vm341, %v369, 0.0
      %377 = vadd.xlane.f32.xlu0 %v376
      %v378 = vpop.xlane.xlu0 %377
      %v379 = vsel %vm341, %v371, 0.0
      %380 = vadd.xlane.f32.xlu0 %v379
      %v381 = vpop.xlane.xlu0 %380
      %v382 = vadd.f32 %v374, %v378
      %v383 = vadd.f32 %v375, %v381
      %vm384 = vcmask 7168
      %385 = vst.msk [vmem:[#allocation3] sm:$0xff] %vm384, %v382
      %386 = vst.msk [vmem:[#allocation3 + $0x8] sm:$0xff] %vm384, %v383
      %v387 = vld [vmem:[#allocation4] sm:$0xff]
      %v388 = vld [vmem:[#allocation4 + $0x8] sm:$0xff]
      %390 = vset.pattern.permute.xlu0 0
      %391 = vperm.xlu0 %390, %v353
      %v392 = vpop.permute.xlu0 %391
      %395 = vset.pattern.permute.xlu0 0
      %396 = vperm.xlu0 %395, %v355
      %v397 = vpop.permute.xlu0 %396
      %v399 = vmul.f32 %v392, %v387
      %v400 = vmul.f32 %v397, %v388
      %v401 = vpack.c.bf16 %v371, %v369
      %v402 = vld [vmem:[%s277] sm:$0xff]
      %v403 = vld [vmem:[%s277 + $0x8] sm:$0xff]
      %v404 = vpack.c.bf16 %v403, %v402
      %v406 = vsel %vm341, %v401, 0
      %408 = vmatpush.bf16.msra.mxu0 0
      %409 = vmatpush.bf16.msra.mxu0 0
      %410 = vmatpush.bf16.msra.mxu0 0
      %411 = vmatpush.bf16.msra.mxu0 0
      %412 = vmatpush.bf16.msra.mxu0 0
      %413 = vmatpush.bf16.msra.mxu0 0
      %414 = vmatpush.bf16.msra.mxu0 0
      %415 = vmatpush.bf16.msra.mxu0 %v404
      %416 = vmatmul.bf16.gmra.mxu0 %v406
      %v417 = vpop.f32.mrf.mxu0
      %v418 = vadd.f32 0.0, %v417
      %v419 = vpop.f32.mrf.mxu0
      %v420 = vadd.f32 0.0, %v419
      %421 = vdwg.mxu0
      %v422 = vadd.f32 %v399, %v418
      %v423 = vadd.f32 %v400, %v420
      %424 = vst.msk [vmem:[#allocation4] sm:$0xff] %vm308, %v422
      %425 = vst.msk [vmem:[#allocation4 + $0x8] sm:$0xff] %vm308, %v423
      %426 = vst.msk [vmem:[#allocation2] sm:$0xff] %vm384, %v348
      %427 = vst.msk [vmem:[#allocation2 + $0x8] sm:$0xff] %vm384, %v349
      // Predicated region
      $region37: #{_lambda_.26} parent=31 // pred_check
        %p428 = pneg %p290
      $region38: #{_lambda_.26} parent=31 // pred_check_branch
        %430 = sbr.rel (%p428) target = $region40
      $region39: #{_lambda_.26} parent=31 // pred_region
        %v431 = vld [vmem:[#allocation4] sm:$0xff]
        %v432 = vld [vmem:[#allocation4 + $0x8] sm:$0xff]
        %v433 = vld [vmem:[#allocation3] sm:$0xff]
        %v434 = vld [vmem:[#allocation3 + $0x8] sm:$0xff]
        %v435 = vrcp.pop %v433
        %v436 = vrcp.pop %v434
        %438 = vset.pattern.permute.xlu0 0
        %439 = vperm.xlu0 %438, %v435
        %v440 = vpop.permute.xlu0 %439
        %443 = vset.pattern.permute.xlu0 0
        %444 = vperm.xlu0 %443, %v436
        %v445 = vpop.permute.xlu0 %444
        %v447 = vmul.f32 %v431, %v440
        %v448 = vmul.f32 %v432, %v445
        %449 = vst.msk [vmem:[%s287] sm:$0xff] %vm308, %v447
        %450 = vst.msk [vmem:[%s287 + $0x8] sm:$0xff] %vm308, %v448
      $region40: #{_lambda_.26} parent=31 // pred_fallthru
        _
      %s451 = smul.u32 2, %s20
      %p452 = scmp.lt.s32.totalorder %s19, 7
      %s453 = scalar_select %p452, %s19, 7
      %p454 = scmp.lt.s32.totalorder %s451, 1
      %s455 = scalar_select %p454, %s451, 1
      %s456 = smul.addr %s453, 2
      %s457 = sadd.s32 %s455, %s456
      %s458 = smul.addr %s457, 8
      %s459 = scalar_lea.vmem %s3, %s458
      // Predicated region
      $region41: #{_lambda_.26} parent=31 // pred_check
        %p460 = pneg %p137
      $region42: #{_lambda_.26} parent=31 // pred_check_branch
        %462 = sbr.rel (%p460) target = $region44
      $region43: #{_lambda_.26} parent=31 // pred_region
        %s463 = smul.u32 2, %s20
      $region44: #{_lambda_.26} parent=31 // pred_fallthru
        _
    $region32: #{_lambda_.26} parent=5 // pred_fallthru
      _
    %p464 = scmp.le.s32.totalorder 2, %s9
    // Predicated region
    $region45: #{_lambda_.26} parent=5 // pred_check
      %p465 = pneg %p464
    $region46: #{_lambda_.26} parent=5 // pred_check_branch
      %467 = sbr.rel (%p465) target = $region48
    $region47: #{_lambda_.26} parent=5 // pred_region
      %s468 = ssub.s32 %s9, 2
      // Predicated region
      $region49: #{_lambda_.26} parent=47 // pred_check
        %p469 = pneg %p143
      $region50: #{_lambda_.26} parent=47 // pred_check_branch
        %471 = sbr.rel (%p469) target = $region52
      $region51: #{_lambda_.26} parent=47 // pred_region
        %s472 = smul.u32 2, %s23
        %p473 = scmp.lt.s32.totalorder %s22, 7
        %s474 = scalar_select %p473, %s22, 7
        %p475 = scmp.lt.s32.totalorder %s472, 1
        %s476 = scalar_select %p475, %s472, 1
        %s477 = smul.addr %s474, 2
        %s478 = sadd.s32 %s476, %s477
        %s479 = smul.addr %s478, 8
        %s480 = scalar_lea.vmem %s3, %s479
      $region52: #{_lambda_.26} parent=47 // pred_fallthru
        _
    $region48: #{_lambda_.26} parent=5 // pred_fallthru
      _
  $region6: #{_lambda_.26} parent=0 // loop_footer
    %s13 = sadd.s32 1, %s9
  $region7: #{_lambda_.26} parent=0 // loop_footer_branch
    %8 = sbr.rel target = $region3
  $region8: #{_lambda_.26} parent=0 // loop_exit
    _

// kernel: _lambda_.28
$region0: #{_lambda_.28}
  #allocation0 [shape = 'u32[]', space=smem, size = 0x4, offset = 0x4, fixed_abs, tag = 'smem constant byte address 0x4 - core index']
  #allocation1 [shape = 'u32[72,128]{1,0:T(1,128)}', space=vmem, size = 0x9000, scoped, tag = 'internal scratch']
  %s0 = inlined_call_operand.vmem [shape: f32[32,32], index: 0, kind: input, shape index: {}]
  %s1 = inlined_call_operand.vmem [shape: bf16[32,64], index: 1, kind: input, shape index: {}]
  %s2 = inlined_call_operand.vmem [shape: f32[1,64], index: 2, kind: input, shape index: {}]
  %s3 = inlined_call_operand.vmem [shape: bf16[64,32], index: 3, kind: input, shape index: {}]
  %s4 = inlined_call_operand.vmem [shape: f32[1,32], index: 4, kind: input, shape index: {}]
  %s5 = inlined_call_operand.vmem [shape: f32[1,32], index: 5, kind: input, shape index: {}]
  %s6 = inlined_call_operand.vmem [shape: f32[1,32], index: 6, kind: input, shape index: {}]
  %s7 = inlined_call_operand.vmem [shape: f32[32,32], index: 7, kind: output, shape index: {}]
  %s8 = sld [smem:[#allocation0]]
  $region38: #{_lambda_.28} parent=0
    _
  %s10 = ssub.s32 1, %s8
  %s11 = scalar_select 0, %s10, %s8
  // Predicated region
  $region2: #{_lambda_.28} parent=0 // pred_check
    _
  $region3: #{_lambda_.28} parent=0 // pred_check_branch
    %13 = sbr.rel (0) target = $region5
  $region4: #{_lambda_.28} parent=0 // pred_region
    _
  $region5: #{_lambda_.28} parent=0 // pred_fallthru
    _
  // Predicated region
  $region6: #{_lambda_.28} parent=0 // pred_check
    _
  $region7: #{_lambda_.28} parent=0 // pred_check_branch
    %15 = sbr.rel (0) target = $region9
  $region8: #{_lambda_.28} parent=0 // pred_region
    _
  $region9: #{_lambda_.28} parent=0 // pred_fallthru
    _
  // Predicated region
  $region10: #{_lambda_.28} parent=0 // pred_check
    _
  $region11: #{_lambda_.28} parent=0 // pred_check_branch
    %17 = sbr.rel (0) target = $region13
  $region12: #{_lambda_.28} parent=0 // pred_region
    _
  $region13: #{_lambda_.28} parent=0 // pred_fallthru
    _
  // Predicated region
  $region14: #{_lambda_.28} parent=0 // pred_check
    _
  $region15: #{_lambda_.28} parent=0 // pred_check_branch
    %19 = sbr.rel (0) target = $region17
  $region16: #{_lambda_.28} parent=0 // pred_region
    _
  $region17: #{_lambda_.28} parent=0 // pred_fallthru
    _
  // Predicated region
  $region18: #{_lambda_.28} parent=0 // pred_check
    _
  $region19: #{_lambda_.28} parent=0 // pred_check_branch
    %21 = sbr.rel (0) target = $region21
  $region20: #{_lambda_.28} parent=0 // pred_region
    _
  $region21: #{_lambda_.28} parent=0 // pred_fallthru
    _
  // Predicated region
  $region22: #{_lambda_.28} parent=0 // pred_check
    _
  $region23: #{_lambda_.28} parent=0 // pred_check_branch
    %23 = sbr.rel (0) target = $region25
  $region24: #{_lambda_.28} parent=0 // pred_region
    _
  $region25: #{_lambda_.28} parent=0 // pred_fallthru
    _
  // Predicated region
  $region26: #{_lambda_.28} parent=0 // pred_check
    _
  $region27: #{_lambda_.28} parent=0 // pred_check_branch
    %25 = sbr.rel (0) target = $region29
  $region28: #{_lambda_.28} parent=0 // pred_region
    _
  $region29: #{_lambda_.28} parent=0 // pred_fallthru
    _
  %v27 = vld [vmem:[%s0] sm:$0xff]
  %v28 = vld [vmem:[%s0 + $0x8] sm:$0xff]
  %v29 = vld [vmem:[%s0 + $0x10] sm:$0xff]
  %v30 = vld [vmem:[%s0 + $0x18] sm:$0xff]
  %v31 = vpack.c.bf16 %v28, %v27
  %v32 = vpack.c.bf16 %v30, %v29
  %v33 = vld [vmem:[%s1] sm:$0xf]
  %v34 = vld [vmem:[%s1 + $0x4] sm:$0xf]
  %v35 = vld [vmem:[%s1 + $0x8] sm:$0xf]
  %v36 = vld [vmem:[%s1 + $0xc] sm:$0xf]
  %v37 = vld [vmem:[%s2] sm:$0x1]
  %v39 = vperm.slane %v37, 0
  %v45 = vunpack.c.l.b16 %v33
  %v46 = vunpack.c.l.b16 %v34
  %v47 = vunpack.c.l.b16 %v35
  %v48 = vunpack.c.l.b16 %v36
  %v49 = vpack.c.b16 %v46, %v45
  %v50 = vpack.c.b16 %v48, %v47
  %vm53 = vcmask 261120
  %v55 = vsel %vm53, %v31, 0
  %v58 = vsel %vm53, %v32, 0
  %60 = vmatpush.bf16.msra.mxu0 0
  %61 = vmatpush.bf16.msra.mxu0 0
  %62 = vmatpush.bf16.msra.mxu0 0
  %63 = vmatpush.bf16.msra.mxu0 0
  %64 = vmatpush.bf16.msra.mxu0 0
  %65 = vmatpush.bf16.msra.mxu0 0
  %66 = vmatpush.bf16.msra.mxu0 %v50
  %67 = vmatpush.bf16.msra.mxu0 %v49
  %68 = vmatmul.bf16.gmra.mxu0 %v55
  %v69 = vpop.f32.mrf.mxu0
  %v70 = vadd.f32 %v39, %v69
  %v71 = vpop.f32.mrf.mxu0
  %v72 = vadd.f32 %v39, %v71
  %73 = vmatmul.bf16.gmra.mxu0 %v58
  %v74 = vpop.f32.mrf.mxu0
  %v75 = vadd.f32 %v39, %v74
  %v76 = vpop.f32.mrf.mxu0
  %v77 = vadd.f32 %v39, %v76
  %78 = vdwg.mxu0
  %v79 = vmax.f32 %v70, 0.0
  %v80 = vmax.f32 %v72, 0.0
  %v81 = vmax.f32 %v75, 0.0
  %v82 = vmax.f32 %v77, 0.0
  %v83 = vpack.c.bf16 %v80, %v79
  %v84 = vpack.c.bf16 %v82, %v81
  %v85 = vld [vmem:[%s3] sm:$0xf]
  %v86 = vld [vmem:[%s3 + $0x4] sm:$0xf]
  %v87 = vld [vmem:[%s3 + $0x8] sm:$0xf]
  %v88 = vld [vmem:[%s3 + $0xc] sm:$0xf]
  %v89 = vld [vmem:[%s3 + $0x10] sm:$0xf]
  %v90 = vld [vmem:[%s3 + $0x14] sm:$0xf]
  %v91 = vld [vmem:[%s3 + $0x18] sm:$0xf]
  %v92 = vld [vmem:[%s3 + $0x1c] sm:$0xf]
  %v93 = vld [vmem:[%s4] sm:$0x1]
  %v95 = vperm.slane %v93, 0
  %v105 = vunpack.c.l.b16 %v85
  %v106 = vunpack.c.l.b16 %v86
  %v107 = vunpack.c.l.b16 %v87
  %v108 = vunpack.c.l.b16 %v88
  %v109 = vunpack.c.l.b16 %v89
  %v110 = vunpack.c.l.b16 %v90
  %v111 = vunpack.c.l.b16 %v91
  %v112 = vunpack.c.l.b16 %v92
  %v113 = vpack.c.b16 %v106, %v105
  %v114 = vpack.c.b16 %v108, %v107
  %v115 = vpack.c.b16 %v110, %v109
  %v116 = vpack.c.b16 %v112, %v111
  %vm121 = vcmask 523264
  %v123 = vsel %vm121, %v83, 0
  %v126 = vsel %vm121, %v84, 0
  %128 = vmatpush.bf16.msra.mxu0 0
  %129 = vmatpush.bf16.msra.mxu0 0
  %130 = vmatpush.bf16.msra.mxu0 0
  %131 = vmatpush.bf16.msra.mxu0 0
  %132 = vmatpush.bf16.msra.mxu0 %v116
  %133 = vmatpush.bf16.msra.mxu0 %v115
  %134 = vmatpush.bf16.msra.mxu0 %v114
  %135 = vmatpush.bf16.msra.mxu0 %v113
  %136 = vmatmul.bf16.gmra.mxu0 %v123
  %v137 = vpop.f32.mrf.mxu0
  %v138 = vadd.f32 %v95, %v137
  %v139 = vpop.f32.mrf.mxu0
  %v140 = vadd.f32 %v95, %v139
  %141 = vmatmul.bf16.gmra.mxu0 %v126
  %v142 = vpop.f32.mrf.mxu0
  %v143 = vadd.f32 %v95, %v142
  %v144 = vpop.f32.mrf.mxu0
  %v145 = vadd.f32 %v95, %v144
  %146 = vdwg.mxu0
  %v147 = vadd.f32 %v138, %v27
  %v148 = vadd.f32 %v140, %v28
  %v149 = vadd.f32 %v143, %v29
  %v150 = vadd.f32 %v145, %v30
  %v151 = vsel %vm53, %v147, 0.0
  %152 = vadd.xlane.f32.xlu0 %v151
  %v153 = vpop.xlane.xlu0 %152
  %v154 = vsel %vm53, %v148, 0.0
  %155 = vadd.xlane.f32.xlu0 %v154
  %v156 = vpop.xlane.xlu0 %155
  %v157 = vsel %vm53, %v149, 0.0
  %158 = vadd.xlane.f32.xlu0 %v157
  %v159 = vpop.xlane.xlu0 %158
  %v160 = vsel %vm53, %v150, 0.0
  %161 = vadd.xlane.f32.xlu0 %v160
  %v162 = vpop.xlane.xlu0 %161
  %v163 = vrcp.pop 32.0
  %v164 = vmul.f32 32.0, %v163
  %v165 = vsub.f32 1.0, %v164
  %v166 = vmul.f32 %v163, %v165
  %v167 = vadd.f32 %v163, %v166
  %vm168 = vweird.f32 %v163
  %v169 = vsel %vm168, %v163, %v167
  %v170 = vmul.f32 %v153, %v169
  %v171 = vmul.f32 %v156, %v169
  %v172 = vmul.f32 %v159, %v169
  %v173 = vmul.f32 %v162, %v169
  %v174 = vsub.f32 %v147, %v170
  %v175 = vsub.f32 %v148, %v171
  %v176 = vsub.f32 %v149, %v172
  %v177 = vsub.f32 %v150, %v173
  %v178 = vmul.f32 %v174, %v174
  %v179 = vmul.f32 %v175, %v175
  %v180 = vmul.f32 %v176, %v176
  %v181 = vmul.f32 %v177, %v177
  %v182 = vsel %vm53, %v178, 0.0
  %183 = vadd.xlane.f32.xlu0 %v182
  %v184 = vpop.xlane.xlu0 %183
  %v185 = vsel %vm53, %v179, 0.0
  %186 = vadd.xlane.f32.xlu0 %v185
  %v187 = vpop.xlane.xlu0 %186
  %v188 = vsel %vm53, %v180, 0.0
  %189 = vadd.xlane.f32.xlu0 %v188
  %v190 = vpop.xlane.xlu0 %189
  %v191 = vsel %vm53, %v181, 0.0
  %192 = vadd.xlane.f32.xlu0 %v191
  %v193 = vpop.xlane.xlu0 %192
  %v194 = vmul.f32 %v184, %v169
  %v195 = vmul.f32 %v187, %v169
  %v196 = vmul.f32 %v190, %v169
  %v197 = vmul.f32 %v193, %v169
  %v198 = vadd.f32 %v194, 1e-05
  %v199 = vadd.f32 %v195, 1e-05
  %v200 = vadd.f32 %v196, 1e-05
  %v201 = vadd.f32 %v197, 1e-05
  %v202 = vrsqrt.pop %v198
  %v203 = vmul.f32 %v202, %v198
  %v204 = vmul.f32 %v203, %v202
  %v205 = vmul.f32 0.5, %v204
  %v206 = vsub.f32 1.5, %v205
  %v207 = vmul.f32 %v202, %v206
  %vm208 = vweird.f32 %v198
  %vm209 = vweird.f32 %v202
  %vm210 = vmor %vm208, %vm209
  %v211 = vsel %vm210, %v202, %v207
  %v212 = vrsqrt.pop %v199
  %v213 = vmul.f32 %v212, %v199
  %v214 = vmul.f32 %v213, %v212
  %v215 = vmul.f32 0.5, %v214
  %v216 = vsub.f32 1.5, %v215
  %v217 = vmul.f32 %v212, %v216
  %vm218 = vweird.f32 %v199
  %vm219 = vweird.f32 %v212
  %vm220 = vmor %vm218, %vm219
  %v221 = vsel %vm220, %v212, %v217
  %v222 = vrsqrt.pop %v200
  %v223 = vmul.f32 %v222, %v200
  %v224 = vmul.f32 %v223, %v222
  %v225 = vmul.f32 0.5, %v224
  %v226 = vsub.f32 1.5, %v225
  %v227 = vmul.f32 %v222, %v226
  %vm228 = vweird.f32 %v200
  %vm229 = vweird.f32 %v222
  %vm230 = vmor %vm228, %vm229
  %v231 = vsel %vm230, %v222, %v227
  %v232 = vrsqrt.pop %v201
  %v233 = vmul.f32 %v232, %v201
  %v234 = vmul.f32 %v233, %v232
  %v235 = vmul.f32 0.5, %v234
  %v236 = vsub.f32 1.5, %v235
  %v237 = vmul.f32 %v232, %v236
  %vm238 = vweird.f32 %v201
  %vm239 = vweird.f32 %v232
  %vm240 = vmor %vm238, %vm239
  %v241 = vsel %vm240, %v232, %v237
  %v242 = vmul.f32 %v174, %v211
  %v243 = vmul.f32 %v175, %v221
  %v244 = vmul.f32 %v176, %v231
  %v245 = vmul.f32 %v177, %v241
  %v246 = vld [vmem:[%s5] sm:$0x1]
  %v248 = vperm.slane %v246, 0
  %v250 = vmul.f32 %v242, %v248
  %v251 = vmul.f32 %v243, %v248
  %v252 = vmul.f32 %v244, %v248
  %v253 = vmul.f32 %v245, %v248
  %v254 = vld [vmem:[%s6] sm:$0x1]
  %v256 = vperm.slane %v254, 0
  %v258 = vadd.f32 %v250, %v256
  %v259 = vadd.f32 %v251, %v256
  %v260 = vadd.f32 %v252, %v256
  %v261 = vadd.f32 %v253, %v256
  %262 = vst.msk [vmem:[%s7] sm:$0xff] %vm53, %v258
  %263 = vst.msk [vmem:[%s7 + $0x8] sm:$0xff] %vm53, %v259
  %264 = vst.msk [vmem:[%s7 + $0x10] sm:$0xff] %vm53, %v260
  %265 = vst.msk [vmem:[%s7 + $0x18] sm:$0xff] %vm53, %v261
  // Predicated region
  $region30: #{_lambda_.28} parent=0 // pred_check
    _
  $region31: #{_lambda_.28} parent=0 // pred_check_branch
    %267 = sbr.rel (0) target = $region33
  $region32: #{_lambda_.28} parent=0 // pred_region
    _
  $region33: #{_lambda_.28} parent=0 // pred_fallthru
    _
  // Predicated region
  $region34: #{_lambda_.28} parent=0 // pred_check
    _
  $region35: #{_lambda_.28} parent=0 // pred_check_branch
    %269 = sbr.rel (0) target = $region37
  $region36: #{_lambda_.28} parent=0 // pred_region
    _
  $region37: #{_lambda_.28} parent=0 // pred_fallthru
    _

</llo_original>
